<compile_context>
chip_gen: v7x
topology: tpu7x:2x2x1
jax: 0.10.0
libtpu: 0.0.40
codegen_flags: <defaults>
</compile_context>

<pallas_src>
import functools
import math

import jax
import jax.numpy as jnp
from jax import lax
from jax.experimental import pallas as pl
from jax.experimental.pallas import tpu as pltpu

_MAX_TIME_CHUNK = 32  # bounds per-chunk VMEM; actual chunk must divide S exactly


def _pick_chunk(seq_len, max_chunk=_MAX_TIME_CHUNK):
    """Largest divisor of seq_len that is <= max_chunk.

    The time axis must not be padded: zero-padded steps would corrupt the
    reversed (backward) recurrence, so we only chunk with exact divisors.
    """
    for c in range(min(seq_len, max_chunk), 0, -1):
        if seq_len % c == 0:
            return c
    return seq_len


# ---------------------------------------------------------------------------
# Fused per-layer kernel: chunked input projection + interleaved fwd/bwd
# recurrence.  One grid step = one time chunk (fwd chunk i, bwd chunk nc-1-i).
# ---------------------------------------------------------------------------
def _bilstm_layer_kernel(xf_ref, xb_ref, wihf_ref, wihb_ref, bf_ref, bb_ref,
                         whhf_ref, whhb_ref, outf_ref, outb_ref,
                         gf_sc, gb_sc, hf_sc, cf_sc, hb_sc, cb_sc,
                         *, t_chunk, hidden):
    H = hidden
    G = 4 * H
    T, B, D = xf_ref.shape  # T == t_chunk

    @pl.when(pl.program_id(0) == 0)
    def _init():
        hf_sc[...] = jnp.zeros_like(hf_sc)
        cf_sc[...] = jnp.zeros_like(cf_sc)
        hb_sc[...] = jnp.zeros_like(hb_sc)
        cb_sc[...] = jnp.zeros_like(cb_sc)

    # ---- time-parallel part: input projection for this chunk (both dirs) ----
    # bf16 x bf16 matmul on the MXU with f32 accumulation; bias kept in f32.
    xf = xf_ref[...].reshape(T * B, D)
    xb = xb_ref[...].reshape(T * B, D)
    gf_sc[...] = (jnp.dot(xf, wihf_ref[...], preferred_element_type=jnp.float32)
                  + bf_ref[...]).reshape(T, B, G)
    gb_sc[...] = (jnp.dot(xb, wihb_ref[...], preferred_element_type=jnp.float32)
                  + bb_ref[...]).reshape(T, B, G)

    whh_f = whhf_ref[...]  # (H, 4H) bf16, hoisted out of the serial loop
    whh_b = whhb_ref[...]

    def cell(gates, c):
        # PyTorch gate order [i, f, g, o]; math in f32, c stays f32.
        i_g = jax.nn.sigmoid(gates[:, 0 * H:1 * H])
        f_g = jax.nn.sigmoid(gates[:, 1 * H:2 * H])
        g_g = jnp.tanh(gates[:, 2 * H:3 * H])
        o_g = jax.nn.sigmoid(gates[:, 3 * H:4 * H])
        c_new = f_g * c + i_g * g_g
        h_new = o_g * jnp.tanh(c_new)
        return h_new, c_new

    def step(j, carry):
        hf, cf, hb, cb = carry                  # (B, H) f32 each
        jb = t_chunk - 1 - j                    # backward local time index
        gates_f = gf_sc[j] + jnp.dot(hf.astype(whh_f.dtype), whh_f,
                                     preferred_element_type=jnp.float32)
        gates_b = gb_sc[jb] + jnp.dot(hb.astype(whh_b.dtype), whh_b,
                                      preferred_element_type=jnp.float32)
        hf, cf = cell(gates_f, cf)
        hb, cb = cell(gates_b, cb)
        outf_ref[j] = hf.astype(outf_ref.dtype)
        outb_ref[jb] = hb.astype(outb_ref.dtype)
        return hf, cf, hb, cb

    carry0 = (hf_sc[...], cf_sc[...], hb_sc[...], cb_sc[...])
    hf, cf, hb, cb = lax.fori_loop(0, t_chunk, step, carry0,
                                   unroll=bool(t_chunk <= 8))

    # Persist the recurrent state for the next time chunk.
    hf_sc[...] = hf
    cf_sc[...] = cf
    hb_sc[...] = hb
    cb_sc[...] = cb


def _bilstm_layer(x_sbd, p_fwd, p_bwd, *, hidden):
    """x_sbd: (S, B, D) bf16.  p_* = (w_ih (D,4H) bf16, w_hh (H,4H) bf16,
    bias (1,4H) f32).  Returns (out_f, out_b): (S, B, H) bf16 each."""
    S, B, D = x_sbd.shape
    H = hidden
    G = 4 * H
    t_chunk = _pick_chunk(S)
    nc = S // t_chunk

    wih_f, whh_f, bias_f = p_fwd
    wih_b, whh_b, bias_b = p_bwd

    kernel = functools.partial(_bilstm_layer_kernel, t_chunk=t_chunk, hidden=H)
    out_f, out_b = pl.pallas_call(
        kernel,
        out_shape=(jax.ShapeDtypeStruct((S, B, H), jnp.bfloat16),
                   jax.ShapeDtypeStruct((S, B, H), jnp.bfloat16)),
        grid_spec=pltpu.PrefetchScalarGridSpec(
            num_scalar_prefetch=0,
            grid=(nc,),
            in_specs=[
                # same x array passed twice: forward chunk i, backward chunk nc-1-i
                pl.BlockSpec((t_chunk, B, D), lambda i: (i, 0, 0)),
                pl.BlockSpec((t_chunk, B, D), lambda i: (nc - 1 - i, 0, 0)),
                pl.BlockSpec((D, G), lambda i: (0, 0)),   # W_ih fwd
                pl.BlockSpec((D, G), lambda i: (0, 0)),   # W_ih bwd
                pl.BlockSpec((1, G), lambda i: (0, 0)),   # bias fwd (b_ih+b_hh)
                pl.BlockSpec((1, G), lambda i: (0, 0)),   # bias bwd
                pl.BlockSpec((H, G), lambda i: (0, 0)),   # W_hh fwd
                pl.BlockSpec((H, G), lambda i: (0, 0)),   # W_hh bwd
            ],
            out_specs=[
                pl.BlockSpec((t_chunk, B, H), lambda i: (i, 0, 0)),
                pl.BlockSpec((t_chunk, B, H), lambda i: (nc - 1 - i, 0, 0)),
            ],
            scratch_shapes=[
                pltpu.VMEM((t_chunk, B, G), jnp.float32),  # fwd gate pre-acts
                pltpu.VMEM((t_chunk, B, G), jnp.float32),  # bwd gate pre-acts
                pltpu.VMEM((B, H), jnp.float32),           # h fwd
                pltpu.VMEM((B, H), jnp.float32),           # c fwd
                pltpu.VMEM((B, H), jnp.float32),           # h bwd
                pltpu.VMEM((B, H), jnp.float32),           # c bwd
            ],
        ),
        compiler_params=pltpu.CompilerParams(
            dimension_semantics=("arbitrary",)),
    )(x_sbd, x_sbd, wih_f, wih_b, bias_f, bias_b, whh_f, whh_b)
    return out_f, out_b


# ---------------------------------------------------------------------------
# Full LSTM_encoder forward
# ---------------------------------------------------------------------------
@functools.partial(
    jax.jit, static_argnames=("hidden_size", "num_layers", "bidirectional"))
def lstm_encoder_forward(x, params, *, hidden_size, num_layers,
                         bidirectional=True):
    """Pallas equivalent of LSTM_encoder.forward: returns (out, hn)."""
    if not bidirectional:
        # TODO(synk): unidirectional (biflag=False) path not implemented; the
        # module's default biflag=True is what this kernel covers.
        raise NotImplementedError("biflag=False path not implemented")
    B, S, _ = x.shape
    H = hidden_size
    layer_in = jnp.transpose(x, (1, 0, 2)).astype(jnp.bfloat16)  # (S, B, D) bf16
    hn_parts = []
    for layer in range(num_layers):
        p_fwd, p_bwd = params[layer]
        out_f, out_b = _bilstm_layer(layer_in, p_fwd, p_bwd, hidden=H)
        hn_parts.append(out_f[S - 1].astype(jnp.float32))  # fwd final h
        hn_parts.append(out_b[0].astype(jnp.float32))      # bwd final h
        # NOTE: this concat could be folded into the next layer's projection
        # (split W_ih rows); kept as a single cheap XLA op for clarity.
        layer_in = jnp.concatenate([out_f, out_b], axis=-1)  # (S, B, 2H) bf16
        # TODO(synk): nn.LSTM inter-layer dropout is training-only; this is the
        # inference forward, so it is intentionally omitted.
    out = jnp.transpose(layer_in, (1, 0, 2)).astype(jnp.float32)  # (B, S, 2H)
    hn = jnp.stack(hn_parts, axis=0)                              # (2L, B, H)
    return out, hn


# ---------------------------------------------------------------------------
# Parameters (PyTorch-style uniform(-1/sqrt(H), 1/sqrt(H)); stored transposed,
# weights in bf16, combined bias in f32)
# ---------------------------------------------------------------------------
def init_lstm_params(key, in_size, hidden_size, num_layers, bidirectional=True):
    num_dir = 2 if bidirectional else 1
    bound = 1.0 / math.sqrt(hidden_size)
    params = []
    for layer in range(num_layers):
        d_in = in_size if layer == 0 else hidden_size * num_dir
        dirs = []
        for _ in range(num_dir):
            key, k1, k2, k3, k4 = jax.random.split(key, 5)
            w_ih = jax.random.uniform(k1, (d_in, 4 * hidden_size), jnp.float32,
                                      -bound, bound).astype(jnp.bfloat16)
            w_hh = jax.random.uniform(k2, (hidden_size, 4 * hidden_size),
                                      jnp.float32, -bound, bound
                                      ).astype(jnp.bfloat16)
            b_ih = jax.random.uniform(k3, (4 * hidden_size,), jnp.float32,
                                      -bound, bound)
            b_hh = jax.random.uniform(k4, (4 * hidden_size,), jnp.float32,
                                      -bound, bound)
            bias = (b_ih + b_hh).reshape(1, 4 * hidden_size)  # f32
            dirs.append((w_ih, w_hh, bias))
        params.append(tuple(dirs))
    return params, key


# ---------------------------------------------------------------------------
# Pure-JAX reference mirroring the kernel's arithmetic (bf16 inputs/weights,
# f32 accumulation, f32 cell state, bf16-stored layer outputs).
# ---------------------------------------------------------------------------
def lstm_encoder_reference(x, params, *, hidden_size, num_layers,
                           bidirectional=True):
    H = hidden_size
    B, S, _ = x.shape
    layer_in = jnp.transpose(x, (1, 0, 2)).astype(jnp.bfloat16)  # (S, B, D)
    hn_parts = []
    num_dir = 2 if bidirectional else 1
    for layer in range(num_layers):
        dir_outs = []
        for d in range(num_dir):
            w_ih, w_hh, bias = params[layer][d]
            h = jnp.zeros((B, H), jnp.float32)
            c = jnp.zeros((B, H), jnp.float32)
            steps = [None] * S
            order = range(S - 1, -1, -1) if d == 1 else range(S)
            for t in order:
                gates = (jnp.dot(layer_in[t], w_ih,
                                 preferred_element_type=jnp.float32)
                         + bias
                         + jnp.dot(h.astype(jnp.bfloat16), w_hh,
                                   preferred_element_type=jnp.float32))
                i_g = jax.nn.sigmoid(gates[:, 0 * H:1 * H])
                f_g = jax.nn.sigmoid(gates[:, 1 * H:2 * H])
                g_g = jnp.tanh(gates[:, 2 * H:3 * H])
                o_g = jax.nn.sigmoid(gates[:, 3 * H:4 * H])
                c = f_g * c + i_g * g_g
                h = o_g * jnp.tanh(c)
                steps[t] = h.astype(jnp.bfloat16)
            out_d = jnp.stack(steps, axis=0)  # (S, B, H) bf16
            dir_outs.append(out_d)
            hn_parts.append(
                (out_d[S - 1] if d == 0 else out_d[0]).astype(jnp.float32))
        layer_in = (dir_outs[0] if num_dir == 1
                    else jnp.concatenate(dir_outs, axis=-1))
    out = jnp.transpose(layer_in, (1, 0, 2)).astype(jnp.float32)
    hn = jnp.stack(hn_parts, axis=0)
    return out, hn


if __name__ == "__main__":
    key = jax.random.PRNGKey(0)

    in_size, hidden_size, num_layers = 32, 32, 2
    batch, seq = 2, 8
    bidirectional = True  # biflag=True (module default)

    params, key = init_lstm_params(key, in_size, hidden_size, num_layers,
                                   bidirectional)
    key, k_x = jax.random.split(key)
    x = jax.random.normal(k_x, (batch, seq, in_size), jnp.float32)

    out, hn = lstm_encoder_forward(
        x, params, hidden_size=hidden_size, num_layers=num_layers,
        bidirectional=bidirectional)
    out = jax.block_until_ready(out)
    hn = jax.block_until_ready(hn)

    out_ref, hn_ref = lstm_encoder_reference(
        x, params, hidden_size=hidden_size, num_layers=num_layers,
        bidirectional=bidirectional)

    num_dir = 2 if bidirectional else 1
    assert out.shape == (batch, seq, num_dir * hidden_size)
    assert hn.shape == (num_layers * num_dir, batch, hidden_size)
    # Tolerance sized for bf16 storage ULPs (~8e-3 near |h|~1): both paths round
    # at the same points, so residual diffs are transcendental-impl level plus
    # (rarely) one bf16 ULP flip.
    assert bool(jnp.allclose(out, out_ref, atol=2e-2, rtol=2e-2)), \
        "out mismatch vs reference LSTM"
    assert bool(jnp.allclose(hn, hn_ref, atol=2e-2, rtol=2e-2)), \
        "hn mismatch vs reference LSTM"

    print("KERNEL_OK")
</pallas_src>

<mosaic_0001>
module attributes {stable_mosaic.version = 11 : i64} {
  func.func @_bilstm_layer_kernel(%arg0: i32, %arg1: memref<8x2x32xbf16, #tpu.memory_space<vmem>>, %arg2: memref<8x2x32xbf16, #tpu.memory_space<vmem>>, %arg3: memref<32x128xbf16, #tpu.memory_space<vmem>>, %arg4: memref<32x128xbf16, #tpu.memory_space<vmem>>, %arg5: memref<1x128xf32, #tpu.memory_space<vmem>>, %arg6: memref<1x128xf32, #tpu.memory_space<vmem>>, %arg7: memref<32x128xbf16, #tpu.memory_space<vmem>>, %arg8: memref<32x128xbf16, #tpu.memory_space<vmem>>, %arg9: memref<8x2x32xbf16, #tpu.memory_space<vmem>>, %arg10: memref<8x2x32xbf16, #tpu.memory_space<vmem>>, %arg11: memref<8x2x128xf32, #tpu.memory_space<vmem>>, %arg12: memref<8x2x128xf32, #tpu.memory_space<vmem>>, %arg13: memref<2x32xf32, #tpu.memory_space<vmem>>, %arg14: memref<2x32xf32, #tpu.memory_space<vmem>>, %arg15: memref<2x32xf32, #tpu.memory_space<vmem>>, %arg16: memref<2x32xf32, #tpu.memory_space<vmem>>) attributes {dimension_semantics = [#tpu.dimension_semantics<arbitrary>], iteration_bounds = array<i64: 1>, scalar_prefetch = 0 : i64, scratch_operands = 6 : i64, tpu.core_type = #tpu.core_type<tc>, window_params = [{transform_indices = @transform_0, window_bounds = array<i64: 8, 2, 32>}, {transform_indices = @transform_1, window_bounds = array<i64: 8, 2, 32>}, {pipeline_mode = #tpu.pipeline_mode<synchronous>, transform_indices = @transform_2, window_bounds = array<i64: 32, 128>}, {pipeline_mode = #tpu.pipeline_mode<synchronous>, transform_indices = @transform_3, window_bounds = array<i64: 32, 128>}, {pipeline_mode = #tpu.pipeline_mode<synchronous>, transform_indices = @transform_4, window_bounds = array<i64: 1, 128>}, {pipeline_mode = #tpu.pipeline_mode<synchronous>, transform_indices = @transform_5, window_bounds = array<i64: 1, 128>}, {pipeline_mode = #tpu.pipeline_mode<synchronous>, transform_indices = @transform_6, window_bounds = array<i64: 32, 128>}, {pipeline_mode = #tpu.pipeline_mode<synchronous>, transform_indices = @transform_7, window_bounds = array<i64: 32, 128>}, {transform_indices = @transform_8, window_bounds = array<i64: 8, 2, 32>}, {transform_indices = @transform_9, window_bounds = array<i64: 8, 2, 32>}]} {
    %c0_i32 = arith.constant 0 : i32
    %0 = arith.cmpi eq, %arg0, %c0_i32 : i32
    %1 = arith.extui %0 : i1 to i32
    %c0_i32_0 = arith.constant 0 : i32
    %2 = arith.cmpi ne, %1, %c0_i32_0 : i32
    scf.if %2 {
      %cst_178 = arith.constant 0.000000e+00 : f32
      %615 = vector.broadcast %cst_178 : f32 to vector<2x32xf32>
      %c0_179 = arith.constant 0 : index
      %c0_180 = arith.constant 0 : index
      %616 = vector.load %arg13[%c0_179, %c0_180] : memref<2x32xf32, #tpu.memory_space<vmem>>, vector<2x32xf32>
      tpu.vector_store %arg13[%c0_179, %c0_180], %615 {strides = array<i32>} : memref<2x32xf32, #tpu.memory_space<vmem>>, vector<2x32xf32>,
      %cst_181 = arith.constant 0.000000e+00 : f32
      %617 = vector.broadcast %cst_181 : f32 to vector<2x32xf32>
      %c0_182 = arith.constant 0 : index
      %c0_183 = arith.constant 0 : index
      %618 = vector.load %arg14[%c0_182, %c0_183] : memref<2x32xf32, #tpu.memory_space<vmem>>, vector<2x32xf32>
      tpu.vector_store %arg14[%c0_182, %c0_183], %617 {strides = array<i32>} : memref<2x32xf32, #tpu.memory_space<vmem>>, vector<2x32xf32>,
      %cst_184 = arith.constant 0.000000e+00 : f32
      %619 = vector.broadcast %cst_184 : f32 to vector<2x32xf32>
      %c0_185 = arith.constant 0 : index
      %c0_186 = arith.constant 0 : index
      %620 = vector.load %arg15[%c0_185, %c0_186] : memref<2x32xf32, #tpu.memory_space<vmem>>, vector<2x32xf32>
      tpu.vector_store %arg15[%c0_185, %c0_186], %619 {strides = array<i32>} : memref<2x32xf32, #tpu.memory_space<vmem>>, vector<2x32xf32>,
      %cst_187 = arith.constant 0.000000e+00 : f32
      %621 = vector.broadcast %cst_187 : f32 to vector<2x32xf32>
      %c0_188 = arith.constant 0 : index
      %c0_189 = arith.constant 0 : index
      %622 = vector.load %arg16[%c0_188, %c0_189] : memref<2x32xf32, #tpu.memory_space<vmem>>, vector<2x32xf32>
      tpu.vector_store %arg16[%c0_188, %c0_189], %621 {strides = array<i32>} : memref<2x32xf32, #tpu.memory_space<vmem>>, vector<2x32xf32>,
    } else {
    }
    %c0 = arith.constant 0 : index
    %c0_1 = arith.constant 0 : index
    %c0_2 = arith.constant 0 : index
    %3 = vector.load %arg1[%c0, %c0_1, %c0_2] : memref<8x2x32xbf16, #tpu.memory_space<vmem>>, vector<8x2x32xbf16>
    %4 = vector.shape_cast %3 : vector<8x2x32xbf16> to vector<16x32xbf16>
    %c0_3 = arith.constant 0 : index
    %c0_4 = arith.constant 0 : index
    %c0_5 = arith.constant 0 : index
    %5 = vector.load %arg2[%c0_3, %c0_4, %c0_5] : memref<8x2x32xbf16, #tpu.memory_space<vmem>>, vector<8x2x32xbf16>
    %6 = vector.shape_cast %5 : vector<8x2x32xbf16> to vector<16x32xbf16>
    %c0_6 = arith.constant 0 : index
    %c0_7 = arith.constant 0 : index
    %7 = vector.load %arg3[%c0_6, %c0_7] : memref<32x128xbf16, #tpu.memory_space<vmem>>, vector<32x128xbf16>
    %cst = arith.constant dense<0.000000e+00> : vector<16x128xf32>
    %8 = tpu.matmul %4, %7, %cst {dimension_numbers = #tpu.dot_dimension_numbers<[1], [0], [0], [1], [0, 0, 1, 1], [], []>} : vector<16x32xbf16>, vector<32x128xbf16>, vector<16x128xf32> -> vector<16x128xf32>
    %c0_8 = arith.constant 0 : index
    %c0_9 = arith.constant 0 : index
    %9 = vector.load %arg5[%c0_8, %c0_9] : memref<1x128xf32, #tpu.memory_space<vmem>>, vector<1x128xf32>
    %10 = vector.broadcast %9 : vector<1x128xf32> to vector<16x128xf32>
    %11 = arith.addf %8, %10 : vector<16x128xf32>
    %12 = vector.shape_cast %11 : vector<16x128xf32> to vector<8x2x128xf32>
    %c0_10 = arith.constant 0 : index
    %c0_11 = arith.constant 0 : index
    %c0_12 = arith.constant 0 : index
    %13 = vector.load %arg11[%c0_10, %c0_11, %c0_12] : memref<8x2x128xf32, #tpu.memory_space<vmem>>, vector<8x2x128xf32>
    tpu.vector_store %arg11[%c0_10, %c0_11, %c0_12], %12 {strides = array<i32>} : memref<8x2x128xf32, #tpu.memory_space<vmem>>, vector<8x2x128xf32>,
    %c0_13 = arith.constant 0 : index
    %c0_14 = arith.constant 0 : index
    %14 = vector.load %arg4[%c0_13, %c0_14] : memref<32x128xbf16, #tpu.memory_space<vmem>>, vector<32x128xbf16>
    %cst_15 = arith.constant dense<0.000000e+00> : vector<16x128xf32>
    %15 = tpu.matmul %6, %14, %cst_15 {dimension_numbers = #tpu.dot_dimension_numbers<[1], [0], [0], [1], [0, 0, 1, 1], [], []>} : vector<16x32xbf16>, vector<32x128xbf16>, vector<16x128xf32> -> vector<16x128xf32>
    %c0_16 = arith.constant 0 : index
    %c0_17 = arith.constant 0 : index
    %16 = vector.load %arg6[%c0_16, %c0_17] : memref<1x128xf32, #tpu.memory_space<vmem>>, vector<1x128xf32>
    %17 = vector.broadcast %16 : vector<1x128xf32> to vector<16x128xf32>
    %18 = arith.addf %15, %17 : vector<16x128xf32>
    %19 = vector.shape_cast %18 : vector<16x128xf32> to vector<8x2x128xf32>
    %c0_18 = arith.constant 0 : index
    %c0_19 = arith.constant 0 : index
    %c0_20 = arith.constant 0 : index
    %20 = vector.load %arg12[%c0_18, %c0_19, %c0_20] : memref<8x2x128xf32, #tpu.memory_space<vmem>>, vector<8x2x128xf32>
    tpu.vector_store %arg12[%c0_18, %c0_19, %c0_20], %19 {strides = array<i32>} : memref<8x2x128xf32, #tpu.memory_space<vmem>>, vector<8x2x128xf32>,
    %c0_21 = arith.constant 0 : index
    %c0_22 = arith.constant 0 : index
    %21 = vector.load %arg7[%c0_21, %c0_22] : memref<32x128xbf16, #tpu.memory_space<vmem>>, vector<32x128xbf16>
    %c0_23 = arith.constant 0 : index
    %c0_24 = arith.constant 0 : index
    %22 = vector.load %arg8[%c0_23, %c0_24] : memref<32x128xbf16, #tpu.memory_space<vmem>>, vector<32x128xbf16>
    %c0_25 = arith.constant 0 : index
    %c0_26 = arith.constant 0 : index
    %23 = vector.load %arg13[%c0_25, %c0_26] : memref<2x32xf32, #tpu.memory_space<vmem>>, vector<2x32xf32>
    %c0_27 = arith.constant 0 : index
    %c0_28 = arith.constant 0 : index
    %24 = vector.load %arg14[%c0_27, %c0_28] : memref<2x32xf32, #tpu.memory_space<vmem>>, vector<2x32xf32>
    %c0_29 = arith.constant 0 : index
    %c0_30 = arith.constant 0 : index
    %25 = vector.load %arg15[%c0_29, %c0_30] : memref<2x32xf32, #tpu.memory_space<vmem>>, vector<2x32xf32>
    %c0_31 = arith.constant 0 : index
    %c0_32 = arith.constant 0 : index
    %26 = vector.load %arg16[%c0_31, %c0_32] : memref<2x32xf32, #tpu.memory_space<vmem>>, vector<2x32xf32>
    %c0_i32_33 = arith.constant 0 : i32
    %c7_i32 = arith.constant 7 : i32
    %27 = arith.subi %c7_i32, %c0_i32_33 : i32
    %28 = arith.index_cast %c0_i32_33 : i32 to index
    %c0_34 = arith.constant 0 : index
    %c0_35 = arith.constant 0 : index
    %29 = vector.load %arg11[%28, %c0_34, %c0_35] : memref<8x2x128xf32, #tpu.memory_space<vmem>>, vector<1x2x128xf32>
    %30 = vector.shape_cast %29 : vector<1x2x128xf32> to vector<2x128xf32>
    %31 = arith.truncf %23 : vector<2x32xf32> to vector<2x32xbf16>
    %cst_36 = arith.constant dense<0.000000e+00> : vector<2x128xf32>
    %32 = tpu.matmul %31, %21, %cst_36 {dimension_numbers = #tpu.dot_dimension_numbers<[1], [0], [0], [1], [0, 0, 1, 1], [], []>} : vector<2x32xbf16>, vector<32x128xbf16>, vector<2x128xf32> -> vector<2x128xf32>
    %33 = arith.addf %30, %32 : vector<2x128xf32>
    %34 = arith.index_cast %27 : i32 to index
    %c0_37 = arith.constant 0 : index
    %c0_38 = arith.constant 0 : index
    %35 = vector.load %arg12[%34, %c0_37, %c0_38] : memref<8x2x128xf32, #tpu.memory_space<vmem>>, vector<1x2x128xf32>
    %36 = vector.shape_cast %35 : vector<1x2x128xf32> to vector<2x128xf32>
    %37 = arith.truncf %25 : vector<2x32xf32> to vector<2x32xbf16>
    %cst_39 = arith.constant dense<0.000000e+00> : vector<2x128xf32>
    %38 = tpu.matmul %37, %22, %cst_39 {dimension_numbers = #tpu.dot_dimension_numbers<[1], [0], [0], [1], [0, 0, 1, 1], [], []>} : vector<2x32xbf16>, vector<32x128xbf16>, vector<2x128xf32> -> vector<2x128xf32>
    %39 = arith.addf %36, %38 : vector<2x128xf32>
    %40 = vector.extract_strided_slice %33 {offsets = [0, 0], sizes = [2, 32], strides = [1, 1]} : vector<2x128xf32> to vector<2x32xf32>
    %41 = arith.negf %40 : vector<2x32xf32>
    %42 = math.exp %41 : vector<2x32xf32>
    %cst_40 = arith.constant 1.000000e+00 : f32
    %43 = vector.broadcast %cst_40 : f32 to vector<2x32xf32>
    %44 = arith.addf %43, %42 : vector<2x32xf32>
    %45 = arith.divf %43, %44 : vector<2x32xf32>
    %46 = vector.extract_strided_slice %33 {offsets = [0, 32], sizes = [2, 32], strides = [1, 1]} : vector<2x128xf32> to vector<2x32xf32>
    %47 = arith.negf %46 : vector<2x32xf32>
    %48 = math.exp %47 : vector<2x32xf32>
    %cst_41 = arith.constant 1.000000e+00 : f32
    %49 = vector.broadcast %cst_41 : f32 to vector<2x32xf32>
    %50 = arith.addf %49, %48 : vector<2x32xf32>
    %51 = arith.divf %49, %50 : vector<2x32xf32>
    %52 = vector.extract_strided_slice %33 {offsets = [0, 64], sizes = [2, 32], strides = [1, 1]} : vector<2x128xf32> to vector<2x32xf32>
    %53 = math.tanh %52 : vector<2x32xf32>
    %54 = vector.extract_strided_slice %33 {offsets = [0, 96], sizes = [2, 32], strides = [1, 1]} : vector<2x128xf32> to vector<2x32xf32>
    %55 = arith.negf %54 : vector<2x32xf32>
    %56 = math.exp %55 : vector<2x32xf32>
    %cst_42 = arith.constant 1.000000e+00 : f32
    %57 = vector.broadcast %cst_42 : f32 to vector<2x32xf32>
    %58 = arith.addf %57, %56 : vector<2x32xf32>
    %59 = arith.divf %57, %58 : vector<2x32xf32>
    %60 = arith.mulf %51, %24 : vector<2x32xf32>
    %61 = arith.mulf %45, %53 : vector<2x32xf32>
    %62 = arith.addf %60, %61 : vector<2x32xf32>
    %63 = math.tanh %62 : vector<2x32xf32>
    %64 = arith.mulf %59, %63 : vector<2x32xf32>
    %65 = vector.extract_strided_slice %39 {offsets = [0, 0], sizes = [2, 32], strides = [1, 1]} : vector<2x128xf32> to vector<2x32xf32>
    %66 = arith.negf %65 : vector<2x32xf32>
    %67 = math.exp %66 : vector<2x32xf32>
    %cst_43 = arith.constant 1.000000e+00 : f32
    %68 = vector.broadcast %cst_43 : f32 to vector<2x32xf32>
    %69 = arith.addf %68, %67 : vector<2x32xf32>
    %70 = arith.divf %68, %69 : vector<2x32xf32>
    %71 = vector.extract_strided_slice %39 {offsets = [0, 32], sizes = [2, 32], strides = [1, 1]} : vector<2x128xf32> to vector<2x32xf32>
    %72 = arith.negf %71 : vector<2x32xf32>
    %73 = math.exp %72 : vector<2x32xf32>
    %cst_44 = arith.constant 1.000000e+00 : f32
    %74 = vector.broadcast %cst_44 : f32 to vector<2x32xf32>
    %75 = arith.addf %74, %73 : vector<2x32xf32>
    %76 = arith.divf %74, %75 : vector<2x32xf32>
    %77 = vector.extract_strided_slice %39 {offsets = [0, 64], sizes = [2, 32], strides = [1, 1]} : vector<2x128xf32> to vector<2x32xf32>
    %78 = math.tanh %77 : vector<2x32xf32>
    %79 = vector.extract_strided_slice %39 {offsets = [0, 96], sizes = [2, 32], strides = [1, 1]} : vector<2x128xf32> to vector<2x32xf32>
    %80 = arith.negf %79 : vector<2x32xf32>
    %81 = math.exp %80 : vector<2x32xf32>
    %cst_45 = arith.constant 1.000000e+00 : f32
    %82 = vector.broadcast %cst_45 : f32 to vector<2x32xf32>
    %83 = arith.addf %82, %81 : vector<2x32xf32>
    %84 = arith.divf %82, %83 : vector<2x32xf32>
    %85 = arith.mulf %76, %26 : vector<2x32xf32>
    %86 = arith.mulf %70, %78 : vector<2x32xf32>
    %87 = arith.addf %85, %86 : vector<2x32xf32>
    %88 = math.tanh %87 : vector<2x32xf32>
    %89 = arith.mulf %84, %88 : vector<2x32xf32>
    %90 = arith.truncf %64 : vector<2x32xf32> to vector<2x32xbf16>
    %91 = arith.index_cast %c0_i32_33 : i32 to index
    %c0_46 = arith.constant 0 : index
    %c0_47 = arith.constant 0 : index
    %92 = vector.load %arg9[%91, %c0_46, %c0_47] : memref<8x2x32xbf16, #tpu.memory_space<vmem>>, vector<1x2x32xbf16>
    %93 = vector.shape_cast %92 : vector<1x2x32xbf16> to vector<2x32xbf16>
    %94 = vector.shape_cast %90 : vector<2x32xbf16> to vector<1x2x32xbf16>
    tpu.vector_store %arg9[%91, %c0_46, %c0_47], %94 {strides = array<i32>} : memref<8x2x32xbf16, #tpu.memory_space<vmem>>, vector<1x2x32xbf16>,
    %95 = arith.truncf %89 : vector<2x32xf32> to vector<2x32xbf16>
    %96 = arith.index_cast %27 : i32 to index
    %c0_48 = arith.constant 0 : index
    %c0_49 = arith.constant 0 : index
    %97 = vector.load %arg10[%96, %c0_48, %c0_49] : memref<8x2x32xbf16, #tpu.memory_space<vmem>>, vector<1x2x32xbf16>
    %98 = vector.shape_cast %97 : vector<1x2x32xbf16> to vector<2x32xbf16>
    %99 = vector.shape_cast %95 : vector<2x32xbf16> to vector<1x2x32xbf16>
    tpu.vector_store %arg10[%96, %c0_48, %c0_49], %99 {strides = array<i32>} : memref<8x2x32xbf16, #tpu.memory_space<vmem>>, vector<1x2x32xbf16>,
    %c1_i32 = arith.constant 1 : i32
    %c7_i32_50 = arith.constant 7 : i32
    %100 = arith.subi %c7_i32_50, %c1_i32 : i32
    %101 = arith.index_cast %c1_i32 : i32 to index
    %c0_51 = arith.constant 0 : index
    %c0_52 = arith.constant 0 : index
    %102 = vector.load %arg11[%101, %c0_51, %c0_52] : memref<8x2x128xf32, #tpu.memory_space<vmem>>, vector<1x2x128xf32>
    %103 = vector.shape_cast %102 : vector<1x2x128xf32> to vector<2x128xf32>
    %104 = arith.truncf %64 : vector<2x32xf32> to vector<2x32xbf16>
    %cst_53 = arith.constant dense<0.000000e+00> : vector<2x128xf32>
    %105 = tpu.matmul %104, %21, %cst_53 {dimension_numbers = #tpu.dot_dimension_numbers<[1], [0], [0], [1], [0, 0, 1, 1], [], []>} : vector<2x32xbf16>, vector<32x128xbf16>, vector<2x128xf32> -> vector<2x128xf32>
    %106 = arith.addf %103, %105 : vector<2x128xf32>
    %107 = arith.index_cast %100 : i32 to index
    %c0_54 = arith.constant 0 : index
    %c0_55 = arith.constant 0 : index
    %108 = vector.load %arg12[%107, %c0_54, %c0_55] : memref<8x2x128xf32, #tpu.memory_space<vmem>>, vector<1x2x128xf32>
    %109 = vector.shape_cast %108 : vector<1x2x128xf32> to vector<2x128xf32>
    %110 = arith.truncf %89 : vector<2x32xf32> to vector<2x32xbf16>
    %cst_56 = arith.constant dense<0.000000e+00> : vector<2x128xf32>
    %111 = tpu.matmul %110, %22, %cst_56 {dimension_numbers = #tpu.dot_dimension_numbers<[1], [0], [0], [1], [0, 0, 1, 1], [], []>} : vector<2x32xbf16>, vector<32x128xbf16>, vector<2x128xf32> -> vector<2x128xf32>
    %112 = arith.addf %109, %111 : vector<2x128xf32>
    %113 = vector.extract_strided_slice %106 {offsets = [0, 0], sizes = [2, 32], strides = [1, 1]} : vector<2x128xf32> to vector<2x32xf32>
    %114 = arith.negf %113 : vector<2x32xf32>
    %115 = math.exp %114 : vector<2x32xf32>
    %cst_57 = arith.constant 1.000000e+00 : f32
    %116 = vector.broadcast %cst_57 : f32 to vector<2x32xf32>
    %117 = arith.addf %116, %115 : vector<2x32xf32>
    %118 = arith.divf %116, %117 : vector<2x32xf32>
    %119 = vector.extract_strided_slice %106 {offsets = [0, 32], sizes = [2, 32], strides = [1, 1]} : vector<2x128xf32> to vector<2x32xf32>
    %120 = arith.negf %119 : vector<2x32xf32>
    %121 = math.exp %120 : vector<2x32xf32>
    %cst_58 = arith.constant 1.000000e+00 : f32
    %122 = vector.broadcast %cst_58 : f32 to vector<2x32xf32>
    %123 = arith.addf %122, %121 : vector<2x32xf32>
    %124 = arith.divf %122, %123 : vector<2x32xf32>
    %125 = vector.extract_strided_slice %106 {offsets = [0, 64], sizes = [2, 32], strides = [1, 1]} : vector<2x128xf32> to vector<2x32xf32>
    %126 = math.tanh %125 : vector<2x32xf32>
    %127 = vector.extract_strided_slice %106 {offsets = [0, 96], sizes = [2, 32], strides = [1, 1]} : vector<2x128xf32> to vector<2x32xf32>
    %128 = arith.negf %127 : vector<2x32xf32>
    %129 = math.exp %128 : vector<2x32xf32>
    %cst_59 = arith.constant 1.000000e+00 : f32
    %130 = vector.broadcast %cst_59 : f32 to vector<2x32xf32>
    %131 = arith.addf %130, %129 : vector<2x32xf32>
    %132 = arith.divf %130, %131 : vector<2x32xf32>
    %133 = arith.mulf %124, %62 : vector<2x32xf32>
    %134 = arith.mulf %118, %126 : vector<2x32xf32>
    %135 = arith.addf %133, %134 : vector<2x32xf32>
    %136 = math.tanh %135 : vector<2x32xf32>
    %137 = arith.mulf %132, %136 : vector<2x32xf32>
    %138 = vector.extract_strided_slice %112 {offsets = [0, 0], sizes = [2, 32], strides = [1, 1]} : vector<2x128xf32> to vector<2x32xf32>
    %139 = arith.negf %138 : vector<2x32xf32>
    %140 = math.exp %139 : vector<2x32xf32>
    %cst_60 = arith.constant 1.000000e+00 : f32
    %141 = vector.broadcast %cst_60 : f32 to vector<2x32xf32>
    %142 = arith.addf %141, %140 : vector<2x32xf32>
    %143 = arith.divf %141, %142 : vector<2x32xf32>
    %144 = vector.extract_strided_slice %112 {offsets = [0, 32], sizes = [2, 32], strides = [1, 1]} : vector<2x128xf32> to vector<2x32xf32>
    %145 = arith.negf %144 : vector<2x32xf32>
    %146 = math.exp %145 : vector<2x32xf32>
    %cst_61 = arith.constant 1.000000e+00 : f32
    %147 = vector.broadcast %cst_61 : f32 to vector<2x32xf32>
    %148 = arith.addf %147, %146 : vector<2x32xf32>
    %149 = arith.divf %147, %148 : vector<2x32xf32>
    %150 = vector.extract_strided_slice %112 {offsets = [0, 64], sizes = [2, 32], strides = [1, 1]} : vector<2x128xf32> to vector<2x32xf32>
    %151 = math.tanh %150 : vector<2x32xf32>
    %152 = vector.extract_strided_slice %112 {offsets = [0, 96], sizes = [2, 32], strides = [1, 1]} : vector<2x128xf32> to vector<2x32xf32>
    %153 = arith.negf %152 : vector<2x32xf32>
    %154 = math.exp %153 : vector<2x32xf32>
    %cst_62 = arith.constant 1.000000e+00 : f32
    %155 = vector.broadcast %cst_62 : f32 to vector<2x32xf32>
    %156 = arith.addf %155, %154 : vector<2x32xf32>
    %157 = arith.divf %155, %156 : vector<2x32xf32>
    %158 = arith.mulf %149, %87 : vector<2x32xf32>
    %159 = arith.mulf %143, %151 : vector<2x32xf32>
    %160 = arith.addf %158, %159 : vector<2x32xf32>
    %161 = math.tanh %160 : vector<2x32xf32>
    %162 = arith.mulf %157, %161 : vector<2x32xf32>
    %163 = arith.truncf %137 : vector<2x32xf32> to vector<2x32xbf16>
    %164 = arith.index_cast %c1_i32 : i32 to index
    %c0_63 = arith.constant 0 : index
    %c0_64 = arith.constant 0 : index
    %165 = vector.load %arg9[%164, %c0_63, %c0_64] : memref<8x2x32xbf16, #tpu.memory_space<vmem>>, vector<1x2x32xbf16>
    %166 = vector.shape_cast %165 : vector<1x2x32xbf16> to vector<2x32xbf16>
    %167 = vector.shape_cast %163 : vector<2x32xbf16> to vector<1x2x32xbf16>
    tpu.vector_store %arg9[%164, %c0_63, %c0_64], %167 {strides = array<i32>} : memref<8x2x32xbf16, #tpu.memory_space<vmem>>, vector<1x2x32xbf16>,
    %168 = arith.truncf %162 : vector<2x32xf32> to vector<2x32xbf16>
    %169 = arith.index_cast %100 : i32 to index
    %c0_65 = arith.constant 0 : index
    %c0_66 = arith.constant 0 : index
    %170 = vector.load %arg10[%169, %c0_65, %c0_66] : memref<8x2x32xbf16, #tpu.memory_space<vmem>>, vector<1x2x32xbf16>
    %171 = vector.shape_cast %170 : vector<1x2x32xbf16> to vector<2x32xbf16>
    %172 = vector.shape_cast %168 : vector<2x32xbf16> to vector<1x2x32xbf16>
    tpu.vector_store %arg10[%169, %c0_65, %c0_66], %172 {strides = array<i32>} : memref<8x2x32xbf16, #tpu.memory_space<vmem>>, vector<1x2x32xbf16>,
    %c2_i32 = arith.constant 2 : i32
    %c7_i32_67 = arith.constant 7 : i32
    %173 = arith.subi %c7_i32_67, %c2_i32 : i32
    %174 = arith.index_cast %c2_i32 : i32 to index
    %c0_68 = arith.constant 0 : index
    %c0_69 = arith.constant 0 : index
    %175 = vector.load %arg11[%174, %c0_68, %c0_69] : memref<8x2x128xf32, #tpu.memory_space<vmem>>, vector<1x2x128xf32>
    %176 = vector.shape_cast %175 : vector<1x2x128xf32> to vector<2x128xf32>
    %177 = arith.truncf %137 : vector<2x32xf32> to vector<2x32xbf16>
    %cst_70 = arith.constant dense<0.000000e+00> : vector<2x128xf32>
    %178 = tpu.matmul %177, %21, %cst_70 {dimension_numbers = #tpu.dot_dimension_numbers<[1], [0], [0], [1], [0, 0, 1, 1], [], []>} : vector<2x32xbf16>, vector<32x128xbf16>, vector<2x128xf32> -> vector<2x128xf32>
    %179 = arith.addf %176, %178 : vector<2x128xf32>
    %180 = arith.index_cast %173 : i32 to index
    %c0_71 = arith.constant 0 : index
    %c0_72 = arith.constant 0 : index
    %181 = vector.load %arg12[%180, %c0_71, %c0_72] : memref<8x2x128xf32, #tpu.memory_space<vmem>>, vector<1x2x128xf32>
    %182 = vector.shape_cast %181 : vector<1x2x128xf32> to vector<2x128xf32>
    %183 = arith.truncf %162 : vector<2x32xf32> to vector<2x32xbf16>
    %cst_73 = arith.constant dense<0.000000e+00> : vector<2x128xf32>
    %184 = tpu.matmul %183, %22, %cst_73 {dimension_numbers = #tpu.dot_dimension_numbers<[1], [0], [0], [1], [0, 0, 1, 1], [], []>} : vector<2x32xbf16>, vector<32x128xbf16>, vector<2x128xf32> -> vector<2x128xf32>
    %185 = arith.addf %182, %184 : vector<2x128xf32>
    %186 = vector.extract_strided_slice %179 {offsets = [0, 0], sizes = [2, 32], strides = [1, 1]} : vector<2x128xf32> to vector<2x32xf32>
    %187 = arith.negf %186 : vector<2x32xf32>
    %188 = math.exp %187 : vector<2x32xf32>
    %cst_74 = arith.constant 1.000000e+00 : f32
    %189 = vector.broadcast %cst_74 : f32 to vector<2x32xf32>
    %190 = arith.addf %189, %188 : vector<2x32xf32>
    %191 = arith.divf %189, %190 : vector<2x32xf32>
    %192 = vector.extract_strided_slice %179 {offsets = [0, 32], sizes = [2, 32], strides = [1, 1]} : vector<2x128xf32> to vector<2x32xf32>
    %193 = arith.negf %192 : vector<2x32xf32>
    %194 = math.exp %193 : vector<2x32xf32>
    %cst_75 = arith.constant 1.000000e+00 : f32
    %195 = vector.broadcast %cst_75 : f32 to vector<2x32xf32>
    %196 = arith.addf %195, %194 : vector<2x32xf32>
    %197 = arith.divf %195, %196 : vector<2x32xf32>
    %198 = vector.extract_strided_slice %179 {offsets = [0, 64], sizes = [2, 32], strides = [1, 1]} : vector<2x128xf32> to vector<2x32xf32>
    %199 = math.tanh %198 : vector<2x32xf32>
    %200 = vector.extract_strided_slice %179 {offsets = [0, 96], sizes = [2, 32], strides = [1, 1]} : vector<2x128xf32> to vector<2x32xf32>
    %201 = arith.negf %200 : vector<2x32xf32>
    %202 = math.exp %201 : vector<2x32xf32>
    %cst_76 = arith.constant 1.000000e+00 : f32
    %203 = vector.broadcast %cst_76 : f32 to vector<2x32xf32>
    %204 = arith.addf %203, %202 : vector<2x32xf32>
    %205 = arith.divf %203, %204 : vector<2x32xf32>
    %206 = arith.mulf %197, %135 : vector<2x32xf32>
    %207 = arith.mulf %191, %199 : vector<2x32xf32>
    %208 = arith.addf %206, %207 : vector<2x32xf32>
    %209 = math.tanh %208 : vector<2x32xf32>
    %210 = arith.mulf %205, %209 : vector<2x32xf32>
    %211 = vector.extract_strided_slice %185 {offsets = [0, 0], sizes = [2, 32], strides = [1, 1]} : vector<2x128xf32> to vector<2x32xf32>
    %212 = arith.negf %211 : vector<2x32xf32>
    %213 = math.exp %212 : vector<2x32xf32>
    %cst_77 = arith.constant 1.000000e+00 : f32
    %214 = vector.broadcast %cst_77 : f32 to vector<2x32xf32>
    %215 = arith.addf %214, %213 : vector<2x32xf32>
    %216 = arith.divf %214, %215 : vector<2x32xf32>
    %217 = vector.extract_strided_slice %185 {offsets = [0, 32], sizes = [2, 32], strides = [1, 1]} : vector<2x128xf32> to vector<2x32xf32>
    %218 = arith.negf %217 : vector<2x32xf32>
    %219 = math.exp %218 : vector<2x32xf32>
    %cst_78 = arith.constant 1.000000e+00 : f32
    %220 = vector.broadcast %cst_78 : f32 to vector<2x32xf32>
    %221 = arith.addf %220, %219 : vector<2x32xf32>
    %222 = arith.divf %220, %221 : vector<2x32xf32>
    %223 = vector.extract_strided_slice %185 {offsets = [0, 64], sizes = [2, 32], strides = [1, 1]} : vector<2x128xf32> to vector<2x32xf32>
    %224 = math.tanh %223 : vector<2x32xf32>
    %225 = vector.extract_strided_slice %185 {offsets = [0, 96], sizes = [2, 32], strides = [1, 1]} : vector<2x128xf32> to vector<2x32xf32>
    %226 = arith.negf %225 : vector<2x32xf32>
    %227 = math.exp %226 : vector<2x32xf32>
    %cst_79 = arith.constant 1.000000e+00 : f32
    %228 = vector.broadcast %cst_79 : f32 to vector<2x32xf32>
    %229 = arith.addf %228, %227 : vector<2x32xf32>
    %230 = arith.divf %228, %229 : vector<2x32xf32>
    %231 = arith.mulf %222, %160 : vector<2x32xf32>
    %232 = arith.mulf %216, %224 : vector<2x32xf32>
    %233 = arith.addf %231, %232 : vector<2x32xf32>
    %234 = math.tanh %233 : vector<2x32xf32>
    %235 = arith.mulf %230, %234 : vector<2x32xf32>
    %236 = arith.truncf %210 : vector<2x32xf32> to vector<2x32xbf16>
    %237 = arith.index_cast %c2_i32 : i32 to index
    %c0_80 = arith.constant 0 : index
    %c0_81 = arith.constant 0 : index
    %238 = vector.load %arg9[%237, %c0_80, %c0_81] : memref<8x2x32xbf16, #tpu.memory_space<vmem>>, vector<1x2x32xbf16>
    %239 = vector.shape_cast %238 : vector<1x2x32xbf16> to vector<2x32xbf16>
    %240 = vector.shape_cast %236 : vector<2x32xbf16> to vector<1x2x32xbf16>
    tpu.vector_store %arg9[%237, %c0_80, %c0_81], %240 {strides = array<i32>} : memref<8x2x32xbf16, #tpu.memory_space<vmem>>, vector<1x2x32xbf16>,
    %241 = arith.truncf %235 : vector<2x32xf32> to vector<2x32xbf16>
    %242 = arith.index_cast %173 : i32 to index
    %c0_82 = arith.constant 0 : index
    %c0_83 = arith.constant 0 : index
    %243 = vector.load %arg10[%242, %c0_82, %c0_83] : memref<8x2x32xbf16, #tpu.memory_space<vmem>>, vector<1x2x32xbf16>
    %244 = vector.shape_cast %243 : vector<1x2x32xbf16> to vector<2x32xbf16>
    %245 = vector.shape_cast %241 : vector<2x32xbf16> to vector<1x2x32xbf16>
    tpu.vector_store %arg10[%242, %c0_82, %c0_83], %245 {strides = array<i32>} : memref<8x2x32xbf16, #tpu.memory_space<vmem>>, vector<1x2x32xbf16>,
    %c3_i32 = arith.constant 3 : i32
    %c7_i32_84 = arith.constant 7 : i32
    %246 = arith.subi %c7_i32_84, %c3_i32 : i32
    %247 = arith.index_cast %c3_i32 : i32 to index
    %c0_85 = arith.constant 0 : index
    %c0_86 = arith.constant 0 : index
    %248 = vector.load %arg11[%247, %c0_85, %c0_86] : memref<8x2x128xf32, #tpu.memory_space<vmem>>, vector<1x2x128xf32>
    %249 = vector.shape_cast %248 : vector<1x2x128xf32> to vector<2x128xf32>
    %250 = arith.truncf %210 : vector<2x32xf32> to vector<2x32xbf16>
    %cst_87 = arith.constant dense<0.000000e+00> : vector<2x128xf32>
    %251 = tpu.matmul %250, %21, %cst_87 {dimension_numbers = #tpu.dot_dimension_numbers<[1], [0], [0], [1], [0, 0, 1, 1], [], []>} : vector<2x32xbf16>, vector<32x128xbf16>, vector<2x128xf32> -> vector<2x128xf32>
    %252 = arith.addf %249, %251 : vector<2x128xf32>
    %253 = arith.index_cast %246 : i32 to index
    %c0_88 = arith.constant 0 : index
    %c0_89 = arith.constant 0 : index
    %254 = vector.load %arg12[%253, %c0_88, %c0_89] : memref<8x2x128xf32, #tpu.memory_space<vmem>>, vector<1x2x128xf32>
    %255 = vector.shape_cast %254 : vector<1x2x128xf32> to vector<2x128xf32>
    %256 = arith.truncf %235 : vector<2x32xf32> to vector<2x32xbf16>
    %cst_90 = arith.constant dense<0.000000e+00> : vector<2x128xf32>
    %257 = tpu.matmul %256, %22, %cst_90 {dimension_numbers = #tpu.dot_dimension_numbers<[1], [0], [0], [1], [0, 0, 1, 1], [], []>} : vector<2x32xbf16>, vector<32x128xbf16>, vector<2x128xf32> -> vector<2x128xf32>
    %258 = arith.addf %255, %257 : vector<2x128xf32>
    %259 = vector.extract_strided_slice %252 {offsets = [0, 0], sizes = [2, 32], strides = [1, 1]} : vector<2x128xf32> to vector<2x32xf32>
    %260 = arith.negf %259 : vector<2x32xf32>
    %261 = math.exp %260 : vector<2x32xf32>
    %cst_91 = arith.constant 1.000000e+00 : f32
    %262 = vector.broadcast %cst_91 : f32 to vector<2x32xf32>
    %263 = arith.addf %262, %261 : vector<2x32xf32>
    %264 = arith.divf %262, %263 : vector<2x32xf32>
    %265 = vector.extract_strided_slice %252 {offsets = [0, 32], sizes = [2, 32], strides = [1, 1]} : vector<2x128xf32> to vector<2x32xf32>
    %266 = arith.negf %265 : vector<2x32xf32>
    %267 = math.exp %266 : vector<2x32xf32>
    %cst_92 = arith.constant 1.000000e+00 : f32
    %268 = vector.broadcast %cst_92 : f32 to vector<2x32xf32>
    %269 = arith.addf %268, %267 : vector<2x32xf32>
    %270 = arith.divf %268, %269 : vector<2x32xf32>
    %271 = vector.extract_strided_slice %252 {offsets = [0, 64], sizes = [2, 32], strides = [1, 1]} : vector<2x128xf32> to vector<2x32xf32>
    %272 = math.tanh %271 : vector<2x32xf32>
    %273 = vector.extract_strided_slice %252 {offsets = [0, 96], sizes = [2, 32], strides = [1, 1]} : vector<2x128xf32> to vector<2x32xf32>
    %274 = arith.negf %273 : vector<2x32xf32>
    %275 = math.exp %274 : vector<2x32xf32>
    %cst_93 = arith.constant 1.000000e+00 : f32
    %276 = vector.broadcast %cst_93 : f32 to vector<2x32xf32>
    %277 = arith.addf %276, %275 : vector<2x32xf32>
    %278 = arith.divf %276, %277 : vector<2x32xf32>
    %279 = arith.mulf %270, %208 : vector<2x32xf32>
    %280 = arith.mulf %264, %272 : vector<2x32xf32>
    %281 = arith.addf %279, %280 : vector<2x32xf32>
    %282 = math.tanh %281 : vector<2x32xf32>
    %283 = arith.mulf %278, %282 : vector<2x32xf32>
    %284 = vector.extract_strided_slice %258 {offsets = [0, 0], sizes = [2, 32], strides = [1, 1]} : vector<2x128xf32> to vector<2x32xf32>
    %285 = arith.negf %284 : vector<2x32xf32>
    %286 = math.exp %285 : vector<2x32xf32>
    %cst_94 = arith.constant 1.000000e+00 : f32
    %287 = vector.broadcast %cst_94 : f32 to vector<2x32xf32>
    %288 = arith.addf %287, %286 : vector<2x32xf32>
    %289 = arith.divf %287, %288 : vector<2x32xf32>
    %290 = vector.extract_strided_slice %258 {offsets = [0, 32], sizes = [2, 32], strides = [1, 1]} : vector<2x128xf32> to vector<2x32xf32>
    %291 = arith.negf %290 : vector<2x32xf32>
    %292 = math.exp %291 : vector<2x32xf32>
    %cst_95 = arith.constant 1.000000e+00 : f32
    %293 = vector.broadcast %cst_95 : f32 to vector<2x32xf32>
    %294 = arith.addf %293, %292 : vector<2x32xf32>
    %295 = arith.divf %293, %294 : vector<2x32xf32>
    %296 = vector.extract_strided_slice %258 {offsets = [0, 64], sizes = [2, 32], strides = [1, 1]} : vector<2x128xf32> to vector<2x32xf32>
    %297 = math.tanh %296 : vector<2x32xf32>
    %298 = vector.extract_strided_slice %258 {offsets = [0, 96], sizes = [2, 32], strides = [1, 1]} : vector<2x128xf32> to vector<2x32xf32>
    %299 = arith.negf %298 : vector<2x32xf32>
    %300 = math.exp %299 : vector<2x32xf32>
    %cst_96 = arith.constant 1.000000e+00 : f32
    %301 = vector.broadcast %cst_96 : f32 to vector<2x32xf32>
    %302 = arith.addf %301, %300 : vector<2x32xf32>
    %303 = arith.divf %301, %302 : vector<2x32xf32>
    %304 = arith.mulf %295, %233 : vector<2x32xf32>
    %305 = arith.mulf %289, %297 : vector<2x32xf32>
    %306 = arith.addf %304, %305 : vector<2x32xf32>
    %307 = math.tanh %306 : vector<2x32xf32>
    %308 = arith.mulf %303, %307 : vector<2x32xf32>
    %309 = arith.truncf %283 : vector<2x32xf32> to vector<2x32xbf16>
    %310 = arith.index_cast %c3_i32 : i32 to index
    %c0_97 = arith.constant 0 : index
    %c0_98 = arith.constant 0 : index
    %311 = vector.load %arg9[%310, %c0_97, %c0_98] : memref<8x2x32xbf16, #tpu.memory_space<vmem>>, vector<1x2x32xbf16>
    %312 = vector.shape_cast %311 : vector<1x2x32xbf16> to vector<2x32xbf16>
    %313 = vector.shape_cast %309 : vector<2x32xbf16> to vector<1x2x32xbf16>
    tpu.vector_store %arg9[%310, %c0_97, %c0_98], %313 {strides = array<i32>} : memref<8x2x32xbf16, #tpu.memory_space<vmem>>, vector<1x2x32xbf16>,
    %314 = arith.truncf %308 : vector<2x32xf32> to vector<2x32xbf16>
    %315 = arith.index_cast %246 : i32 to index
    %c0_99 = arith.constant 0 : index
    %c0_100 = arith.constant 0 : index
    %316 = vector.load %arg10[%315, %c0_99, %c0_100] : memref<8x2x32xbf16, #tpu.memory_space<vmem>>, vector<1x2x32xbf16>
    %317 = vector.shape_cast %316 : vector<1x2x32xbf16> to vector<2x32xbf16>
    %318 = vector.shape_cast %314 : vector<2x32xbf16> to vector<1x2x32xbf16>
    tpu.vector_store %arg10[%315, %c0_99, %c0_100], %318 {strides = array<i32>} : memref<8x2x32xbf16, #tpu.memory_space<vmem>>, vector<1x2x32xbf16>,
    %c4_i32 = arith.constant 4 : i32
    %c7_i32_101 = arith.constant 7 : i32
    %319 = arith.subi %c7_i32_101, %c4_i32 : i32
    %320 = arith.index_cast %c4_i32 : i32 to index
    %c0_102 = arith.constant 0 : index
    %c0_103 = arith.constant 0 : index
    %321 = vector.load %arg11[%320, %c0_102, %c0_103] : memref<8x2x128xf32, #tpu.memory_space<vmem>>, vector<1x2x128xf32>
    %322 = vector.shape_cast %321 : vector<1x2x128xf32> to vector<2x128xf32>
    %323 = arith.truncf %283 : vector<2x32xf32> to vector<2x32xbf16>
    %cst_104 = arith.constant dense<0.000000e+00> : vector<2x128xf32>
    %324 = tpu.matmul %323, %21, %cst_104 {dimension_numbers = #tpu.dot_dimension_numbers<[1], [0], [0], [1], [0, 0, 1, 1], [], []>} : vector<2x32xbf16>, vector<32x128xbf16>, vector<2x128xf32> -> vector<2x128xf32>
    %325 = arith.addf %322, %324 : vector<2x128xf32>
    %326 = arith.index_cast %319 : i32 to index
    %c0_105 = arith.constant 0 : index
    %c0_106 = arith.constant 0 : index
    %327 = vector.load %arg12[%326, %c0_105, %c0_106] : memref<8x2x128xf32, #tpu.memory_space<vmem>>, vector<1x2x128xf32>
    %328 = vector.shape_cast %327 : vector<1x2x128xf32> to vector<2x128xf32>
    %329 = arith.truncf %308 : vector<2x32xf32> to vector<2x32xbf16>
    %cst_107 = arith.constant dense<0.000000e+00> : vector<2x128xf32>
    %330 = tpu.matmul %329, %22, %cst_107 {dimension_numbers = #tpu.dot_dimension_numbers<[1], [0], [0], [1], [0, 0, 1, 1], [], []>} : vector<2x32xbf16>, vector<32x128xbf16>, vector<2x128xf32> -> vector<2x128xf32>
    %331 = arith.addf %328, %330 : vector<2x128xf32>
    %332 = vector.extract_strided_slice %325 {offsets = [0, 0], sizes = [2, 32], strides = [1, 1]} : vector<2x128xf32> to vector<2x32xf32>
    %333 = arith.negf %332 : vector<2x32xf32>
    %334 = math.exp %333 : vector<2x32xf32>
    %cst_108 = arith.constant 1.000000e+00 : f32
    %335 = vector.broadcast %cst_108 : f32 to vector<2x32xf32>
    %336 = arith.addf %335, %334 : vector<2x32xf32>
    %337 = arith.divf %335, %336 : vector<2x32xf32>
    %338 = vector.extract_strided_slice %325 {offsets = [0, 32], sizes = [2, 32], strides = [1, 1]} : vector<2x128xf32> to vector<2x32xf32>
    %339 = arith.negf %338 : vector<2x32xf32>
    %340 = math.exp %339 : vector<2x32xf32>
    %cst_109 = arith.constant 1.000000e+00 : f32
    %341 = vector.broadcast %cst_109 : f32 to vector<2x32xf32>
    %342 = arith.addf %341, %340 : vector<2x32xf32>
    %343 = arith.divf %341, %342 : vector<2x32xf32>
    %344 = vector.extract_strided_slice %325 {offsets = [0, 64], sizes = [2, 32], strides = [1, 1]} : vector<2x128xf32> to vector<2x32xf32>
    %345 = math.tanh %344 : vector<2x32xf32>
    %346 = vector.extract_strided_slice %325 {offsets = [0, 96], sizes = [2, 32], strides = [1, 1]} : vector<2x128xf32> to vector<2x32xf32>
    %347 = arith.negf %346 : vector<2x32xf32>
    %348 = math.exp %347 : vector<2x32xf32>
    %cst_110 = arith.constant 1.000000e+00 : f32
    %349 = vector.broadcast %cst_110 : f32 to vector<2x32xf32>
    %350 = arith.addf %349, %348 : vector<2x32xf32>
    %351 = arith.divf %349, %350 : vector<2x32xf32>
    %352 = arith.mulf %343, %281 : vector<2x32xf32>
    %353 = arith.mulf %337, %345 : vector<2x32xf32>
    %354 = arith.addf %352, %353 : vector<2x32xf32>
    %355 = math.tanh %354 : vector<2x32xf32>
    %356 = arith.mulf %351, %355 : vector<2x32xf32>
    %357 = vector.extract_strided_slice %331 {offsets = [0, 0], sizes = [2, 32], strides = [1, 1]} : vector<2x128xf32> to vector<2x32xf32>
    %358 = arith.negf %357 : vector<2x32xf32>
    %359 = math.exp %358 : vector<2x32xf32>
    %cst_111 = arith.constant 1.000000e+00 : f32
    %360 = vector.broadcast %cst_111 : f32 to vector<2x32xf32>
    %361 = arith.addf %360, %359 : vector<2x32xf32>
    %362 = arith.divf %360, %361 : vector<2x32xf32>
    %363 = vector.extract_strided_slice %331 {offsets = [0, 32], sizes = [2, 32], strides = [1, 1]} : vector<2x128xf32> to vector<2x32xf32>
    %364 = arith.negf %363 : vector<2x32xf32>
    %365 = math.exp %364 : vector<2x32xf32>
    %cst_112 = arith.constant 1.000000e+00 : f32
    %366 = vector.broadcast %cst_112 : f32 to vector<2x32xf32>
    %367 = arith.addf %366, %365 : vector<2x32xf32>
    %368 = arith.divf %366, %367 : vector<2x32xf32>
    %369 = vector.extract_strided_slice %331 {offsets = [0, 64], sizes = [2, 32], strides = [1, 1]} : vector<2x128xf32> to vector<2x32xf32>
    %370 = math.tanh %369 : vector<2x32xf32>
    %371 = vector.extract_strided_slice %331 {offsets = [0, 96], sizes = [2, 32], strides = [1, 1]} : vector<2x128xf32> to vector<2x32xf32>
    %372 = arith.negf %371 : vector<2x32xf32>
    %373 = math.exp %372 : vector<2x32xf32>
    %cst_113 = arith.constant 1.000000e+00 : f32
    %374 = vector.broadcast %cst_113 : f32 to vector<2x32xf32>
    %375 = arith.addf %374, %373 : vector<2x32xf32>
    %376 = arith.divf %374, %375 : vector<2x32xf32>
    %377 = arith.mulf %368, %306 : vector<2x32xf32>
    %378 = arith.mulf %362, %370 : vector<2x32xf32>
    %379 = arith.addf %377, %378 : vector<2x32xf32>
    %380 = math.tanh %379 : vector<2x32xf32>
    %381 = arith.mulf %376, %380 : vector<2x32xf32>
    %382 = arith.truncf %356 : vector<2x32xf32> to vector<2x32xbf16>
    %383 = arith.index_cast %c4_i32 : i32 to index
    %c0_114 = arith.constant 0 : index
    %c0_115 = arith.constant 0 : index
    %384 = vector.load %arg9[%383, %c0_114, %c0_115] : memref<8x2x32xbf16, #tpu.memory_space<vmem>>, vector<1x2x32xbf16>
    %385 = vector.shape_cast %384 : vector<1x2x32xbf16> to vector<2x32xbf16>
    %386 = vector.shape_cast %382 : vector<2x32xbf16> to vector<1x2x32xbf16>
    tpu.vector_store %arg9[%383, %c0_114, %c0_115], %386 {strides = array<i32>} : memref<8x2x32xbf16, #tpu.memory_space<vmem>>, vector<1x2x32xbf16>,
    %387 = arith.truncf %381 : vector<2x32xf32> to vector<2x32xbf16>
    %388 = arith.index_cast %319 : i32 to index
    %c0_116 = arith.constant 0 : index
    %c0_117 = arith.constant 0 : index
    %389 = vector.load %arg10[%388, %c0_116, %c0_117] : memref<8x2x32xbf16, #tpu.memory_space<vmem>>, vector<1x2x32xbf16>
    %390 = vector.shape_cast %389 : vector<1x2x32xbf16> to vector<2x32xbf16>
    %391 = vector.shape_cast %387 : vector<2x32xbf16> to vector<1x2x32xbf16>
    tpu.vector_store %arg10[%388, %c0_116, %c0_117], %391 {strides = array<i32>} : memref<8x2x32xbf16, #tpu.memory_space<vmem>>, vector<1x2x32xbf16>,
    %c5_i32 = arith.constant 5 : i32
    %c7_i32_118 = arith.constant 7 : i32
    %392 = arith.subi %c7_i32_118, %c5_i32 : i32
    %393 = arith.index_cast %c5_i32 : i32 to index
    %c0_119 = arith.constant 0 : index
    %c0_120 = arith.constant 0 : index
    %394 = vector.load %arg11[%393, %c0_119, %c0_120] : memref<8x2x128xf32, #tpu.memory_space<vmem>>, vector<1x2x128xf32>
    %395 = vector.shape_cast %394 : vector<1x2x128xf32> to vector<2x128xf32>
    %396 = arith.truncf %356 : vector<2x32xf32> to vector<2x32xbf16>
    %cst_121 = arith.constant dense<0.000000e+00> : vector<2x128xf32>
    %397 = tpu.matmul %396, %21, %cst_121 {dimension_numbers = #tpu.dot_dimension_numbers<[1], [0], [0], [1], [0, 0, 1, 1], [], []>} : vector<2x32xbf16>, vector<32x128xbf16>, vector<2x128xf32> -> vector<2x128xf32>
    %398 = arith.addf %395, %397 : vector<2x128xf32>
    %399 = arith.index_cast %392 : i32 to index
    %c0_122 = arith.constant 0 : index
    %c0_123 = arith.constant 0 : index
    %400 = vector.load %arg12[%399, %c0_122, %c0_123] : memref<8x2x128xf32, #tpu.memory_space<vmem>>, vector<1x2x128xf32>
    %401 = vector.shape_cast %400 : vector<1x2x128xf32> to vector<2x128xf32>
    %402 = arith.truncf %381 : vector<2x32xf32> to vector<2x32xbf16>
    %cst_124 = arith.constant dense<0.000000e+00> : vector<2x128xf32>
    %403 = tpu.matmul %402, %22, %cst_124 {dimension_numbers = #tpu.dot_dimension_numbers<[1], [0], [0], [1], [0, 0, 1, 1], [], []>} : vector<2x32xbf16>, vector<32x128xbf16>, vector<2x128xf32> -> vector<2x128xf32>
    %404 = arith.addf %401, %403 : vector<2x128xf32>
    %405 = vector.extract_strided_slice %398 {offsets = [0, 0], sizes = [2, 32], strides = [1, 1]} : vector<2x128xf32> to vector<2x32xf32>
    %406 = arith.negf %405 : vector<2x32xf32>
    %407 = math.exp %406 : vector<2x32xf32>
    %cst_125 = arith.constant 1.000000e+00 : f32
    %408 = vector.broadcast %cst_125 : f32 to vector<2x32xf32>
    %409 = arith.addf %408, %407 : vector<2x32xf32>
    %410 = arith.divf %408, %409 : vector<2x32xf32>
    %411 = vector.extract_strided_slice %398 {offsets = [0, 32], sizes = [2, 32], strides = [1, 1]} : vector<2x128xf32> to vector<2x32xf32>
    %412 = arith.negf %411 : vector<2x32xf32>
    %413 = math.exp %412 : vector<2x32xf32>
    %cst_126 = arith.constant 1.000000e+00 : f32
    %414 = vector.broadcast %cst_126 : f32 to vector<2x32xf32>
    %415 = arith.addf %414, %413 : vector<2x32xf32>
    %416 = arith.divf %414, %415 : vector<2x32xf32>
    %417 = vector.extract_strided_slice %398 {offsets = [0, 64], sizes = [2, 32], strides = [1, 1]} : vector<2x128xf32> to vector<2x32xf32>
    %418 = math.tanh %417 : vector<2x32xf32>
    %419 = vector.extract_strided_slice %398 {offsets = [0, 96], sizes = [2, 32], strides = [1, 1]} : vector<2x128xf32> to vector<2x32xf32>
    %420 = arith.negf %419 : vector<2x32xf32>
    %421 = math.exp %420 : vector<2x32xf32>
    %cst_127 = arith.constant 1.000000e+00 : f32
    %422 = vector.broadcast %cst_127 : f32 to vector<2x32xf32>
    %423 = arith.addf %422, %421 : vector<2x32xf32>
    %424 = arith.divf %422, %423 : vector<2x32xf32>
    %425 = arith.mulf %416, %354 : vector<2x32xf32>
    %426 = arith.mulf %410, %418 : vector<2x32xf32>
    %427 = arith.addf %425, %426 : vector<2x32xf32>
    %428 = math.tanh %427 : vector<2x32xf32>
    %429 = arith.mulf %424, %428 : vector<2x32xf32>
    %430 = vector.extract_strided_slice %404 {offsets = [0, 0], sizes = [2, 32], strides = [1, 1]} : vector<2x128xf32> to vector<2x32xf32>
    %431 = arith.negf %430 : vector<2x32xf32>
    %432 = math.exp %431 : vector<2x32xf32>
    %cst_128 = arith.constant 1.000000e+00 : f32
    %433 = vector.broadcast %cst_128 : f32 to vector<2x32xf32>
    %434 = arith.addf %433, %432 : vector<2x32xf32>
    %435 = arith.divf %433, %434 : vector<2x32xf32>
    %436 = vector.extract_strided_slice %404 {offsets = [0, 32], sizes = [2, 32], strides = [1, 1]} : vector<2x128xf32> to vector<2x32xf32>
    %437 = arith.negf %436 : vector<2x32xf32>
    %438 = math.exp %437 : vector<2x32xf32>
    %cst_129 = arith.constant 1.000000e+00 : f32
    %439 = vector.broadcast %cst_129 : f32 to vector<2x32xf32>
    %440 = arith.addf %439, %438 : vector<2x32xf32>
    %441 = arith.divf %439, %440 : vector<2x32xf32>
    %442 = vector.extract_strided_slice %404 {offsets = [0, 64], sizes = [2, 32], strides = [1, 1]} : vector<2x128xf32> to vector<2x32xf32>
    %443 = math.tanh %442 : vector<2x32xf32>
    %444 = vector.extract_strided_slice %404 {offsets = [0, 96], sizes = [2, 32], strides = [1, 1]} : vector<2x128xf32> to vector<2x32xf32>
    %445 = arith.negf %444 : vector<2x32xf32>
    %446 = math.exp %445 : vector<2x32xf32>
    %cst_130 = arith.constant 1.000000e+00 : f32
    %447 = vector.broadcast %cst_130 : f32 to vector<2x32xf32>
    %448 = arith.addf %447, %446 : vector<2x32xf32>
    %449 = arith.divf %447, %448 : vector<2x32xf32>
    %450 = arith.mulf %441, %379 : vector<2x32xf32>
    %451 = arith.mulf %435, %443 : vector<2x32xf32>
    %452 = arith.addf %450, %451 : vector<2x32xf32>
    %453 = math.tanh %452 : vector<2x32xf32>
    %454 = arith.mulf %449, %453 : vector<2x32xf32>
    %455 = arith.truncf %429 : vector<2x32xf32> to vector<2x32xbf16>
    %456 = arith.index_cast %c5_i32 : i32 to index
    %c0_131 = arith.constant 0 : index
    %c0_132 = arith.constant 0 : index
    %457 = vector.load %arg9[%456, %c0_131, %c0_132] : memref<8x2x32xbf16, #tpu.memory_space<vmem>>, vector<1x2x32xbf16>
    %458 = vector.shape_cast %457 : vector<1x2x32xbf16> to vector<2x32xbf16>
    %459 = vector.shape_cast %455 : vector<2x32xbf16> to vector<1x2x32xbf16>
    tpu.vector_store %arg9[%456, %c0_131, %c0_132], %459 {strides = array<i32>} : memref<8x2x32xbf16, #tpu.memory_space<vmem>>, vector<1x2x32xbf16>,
    %460 = arith.truncf %454 : vector<2x32xf32> to vector<2x32xbf16>
    %461 = arith.index_cast %392 : i32 to index
    %c0_133 = arith.constant 0 : index
    %c0_134 = arith.constant 0 : index
    %462 = vector.load %arg10[%461, %c0_133, %c0_134] : memref<8x2x32xbf16, #tpu.memory_space<vmem>>, vector<1x2x32xbf16>
    %463 = vector.shape_cast %462 : vector<1x2x32xbf16> to vector<2x32xbf16>
    %464 = vector.shape_cast %460 : vector<2x32xbf16> to vector<1x2x32xbf16>
    tpu.vector_store %arg10[%461, %c0_133, %c0_134], %464 {strides = array<i32>} : memref<8x2x32xbf16, #tpu.memory_space<vmem>>, vector<1x2x32xbf16>,
    %c6_i32 = arith.constant 6 : i32
    %c7_i32_135 = arith.constant 7 : i32
    %465 = arith.subi %c7_i32_135, %c6_i32 : i32
    %466 = arith.index_cast %c6_i32 : i32 to index
    %c0_136 = arith.constant 0 : index
    %c0_137 = arith.constant 0 : index
    %467 = vector.load %arg11[%466, %c0_136, %c0_137] : memref<8x2x128xf32, #tpu.memory_space<vmem>>, vector<1x2x128xf32>
    %468 = vector.shape_cast %467 : vector<1x2x128xf32> to vector<2x128xf32>
    %469 = arith.truncf %429 : vector<2x32xf32> to vector<2x32xbf16>
    %cst_138 = arith.constant dense<0.000000e+00> : vector<2x128xf32>
    %470 = tpu.matmul %469, %21, %cst_138 {dimension_numbers = #tpu.dot_dimension_numbers<[1], [0], [0], [1], [0, 0, 1, 1], [], []>} : vector<2x32xbf16>, vector<32x128xbf16>, vector<2x128xf32> -> vector<2x128xf32>
    %471 = arith.addf %468, %470 : vector<2x128xf32>
    %472 = arith.index_cast %465 : i32 to index
    %c0_139 = arith.constant 0 : index
    %c0_140 = arith.constant 0 : index
    %473 = vector.load %arg12[%472, %c0_139, %c0_140] : memref<8x2x128xf32, #tpu.memory_space<vmem>>, vector<1x2x128xf32>
    %474 = vector.shape_cast %473 : vector<1x2x128xf32> to vector<2x128xf32>
    %475 = arith.truncf %454 : vector<2x32xf32> to vector<2x32xbf16>
    %cst_141 = arith.constant dense<0.000000e+00> : vector<2x128xf32>
    %476 = tpu.matmul %475, %22, %cst_141 {dimension_numbers = #tpu.dot_dimension_numbers<[1], [0], [0], [1], [0, 0, 1, 1], [], []>} : vector<2x32xbf16>, vector<32x128xbf16>, vector<2x128xf32> -> vector<2x128xf32>
    %477 = arith.addf %474, %476 : vector<2x128xf32>
    %478 = vector.extract_strided_slice %471 {offsets = [0, 0], sizes = [2, 32], strides = [1, 1]} : vector<2x128xf32> to vector<2x32xf32>
    %479 = arith.negf %478 : vector<2x32xf32>
    %480 = math.exp %479 : vector<2x32xf32>
    %cst_142 = arith.constant 1.000000e+00 : f32
    %481 = vector.broadcast %cst_142 : f32 to vector<2x32xf32>
    %482 = arith.addf %481, %480 : vector<2x32xf32>
    %483 = arith.divf %481, %482 : vector<2x32xf32>
    %484 = vector.extract_strided_slice %471 {offsets = [0, 32], sizes = [2, 32], strides = [1, 1]} : vector<2x128xf32> to vector<2x32xf32>
    %485 = arith.negf %484 : vector<2x32xf32>
    %486 = math.exp %485 : vector<2x32xf32>
    %cst_143 = arith.constant 1.000000e+00 : f32
    %487 = vector.broadcast %cst_143 : f32 to vector<2x32xf32>
    %488 = arith.addf %487, %486 : vector<2x32xf32>
    %489 = arith.divf %487, %488 : vector<2x32xf32>
    %490 = vector.extract_strided_slice %471 {offsets = [0, 64], sizes = [2, 32], strides = [1, 1]} : vector<2x128xf32> to vector<2x32xf32>
    %491 = math.tanh %490 : vector<2x32xf32>
    %492 = vector.extract_strided_slice %471 {offsets = [0, 96], sizes = [2, 32], strides = [1, 1]} : vector<2x128xf32> to vector<2x32xf32>
    %493 = arith.negf %492 : vector<2x32xf32>
    %494 = math.exp %493 : vector<2x32xf32>
    %cst_144 = arith.constant 1.000000e+00 : f32
    %495 = vector.broadcast %cst_144 : f32 to vector<2x32xf32>
    %496 = arith.addf %495, %494 : vector<2x32xf32>
    %497 = arith.divf %495, %496 : vector<2x32xf32>
    %498 = arith.mulf %489, %427 : vector<2x32xf32>
    %499 = arith.mulf %483, %491 : vector<2x32xf32>
    %500 = arith.addf %498, %499 : vector<2x32xf32>
    %501 = math.tanh %500 : vector<2x32xf32>
    %502 = arith.mulf %497, %501 : vector<2x32xf32>
    %503 = vector.extract_strided_slice %477 {offsets = [0, 0], sizes = [2, 32], strides = [1, 1]} : vector<2x128xf32> to vector<2x32xf32>
    %504 = arith.negf %503 : vector<2x32xf32>
    %505 = math.exp %504 : vector<2x32xf32>
    %cst_145 = arith.constant 1.000000e+00 : f32
    %506 = vector.broadcast %cst_145 : f32 to vector<2x32xf32>
    %507 = arith.addf %506, %505 : vector<2x32xf32>
    %508 = arith.divf %506, %507 : vector<2x32xf32>
    %509 = vector.extract_strided_slice %477 {offsets = [0, 32], sizes = [2, 32], strides = [1, 1]} : vector<2x128xf32> to vector<2x32xf32>
    %510 = arith.negf %509 : vector<2x32xf32>
    %511 = math.exp %510 : vector<2x32xf32>
    %cst_146 = arith.constant 1.000000e+00 : f32
    %512 = vector.broadcast %cst_146 : f32 to vector<2x32xf32>
    %513 = arith.addf %512, %511 : vector<2x32xf32>
    %514 = arith.divf %512, %513 : vector<2x32xf32>
    %515 = vector.extract_strided_slice %477 {offsets = [0, 64], sizes = [2, 32], strides = [1, 1]} : vector<2x128xf32> to vector<2x32xf32>
    %516 = math.tanh %515 : vector<2x32xf32>
    %517 = vector.extract_strided_slice %477 {offsets = [0, 96], sizes = [2, 32], strides = [1, 1]} : vector<2x128xf32> to vector<2x32xf32>
    %518 = arith.negf %517 : vector<2x32xf32>
    %519 = math.exp %518 : vector<2x32xf32>
    %cst_147 = arith.constant 1.000000e+00 : f32
    %520 = vector.broadcast %cst_147 : f32 to vector<2x32xf32>
    %521 = arith.addf %520, %519 : vector<2x32xf32>
    %522 = arith.divf %520, %521 : vector<2x32xf32>
    %523 = arith.mulf %514, %452 : vector<2x32xf32>
    %524 = arith.mulf %508, %516 : vector<2x32xf32>
    %525 = arith.addf %523, %524 : vector<2x32xf32>
    %526 = math.tanh %525 : vector<2x32xf32>
    %527 = arith.mulf %522, %526 : vector<2x32xf32>
    %528 = arith.truncf %502 : vector<2x32xf32> to vector<2x32xbf16>
    %529 = arith.index_cast %c6_i32 : i32 to index
    %c0_148 = arith.constant 0 : index
    %c0_149 = arith.constant 0 : index
    %530 = vector.load %arg9[%529, %c0_148, %c0_149] : memref<8x2x32xbf16, #tpu.memory_space<vmem>>, vector<1x2x32xbf16>
    %531 = vector.shape_cast %530 : vector<1x2x32xbf16> to vector<2x32xbf16>
    %532 = vector.shape_cast %528 : vector<2x32xbf16> to vector<1x2x32xbf16>
    tpu.vector_store %arg9[%529, %c0_148, %c0_149], %532 {strides = array<i32>} : memref<8x2x32xbf16, #tpu.memory_space<vmem>>, vector<1x2x32xbf16>,
    %533 = arith.truncf %527 : vector<2x32xf32> to vector<2x32xbf16>
    %534 = arith.index_cast %465 : i32 to index
    %c0_150 = arith.constant 0 : index
    %c0_151 = arith.constant 0 : index
    %535 = vector.load %arg10[%534, %c0_150, %c0_151] : memref<8x2x32xbf16, #tpu.memory_space<vmem>>, vector<1x2x32xbf16>
    %536 = vector.shape_cast %535 : vector<1x2x32xbf16> to vector<2x32xbf16>
    %537 = vector.shape_cast %533 : vector<2x32xbf16> to vector<1x2x32xbf16>
    tpu.vector_store %arg10[%534, %c0_150, %c0_151], %537 {strides = array<i32>} : memref<8x2x32xbf16, #tpu.memory_space<vmem>>, vector<1x2x32xbf16>,
    %c7_i32_152 = arith.constant 7 : i32
    %c7_i32_153 = arith.constant 7 : i32
    %538 = arith.subi %c7_i32_153, %c7_i32_152 : i32
    %539 = arith.index_cast %c7_i32_152 : i32 to index
    %c0_154 = arith.constant 0 : index
    %c0_155 = arith.constant 0 : index
    %540 = vector.load %arg11[%539, %c0_154, %c0_155] : memref<8x2x128xf32, #tpu.memory_space<vmem>>, vector<1x2x128xf32>
    %541 = vector.shape_cast %540 : vector<1x2x128xf32> to vector<2x128xf32>
    %542 = arith.truncf %502 : vector<2x32xf32> to vector<2x32xbf16>
    %cst_156 = arith.constant dense<0.000000e+00> : vector<2x128xf32>
    %543 = tpu.matmul %542, %21, %cst_156 {dimension_numbers = #tpu.dot_dimension_numbers<[1], [0], [0], [1], [0, 0, 1, 1], [], []>} : vector<2x32xbf16>, vector<32x128xbf16>, vector<2x128xf32> -> vector<2x128xf32>
    %544 = arith.addf %541, %543 : vector<2x128xf32>
    %545 = arith.index_cast %538 : i32 to index
    %c0_157 = arith.constant 0 : index
    %c0_158 = arith.constant 0 : index
    %546 = vector.load %arg12[%545, %c0_157, %c0_158] : memref<8x2x128xf32, #tpu.memory_space<vmem>>, vector<1x2x128xf32>
    %547 = vector.shape_cast %546 : vector<1x2x128xf32> to vector<2x128xf32>
    %548 = arith.truncf %527 : vector<2x32xf32> to vector<2x32xbf16>
    %cst_159 = arith.constant dense<0.000000e+00> : vector<2x128xf32>
    %549 = tpu.matmul %548, %22, %cst_159 {dimension_numbers = #tpu.dot_dimension_numbers<[1], [0], [0], [1], [0, 0, 1, 1], [], []>} : vector<2x32xbf16>, vector<32x128xbf16>, vector<2x128xf32> -> vector<2x128xf32>
    %550 = arith.addf %547, %549 : vector<2x128xf32>
    %551 = vector.extract_strided_slice %544 {offsets = [0, 0], sizes = [2, 32], strides = [1, 1]} : vector<2x128xf32> to vector<2x32xf32>
    %552 = arith.negf %551 : vector<2x32xf32>
    %553 = math.exp %552 : vector<2x32xf32>
    %cst_160 = arith.constant 1.000000e+00 : f32
    %554 = vector.broadcast %cst_160 : f32 to vector<2x32xf32>
    %555 = arith.addf %554, %553 : vector<2x32xf32>
    %556 = arith.divf %554, %555 : vector<2x32xf32>
    %557 = vector.extract_strided_slice %544 {offsets = [0, 32], sizes = [2, 32], strides = [1, 1]} : vector<2x128xf32> to vector<2x32xf32>
    %558 = arith.negf %557 : vector<2x32xf32>
    %559 = math.exp %558 : vector<2x32xf32>
    %cst_161 = arith.constant 1.000000e+00 : f32
    %560 = vector.broadcast %cst_161 : f32 to vector<2x32xf32>
    %561 = arith.addf %560, %559 : vector<2x32xf32>
    %562 = arith.divf %560, %561 : vector<2x32xf32>
    %563 = vector.extract_strided_slice %544 {offsets = [0, 64], sizes = [2, 32], strides = [1, 1]} : vector<2x128xf32> to vector<2x32xf32>
    %564 = math.tanh %563 : vector<2x32xf32>
    %565 = vector.extract_strided_slice %544 {offsets = [0, 96], sizes = [2, 32], strides = [1, 1]} : vector<2x128xf32> to vector<2x32xf32>
    %566 = arith.negf %565 : vector<2x32xf32>
    %567 = math.exp %566 : vector<2x32xf32>
    %cst_162 = arith.constant 1.000000e+00 : f32
    %568 = vector.broadcast %cst_162 : f32 to vector<2x32xf32>
    %569 = arith.addf %568, %567 : vector<2x32xf32>
    %570 = arith.divf %568, %569 : vector<2x32xf32>
    %571 = arith.mulf %562, %500 : vector<2x32xf32>
    %572 = arith.mulf %556, %564 : vector<2x32xf32>
    %573 = arith.addf %571, %572 : vector<2x32xf32>
    %574 = math.tanh %573 : vector<2x32xf32>
    %575 = arith.mulf %570, %574 : vector<2x32xf32>
    %576 = vector.extract_strided_slice %550 {offsets = [0, 0], sizes = [2, 32], strides = [1, 1]} : vector<2x128xf32> to vector<2x32xf32>
    %577 = arith.negf %576 : vector<2x32xf32>
    %578 = math.exp %577 : vector<2x32xf32>
    %cst_163 = arith.constant 1.000000e+00 : f32
    %579 = vector.broadcast %cst_163 : f32 to vector<2x32xf32>
    %580 = arith.addf %579, %578 : vector<2x32xf32>
    %581 = arith.divf %579, %580 : vector<2x32xf32>
    %582 = vector.extract_strided_slice %550 {offsets = [0, 32], sizes = [2, 32], strides = [1, 1]} : vector<2x128xf32> to vector<2x32xf32>
    %583 = arith.negf %582 : vector<2x32xf32>
    %584 = math.exp %583 : vector<2x32xf32>
    %cst_164 = arith.constant 1.000000e+00 : f32
    %585 = vector.broadcast %cst_164 : f32 to vector<2x32xf32>
    %586 = arith.addf %585, %584 : vector<2x32xf32>
    %587 = arith.divf %585, %586 : vector<2x32xf32>
    %588 = vector.extract_strided_slice %550 {offsets = [0, 64], sizes = [2, 32], strides = [1, 1]} : vector<2x128xf32> to vector<2x32xf32>
    %589 = math.tanh %588 : vector<2x32xf32>
    %590 = vector.extract_strided_slice %550 {offsets = [0, 96], sizes = [2, 32], strides = [1, 1]} : vector<2x128xf32> to vector<2x32xf32>
    %591 = arith.negf %590 : vector<2x32xf32>
    %592 = math.exp %591 : vector<2x32xf32>
    %cst_165 = arith.constant 1.000000e+00 : f32
    %593 = vector.broadcast %cst_165 : f32 to vector<2x32xf32>
    %594 = arith.addf %593, %592 : vector<2x32xf32>
    %595 = arith.divf %593, %594 : vector<2x32xf32>
    %596 = arith.mulf %587, %525 : vector<2x32xf32>
    %597 = arith.mulf %581, %589 : vector<2x32xf32>
    %598 = arith.addf %596, %597 : vector<2x32xf32>
    %599 = math.tanh %598 : vector<2x32xf32>
    %600 = arith.mulf %595, %599 : vector<2x32xf32>
    %601 = arith.truncf %575 : vector<2x32xf32> to vector<2x32xbf16>
    %602 = arith.index_cast %c7_i32_152 : i32 to index
    %c0_166 = arith.constant 0 : index
    %c0_167 = arith.constant 0 : index
    %603 = vector.load %arg9[%602, %c0_166, %c0_167] : memref<8x2x32xbf16, #tpu.memory_space<vmem>>, vector<1x2x32xbf16>
    %604 = vector.shape_cast %603 : vector<1x2x32xbf16> to vector<2x32xbf16>
    %605 = vector.shape_cast %601 : vector<2x32xbf16> to vector<1x2x32xbf16>
    tpu.vector_store %arg9[%602, %c0_166, %c0_167], %605 {strides = array<i32>} : memref<8x2x32xbf16, #tpu.memory_space<vmem>>, vector<1x2x32xbf16>,
    %606 = arith.truncf %600 : vector<2x32xf32> to vector<2x32xbf16>
    %607 = arith.index_cast %538 : i32 to index
    %c0_168 = arith.constant 0 : index
    %c0_169 = arith.constant 0 : index
    %608 = vector.load %arg10[%607, %c0_168, %c0_169] : memref<8x2x32xbf16, #tpu.memory_space<vmem>>, vector<1x2x32xbf16>
    %609 = vector.shape_cast %608 : vector<1x2x32xbf16> to vector<2x32xbf16>
    %610 = vector.shape_cast %606 : vector<2x32xbf16> to vector<1x2x32xbf16>
    tpu.vector_store %arg10[%607, %c0_168, %c0_169], %610 {strides = array<i32>} : memref<8x2x32xbf16, #tpu.memory_space<vmem>>, vector<1x2x32xbf16>,
    %c8_i32 = arith.constant 8 : i32
    %c0_170 = arith.constant 0 : index
    %c0_171 = arith.constant 0 : index
    %611 = vector.load %arg13[%c0_170, %c0_171] : memref<2x32xf32, #tpu.memory_space<vmem>>, vector<2x32xf32>
    tpu.vector_store %arg13[%c0_170, %c0_171], %575 {strides = array<i32>} : memref<2x32xf32, #tpu.memory_space<vmem>>, vector<2x32xf32>,
    %c0_172 = arith.constant 0 : index
    %c0_173 = arith.constant 0 : index
    %612 = vector.load %arg14[%c0_172, %c0_173] : memref<2x32xf32, #tpu.memory_space<vmem>>, vector<2x32xf32>
    tpu.vector_store %arg14[%c0_172, %c0_173], %573 {strides = array<i32>} : memref<2x32xf32, #tpu.memory_space<vmem>>, vector<2x32xf32>,
    %c0_174 = arith.constant 0 : index
    %c0_175 = arith.constant 0 : index
    %613 = vector.load %arg15[%c0_174, %c0_175] : memref<2x32xf32, #tpu.memory_space<vmem>>, vector<2x32xf32>
    tpu.vector_store %arg15[%c0_174, %c0_175], %600 {strides = array<i32>} : memref<2x32xf32, #tpu.memory_space<vmem>>, vector<2x32xf32>,
    %c0_176 = arith.constant 0 : index
    %c0_177 = arith.constant 0 : index
    %614 = vector.load %arg16[%c0_176, %c0_177] : memref<2x32xf32, #tpu.memory_space<vmem>>, vector<2x32xf32>
    tpu.vector_store %arg16[%c0_176, %c0_177], %598 {strides = array<i32>} : memref<2x32xf32, #tpu.memory_space<vmem>>, vector<2x32xf32>,
    return
  }
  func.func @transform_0(%arg0: i32) -> (i32, i32, i32) {
    %c0_i32 = arith.constant 0 : i32
    %c0_i32_0 = arith.constant 0 : i32
    %c0_i32_1 = arith.constant 0 : i32
    return %arg0, %c0_i32, %c0_i32_0 : i32, i32, i32
  }
  func.func @transform_1(%arg0: i32) -> (i32, i32, i32) {
    %c0_i32 = arith.constant 0 : i32
    %0 = arith.subi %c0_i32, %arg0 : i32
    %c0_i32_0 = arith.constant 0 : i32
    %c0_i32_1 = arith.constant 0 : i32
    %c0_i32_2 = arith.constant 0 : i32
    return %0, %c0_i32_0, %c0_i32_1 : i32, i32, i32
  }
  func.func @transform_2(%arg0: i32) -> (i32, i32) {
    %c0_i32 = arith.constant 0 : i32
    %c0_i32_0 = arith.constant 0 : i32
    %c0_i32_1 = arith.constant 0 : i32
    return %c0_i32, %c0_i32_0 : i32, i32
  }
  func.func @transform_3(%arg0: i32) -> (i32, i32) {
    %c0_i32 = arith.constant 0 : i32
    %c0_i32_0 = arith.constant 0 : i32
    %c0_i32_1 = arith.constant 0 : i32
    return %c0_i32, %c0_i32_0 : i32, i32
  }
  func.func @transform_4(%arg0: i32) -> (i32, i32) {
    %c0_i32 = arith.constant 0 : i32
    %c0_i32_0 = arith.constant 0 : i32
    %c0_i32_1 = arith.constant 0 : i32
    return %c0_i32, %c0_i32_0 : i32, i32
  }
  func.func @transform_5(%arg0: i32) -> (i32, i32) {
    %c0_i32 = arith.constant 0 : i32
    %c0_i32_0 = arith.constant 0 : i32
    %c0_i32_1 = arith.constant 0 : i32
    return %c0_i32, %c0_i32_0 : i32, i32
  }
  func.func @transform_6(%arg0: i32) -> (i32, i32) {
    %c0_i32 = arith.constant 0 : i32
    %c0_i32_0 = arith.constant 0 : i32
    %c0_i32_1 = arith.constant 0 : i32
    return %c0_i32, %c0_i32_0 : i32, i32
  }
  func.func @transform_7(%arg0: i32) -> (i32, i32) {
    %c0_i32 = arith.constant 0 : i32
    %c0_i32_0 = arith.constant 0 : i32
    %c0_i32_1 = arith.constant 0 : i32
    return %c0_i32, %c0_i32_0 : i32, i32
  }
  func.func @transform_8(%arg0: i32) -> (i32, i32, i32) {
    %c0_i32 = arith.constant 0 : i32
    %c0_i32_0 = arith.constant 0 : i32
    %c0_i32_1 = arith.constant 0 : i32
    return %arg0, %c0_i32, %c0_i32_0 : i32, i32, i32
  }
  func.func @transform_9(%arg0: i32) -> (i32, i32, i32) {
    %c0_i32 = arith.constant 0 : i32
    %0 = arith.subi %c0_i32, %arg0 : i32
    %c0_i32_0 = arith.constant 0 : i32
    %c0_i32_1 = arith.constant 0 : i32
    %c0_i32_2 = arith.constant 0 : i32
    return %0, %c0_i32_0, %c0_i32_1 : i32, i32, i32
  }
}

module attributes {stable_mosaic.version = 11 : i64} {
  func.func @_bilstm_layer_kernel(%arg0: i32, %arg1: memref<8x2x64xbf16, #tpu.memory_space<vmem>>, %arg2: memref<8x2x64xbf16, #tpu.memory_space<vmem>>, %arg3: memref<64x128xbf16, #tpu.memory_space<vmem>>, %arg4: memref<64x128xbf16, #tpu.memory_space<vmem>>, %arg5: memref<1x128xf32, #tpu.memory_space<vmem>>, %arg6: memref<1x128xf32, #tpu.memory_space<vmem>>, %arg7: memref<32x128xbf16, #tpu.memory_space<vmem>>, %arg8: memref<32x128xbf16, #tpu.memory_space<vmem>>, %arg9: memref<8x2x32xbf16, #tpu.memory_space<vmem>>, %arg10: memref<8x2x32xbf16, #tpu.memory_space<vmem>>, %arg11: memref<8x2x128xf32, #tpu.memory_space<vmem>>, %arg12: memref<8x2x128xf32, #tpu.memory_space<vmem>>, %arg13: memref<2x32xf32, #tpu.memory_space<vmem>>, %arg14: memref<2x32xf32, #tpu.memory_space<vmem>>, %arg15: memref<2x32xf32, #tpu.memory_space<vmem>>, %arg16: memref<2x32xf32, #tpu.memory_space<vmem>>) attributes {dimension_semantics = [#tpu.dimension_semantics<arbitrary>], iteration_bounds = array<i64: 1>, scalar_prefetch = 0 : i64, scratch_operands = 6 : i64, tpu.core_type = #tpu.core_type<tc>, window_params = [{transform_indices = @transform_0, window_bounds = array<i64: 8, 2, 64>}, {transform_indices = @transform_1, window_bounds = array<i64: 8, 2, 64>}, {pipeline_mode = #tpu.pipeline_mode<synchronous>, transform_indices = @transform_2, window_bounds = array<i64: 64, 128>}, {pipeline_mode = #tpu.pipeline_mode<synchronous>, transform_indices = @transform_3, window_bounds = array<i64: 64, 128>}, {pipeline_mode = #tpu.pipeline_mode<synchronous>, transform_indices = @transform_4, window_bounds = array<i64: 1, 128>}, {pipeline_mode = #tpu.pipeline_mode<synchronous>, transform_indices = @transform_5, window_bounds = array<i64: 1, 128>}, {pipeline_mode = #tpu.pipeline_mode<synchronous>, transform_indices = @transform_6, window_bounds = array<i64: 32, 128>}, {pipeline_mode = #tpu.pipeline_mode<synchronous>, transform_indices = @transform_7, window_bounds = array<i64: 32, 128>}, {transform_indices = @transform_8, window_bounds = array<i64: 8, 2, 32>}, {transform_indices = @transform_9, window_bounds = array<i64: 8, 2, 32>}]} {
    %c0_i32 = arith.constant 0 : i32
    %0 = arith.cmpi eq, %arg0, %c0_i32 : i32
    %1 = arith.extui %0 : i1 to i32
    %c0_i32_0 = arith.constant 0 : i32
    %2 = arith.cmpi ne, %1, %c0_i32_0 : i32
    scf.if %2 {
      %cst_178 = arith.constant 0.000000e+00 : f32
      %615 = vector.broadcast %cst_178 : f32 to vector<2x32xf32>
      %c0_179 = arith.constant 0 : index
      %c0_180 = arith.constant 0 : index
      %616 = vector.load %arg13[%c0_179, %c0_180] : memref<2x32xf32, #tpu.memory_space<vmem>>, vector<2x32xf32>
      tpu.vector_store %arg13[%c0_179, %c0_180], %615 {strides = array<i32>} : memref<2x32xf32, #tpu.memory_space<vmem>>, vector<2x32xf32>,
      %cst_181 = arith.constant 0.000000e+00 : f32
      %617 = vector.broadcast %cst_181 : f32 to vector<2x32xf32>
      %c0_182 = arith.constant 0 : index
      %c0_183 = arith.constant 0 : index
      %618 = vector.load %arg14[%c0_182, %c0_183] : memref<2x32xf32, #tpu.memory_space<vmem>>, vector<2x32xf32>
      tpu.vector_store %arg14[%c0_182, %c0_183], %617 {strides = array<i32>} : memref<2x32xf32, #tpu.memory_space<vmem>>, vector<2x32xf32>,
      %cst_184 = arith.constant 0.000000e+00 : f32
      %619 = vector.broadcast %cst_184 : f32 to vector<2x32xf32>
      %c0_185 = arith.constant 0 : index
      %c0_186 = arith.constant 0 : index
      %620 = vector.load %arg15[%c0_185, %c0_186] : memref<2x32xf32, #tpu.memory_space<vmem>>, vector<2x32xf32>
      tpu.vector_store %arg15[%c0_185, %c0_186], %619 {strides = array<i32>} : memref<2x32xf32, #tpu.memory_space<vmem>>, vector<2x32xf32>,
      %cst_187 = arith.constant 0.000000e+00 : f32
      %621 = vector.broadcast %cst_187 : f32 to vector<2x32xf32>
      %c0_188 = arith.constant 0 : index
      %c0_189 = arith.constant 0 : index
      %622 = vector.load %arg16[%c0_188, %c0_189] : memref<2x32xf32, #tpu.memory_space<vmem>>, vector<2x32xf32>
      tpu.vector_store %arg16[%c0_188, %c0_189], %621 {strides = array<i32>} : memref<2x32xf32, #tpu.memory_space<vmem>>, vector<2x32xf32>,
    } else {
    }
    %c0 = arith.constant 0 : index
    %c0_1 = arith.constant 0 : index
    %c0_2 = arith.constant 0 : index
    %3 = vector.load %arg1[%c0, %c0_1, %c0_2] : memref<8x2x64xbf16, #tpu.memory_space<vmem>>, vector<8x2x64xbf16>
    %4 = vector.shape_cast %3 : vector<8x2x64xbf16> to vector<16x64xbf16>
    %c0_3 = arith.constant 0 : index
    %c0_4 = arith.constant 0 : index
    %c0_5 = arith.constant 0 : index
    %5 = vector.load %arg2[%c0_3, %c0_4, %c0_5] : memref<8x2x64xbf16, #tpu.memory_space<vmem>>, vector<8x2x64xbf16>
    %6 = vector.shape_cast %5 : vector<8x2x64xbf16> to vector<16x64xbf16>
    %c0_6 = arith.constant 0 : index
    %c0_7 = arith.constant 0 : index
    %7 = vector.load %arg3[%c0_6, %c0_7] : memref<64x128xbf16, #tpu.memory_space<vmem>>, vector<64x128xbf16>
    %cst = arith.constant dense<0.000000e+00> : vector<16x128xf32>
    %8 = tpu.matmul %4, %7, %cst {dimension_numbers = #tpu.dot_dimension_numbers<[1], [0], [0], [1], [0, 0, 1, 1], [], []>} : vector<16x64xbf16>, vector<64x128xbf16>, vector<16x128xf32> -> vector<16x128xf32>
    %c0_8 = arith.constant 0 : index
    %c0_9 = arith.constant 0 : index
    %9 = vector.load %arg5[%c0_8, %c0_9] : memref<1x128xf32, #tpu.memory_space<vmem>>, vector<1x128xf32>
    %10 = vector.broadcast %9 : vector<1x128xf32> to vector<16x128xf32>
    %11 = arith.addf %8, %10 : vector<16x128xf32>
    %12 = vector.shape_cast %11 : vector<16x128xf32> to vector<8x2x128xf32>
    %c0_10 = arith.constant 0 : index
    %c0_11 = arith.constant 0 : index
    %c0_12 = arith.constant 0 : index
    %13 = vector.load %arg11[%c0_10, %c0_11, %c0_12] : memref<8x2x128xf32, #tpu.memory_space<vmem>>, vector<8x2x128xf32>
    tpu.vector_store %arg11[%c0_10, %c0_11, %c0_12], %12 {strides = array<i32>} : memref<8x2x128xf32, #tpu.memory_space<vmem>>, vector<8x2x128xf32>,
    %c0_13 = arith.constant 0 : index
    %c0_14 = arith.constant 0 : index
    %14 = vector.load %arg4[%c0_13, %c0_14] : memref<64x128xbf16, #tpu.memory_space<vmem>>, vector<64x128xbf16>
    %cst_15 = arith.constant dense<0.000000e+00> : vector<16x128xf32>
    %15 = tpu.matmul %6, %14, %cst_15 {dimension_numbers = #tpu.dot_dimension_numbers<[1], [0], [0], [1], [0, 0, 1, 1], [], []>} : vector<16x64xbf16>, vector<64x128xbf16>, vector<16x128xf32> -> vector<16x128xf32>
    %c0_16 = arith.constant 0 : index
    %c0_17 = arith.constant 0 : index
    %16 = vector.load %arg6[%c0_16, %c0_17] : memref<1x128xf32, #tpu.memory_space<vmem>>, vector<1x128xf32>
    %17 = vector.broadcast %16 : vector<1x128xf32> to vector<16x128xf32>
    %18 = arith.addf %15, %17 : vector<16x128xf32>
    %19 = vector.shape_cast %18 : vector<16x128xf32> to vector<8x2x128xf32>
    %c0_18 = arith.constant 0 : index
    %c0_19 = arith.constant 0 : index
    %c0_20 = arith.constant 0 : index
    %20 = vector.load %arg12[%c0_18, %c0_19, %c0_20] : memref<8x2x128xf32, #tpu.memory_space<vmem>>, vector<8x2x128xf32>
    tpu.vector_store %arg12[%c0_18, %c0_19, %c0_20], %19 {strides = array<i32>} : memref<8x2x128xf32, #tpu.memory_space<vmem>>, vector<8x2x128xf32>,
    %c0_21 = arith.constant 0 : index
    %c0_22 = arith.constant 0 : index
    %21 = vector.load %arg7[%c0_21, %c0_22] : memref<32x128xbf16, #tpu.memory_space<vmem>>, vector<32x128xbf16>
    %c0_23 = arith.constant 0 : index
    %c0_24 = arith.constant 0 : index
    %22 = vector.load %arg8[%c0_23, %c0_24] : memref<32x128xbf16, #tpu.memory_space<vmem>>, vector<32x128xbf16>
    %c0_25 = arith.constant 0 : index
    %c0_26 = arith.constant 0 : index
    %23 = vector.load %arg13[%c0_25, %c0_26] : memref<2x32xf32, #tpu.memory_space<vmem>>, vector<2x32xf32>
    %c0_27 = arith.constant 0 : index
    %c0_28 = arith.constant 0 : index
    %24 = vector.load %arg14[%c0_27, %c0_28] : memref<2x32xf32, #tpu.memory_space<vmem>>, vector<2x32xf32>
    %c0_29 = arith.constant 0 : index
    %c0_30 = arith.constant 0 : index
    %25 = vector.load %arg15[%c0_29, %c0_30] : memref<2x32xf32, #tpu.memory_space<vmem>>, vector<2x32xf32>
    %c0_31 = arith.constant 0 : index
    %c0_32 = arith.constant 0 : index
    %26 = vector.load %arg16[%c0_31, %c0_32] : memref<2x32xf32, #tpu.memory_space<vmem>>, vector<2x32xf32>
    %c0_i32_33 = arith.constant 0 : i32
    %c7_i32 = arith.constant 7 : i32
    %27 = arith.subi %c7_i32, %c0_i32_33 : i32
    %28 = arith.index_cast %c0_i32_33 : i32 to index
    %c0_34 = arith.constant 0 : index
    %c0_35 = arith.constant 0 : index
    %29 = vector.load %arg11[%28, %c0_34, %c0_35] : memref<8x2x128xf32, #tpu.memory_space<vmem>>, vector<1x2x128xf32>
    %30 = vector.shape_cast %29 : vector<1x2x128xf32> to vector<2x128xf32>
    %31 = arith.truncf %23 : vector<2x32xf32> to vector<2x32xbf16>
    %cst_36 = arith.constant dense<0.000000e+00> : vector<2x128xf32>
    %32 = tpu.matmul %31, %21, %cst_36 {dimension_numbers = #tpu.dot_dimension_numbers<[1], [0], [0], [1], [0, 0, 1, 1], [], []>} : vector<2x32xbf16>, vector<32x128xbf16>, vector<2x128xf32> -> vector<2x128xf32>
    %33 = arith.addf %30, %32 : vector<2x128xf32>
    %34 = arith.index_cast %27 : i32 to index
    %c0_37 = arith.constant 0 : index
    %c0_38 = arith.constant 0 : index
    %35 = vector.load %arg12[%34, %c0_37, %c0_38] : memref<8x2x128xf32, #tpu.memory_space<vmem>>, vector<1x2x128xf32>
    %36 = vector.shape_cast %35 : vector<1x2x128xf32> to vector<2x128xf32>
    %37 = arith.truncf %25 : vector<2x32xf32> to vector<2x32xbf16>
    %cst_39 = arith.constant dense<0.000000e+00> : vector<2x128xf32>
    %38 = tpu.matmul %37, %22, %cst_39 {dimension_numbers = #tpu.dot_dimension_numbers<[1], [0], [0], [1], [0, 0, 1, 1], [], []>} : vector<2x32xbf16>, vector<32x128xbf16>, vector<2x128xf32> -> vector<2x128xf32>
    %39 = arith.addf %36, %38 : vector<2x128xf32>
    %40 = vector.extract_strided_slice %33 {offsets = [0, 0], sizes = [2, 32], strides = [1, 1]} : vector<2x128xf32> to vector<2x32xf32>
    %41 = arith.negf %40 : vector<2x32xf32>
    %42 = math.exp %41 : vector<2x32xf32>
    %cst_40 = arith.constant 1.000000e+00 : f32
    %43 = vector.broadcast %cst_40 : f32 to vector<2x32xf32>
    %44 = arith.addf %43, %42 : vector<2x32xf32>
    %45 = arith.divf %43, %44 : vector<2x32xf32>
    %46 = vector.extract_strided_slice %33 {offsets = [0, 32], sizes = [2, 32], strides = [1, 1]} : vector<2x128xf32> to vector<2x32xf32>
    %47 = arith.negf %46 : vector<2x32xf32>
    %48 = math.exp %47 : vector<2x32xf32>
    %cst_41 = arith.constant 1.000000e+00 : f32
    %49 = vector.broadcast %cst_41 : f32 to vector<2x32xf32>
    %50 = arith.addf %49, %48 : vector<2x32xf32>
    %51 = arith.divf %49, %50 : vector<2x32xf32>
    %52 = vector.extract_strided_slice %33 {offsets = [0, 64], sizes = [2, 32], strides = [1, 1]} : vector<2x128xf32> to vector<2x32xf32>
    %53 = math.tanh %52 : vector<2x32xf32>
    %54 = vector.extract_strided_slice %33 {offsets = [0, 96], sizes = [2, 32], strides = [1, 1]} : vector<2x128xf32> to vector<2x32xf32>
    %55 = arith.negf %54 : vector<2x32xf32>
    %56 = math.exp %55 : vector<2x32xf32>
    %cst_42 = arith.constant 1.000000e+00 : f32
    %57 = vector.broadcast %cst_42 : f32 to vector<2x32xf32>
    %58 = arith.addf %57, %56 : vector<2x32xf32>
    %59 = arith.divf %57, %58 : vector<2x32xf32>
    %60 = arith.mulf %51, %24 : vector<2x32xf32>
    %61 = arith.mulf %45, %53 : vector<2x32xf32>
    %62 = arith.addf %60, %61 : vector<2x32xf32>
    %63 = math.tanh %62 : vector<2x32xf32>
    %64 = arith.mulf %59, %63 : vector<2x32xf32>
    %65 = vector.extract_strided_slice %39 {offsets = [0, 0], sizes = [2, 32], strides = [1, 1]} : vector<2x128xf32> to vector<2x32xf32>
    %66 = arith.negf %65 : vector<2x32xf32>
    %67 = math.exp %66 : vector<2x32xf32>
    %cst_43 = arith.constant 1.000000e+00 : f32
    %68 = vector.broadcast %cst_43 : f32 to vector<2x32xf32>
    %69 = arith.addf %68, %67 : vector<2x32xf32>
    %70 = arith.divf %68, %69 : vector<2x32xf32>
    %71 = vector.extract_strided_slice %39 {offsets = [0, 32], sizes = [2, 32], strides = [1, 1]} : vector<2x128xf32> to vector<2x32xf32>
    %72 = arith.negf %71 : vector<2x32xf32>
    %73 = math.exp %72 : vector<2x32xf32>
    %cst_44 = arith.constant 1.000000e+00 : f32
    %74 = vector.broadcast %cst_44 : f32 to vector<2x32xf32>
    %75 = arith.addf %74, %73 : vector<2x32xf32>
    %76 = arith.divf %74, %75 : vector<2x32xf32>
    %77 = vector.extract_strided_slice %39 {offsets = [0, 64], sizes = [2, 32], strides = [1, 1]} : vector<2x128xf32> to vector<2x32xf32>
    %78 = math.tanh %77 : vector<2x32xf32>
    %79 = vector.extract_strided_slice %39 {offsets = [0, 96], sizes = [2, 32], strides = [1, 1]} : vector<2x128xf32> to vector<2x32xf32>
    %80 = arith.negf %79 : vector<2x32xf32>
    %81 = math.exp %80 : vector<2x32xf32>
    %cst_45 = arith.constant 1.000000e+00 : f32
    %82 = vector.broadcast %cst_45 : f32 to vector<2x32xf32>
    %83 = arith.addf %82, %81 : vector<2x32xf32>
    %84 = arith.divf %82, %83 : vector<2x32xf32>
    %85 = arith.mulf %76, %26 : vector<2x32xf32>
    %86 = arith.mulf %70, %78 : vector<2x32xf32>
    %87 = arith.addf %85, %86 : vector<2x32xf32>
    %88 = math.tanh %87 : vector<2x32xf32>
    %89 = arith.mulf %84, %88 : vector<2x32xf32>
    %90 = arith.truncf %64 : vector<2x32xf32> to vector<2x32xbf16>
    %91 = arith.index_cast %c0_i32_33 : i32 to index
    %c0_46 = arith.constant 0 : index
    %c0_47 = arith.constant 0 : index
    %92 = vector.load %arg9[%91, %c0_46, %c0_47] : memref<8x2x32xbf16, #tpu.memory_space<vmem>>, vector<1x2x32xbf16>
    %93 = vector.shape_cast %92 : vector<1x2x32xbf16> to vector<2x32xbf16>
    %94 = vector.shape_cast %90 : vector<2x32xbf16> to vector<1x2x32xbf16>
    tpu.vector_store %arg9[%91, %c0_46, %c0_47], %94 {strides = array<i32>} : memref<8x2x32xbf16, #tpu.memory_space<vmem>>, vector<1x2x32xbf16>,
    %95 = arith.truncf %89 : vector<2x32xf32> to vector<2x32xbf16>
    %96 = arith.index_cast %27 : i32 to index
    %c0_48 = arith.constant 0 : index
    %c0_49 = arith.constant 0 : index
    %97 = vector.load %arg10[%96, %c0_48, %c0_49] : memref<8x2x32xbf16, #tpu.memory_space<vmem>>, vector<1x2x32xbf16>
    %98 = vector.shape_cast %97 : vector<1x2x32xbf16> to vector<2x32xbf16>
    %99 = vector.shape_cast %95 : vector<2x32xbf16> to vector<1x2x32xbf16>
    tpu.vector_store %arg10[%96, %c0_48, %c0_49], %99 {strides = array<i32>} : memref<8x2x32xbf16, #tpu.memory_space<vmem>>, vector<1x2x32xbf16>,
    %c1_i32 = arith.constant 1 : i32
    %c7_i32_50 = arith.constant 7 : i32
    %100 = arith.subi %c7_i32_50, %c1_i32 : i32
    %101 = arith.index_cast %c1_i32 : i32 to index
    %c0_51 = arith.constant 0 : index
    %c0_52 = arith.constant 0 : index
    %102 = vector.load %arg11[%101, %c0_51, %c0_52] : memref<8x2x128xf32, #tpu.memory_space<vmem>>, vector<1x2x128xf32>
    %103 = vector.shape_cast %102 : vector<1x2x128xf32> to vector<2x128xf32>
    %104 = arith.truncf %64 : vector<2x32xf32> to vector<2x32xbf16>
    %cst_53 = arith.constant dense<0.000000e+00> : vector<2x128xf32>
    %105 = tpu.matmul %104, %21, %cst_53 {dimension_numbers = #tpu.dot_dimension_numbers<[1], [0], [0], [1], [0, 0, 1, 1], [], []>} : vector<2x32xbf16>, vector<32x128xbf16>, vector<2x128xf32> -> vector<2x128xf32>
    %106 = arith.addf %103, %105 : vector<2x128xf32>
    %107 = arith.index_cast %100 : i32 to index
    %c0_54 = arith.constant 0 : index
    %c0_55 = arith.constant 0 : index
    %108 = vector.load %arg12[%107, %c0_54, %c0_55] : memref<8x2x128xf32, #tpu.memory_space<vmem>>, vector<1x2x128xf32>
    %109 = vector.shape_cast %108 : vector<1x2x128xf32> to vector<2x128xf32>
    %110 = arith.truncf %89 : vector<2x32xf32> to vector<2x32xbf16>
    %cst_56 = arith.constant dense<0.000000e+00> : vector<2x128xf32>
    %111 = tpu.matmul %110, %22, %cst_56 {dimension_numbers = #tpu.dot_dimension_numbers<[1], [0], [0], [1], [0, 0, 1, 1], [], []>} : vector<2x32xbf16>, vector<32x128xbf16>, vector<2x128xf32> -> vector<2x128xf32>
    %112 = arith.addf %109, %111 : vector<2x128xf32>
    %113 = vector.extract_strided_slice %106 {offsets = [0, 0], sizes = [2, 32], strides = [1, 1]} : vector<2x128xf32> to vector<2x32xf32>
    %114 = arith.negf %113 : vector<2x32xf32>
    %115 = math.exp %114 : vector<2x32xf32>
    %cst_57 = arith.constant 1.000000e+00 : f32
    %116 = vector.broadcast %cst_57 : f32 to vector<2x32xf32>
    %117 = arith.addf %116, %115 : vector<2x32xf32>
    %118 = arith.divf %116, %117 : vector<2x32xf32>
    %119 = vector.extract_strided_slice %106 {offsets = [0, 32], sizes = [2, 32], strides = [1, 1]} : vector<2x128xf32> to vector<2x32xf32>
    %120 = arith.negf %119 : vector<2x32xf32>
    %121 = math.exp %120 : vector<2x32xf32>
    %cst_58 = arith.constant 1.000000e+00 : f32
    %122 = vector.broadcast %cst_58 : f32 to vector<2x32xf32>
    %123 = arith.addf %122, %121 : vector<2x32xf32>
    %124 = arith.divf %122, %123 : vector<2x32xf32>
    %125 = vector.extract_strided_slice %106 {offsets = [0, 64], sizes = [2, 32], strides = [1, 1]} : vector<2x128xf32> to vector<2x32xf32>
    %126 = math.tanh %125 : vector<2x32xf32>
    %127 = vector.extract_strided_slice %106 {offsets = [0, 96], sizes = [2, 32], strides = [1, 1]} : vector<2x128xf32> to vector<2x32xf32>
    %128 = arith.negf %127 : vector<2x32xf32>
    %129 = math.exp %128 : vector<2x32xf32>
    %cst_59 = arith.constant 1.000000e+00 : f32
    %130 = vector.broadcast %cst_59 : f32 to vector<2x32xf32>
    %131 = arith.addf %130, %129 : vector<2x32xf32>
    %132 = arith.divf %130, %131 : vector<2x32xf32>
    %133 = arith.mulf %124, %62 : vector<2x32xf32>
    %134 = arith.mulf %118, %126 : vector<2x32xf32>
    %135 = arith.addf %133, %134 : vector<2x32xf32>
    %136 = math.tanh %135 : vector<2x32xf32>
    %137 = arith.mulf %132, %136 : vector<2x32xf32>
    %138 = vector.extract_strided_slice %112 {offsets = [0, 0], sizes = [2, 32], strides = [1, 1]} : vector<2x128xf32> to vector<2x32xf32>
    %139 = arith.negf %138 : vector<2x32xf32>
    %140 = math.exp %139 : vector<2x32xf32>
    %cst_60 = arith.constant 1.000000e+00 : f32
    %141 = vector.broadcast %cst_60 : f32 to vector<2x32xf32>
    %142 = arith.addf %141, %140 : vector<2x32xf32>
    %143 = arith.divf %141, %142 : vector<2x32xf32>
    %144 = vector.extract_strided_slice %112 {offsets = [0, 32], sizes = [2, 32], strides = [1, 1]} : vector<2x128xf32> to vector<2x32xf32>
    %145 = arith.negf %144 : vector<2x32xf32>
    %146 = math.exp %145 : vector<2x32xf32>
    %cst_61 = arith.constant 1.000000e+00 : f32
    %147 = vector.broadcast %cst_61 : f32 to vector<2x32xf32>
    %148 = arith.addf %147, %146 : vector<2x32xf32>
    %149 = arith.divf %147, %148 : vector<2x32xf32>
    %150 = vector.extract_strided_slice %112 {offsets = [0, 64], sizes = [2, 32], strides = [1, 1]} : vector<2x128xf32> to vector<2x32xf32>
    %151 = math.tanh %150 : vector<2x32xf32>
    %152 = vector.extract_strided_slice %112 {offsets = [0, 96], sizes = [2, 32], strides = [1, 1]} : vector<2x128xf32> to vector<2x32xf32>
    %153 = arith.negf %152 : vector<2x32xf32>
    %154 = math.exp %153 : vector<2x32xf32>
    %cst_62 = arith.constant 1.000000e+00 : f32
    %155 = vector.broadcast %cst_62 : f32 to vector<2x32xf32>
    %156 = arith.addf %155, %154 : vector<2x32xf32>
    %157 = arith.divf %155, %156 : vector<2x32xf32>
    %158 = arith.mulf %149, %87 : vector<2x32xf32>
    %159 = arith.mulf %143, %151 : vector<2x32xf32>
    %160 = arith.addf %158, %159 : vector<2x32xf32>
    %161 = math.tanh %160 : vector<2x32xf32>
    %162 = arith.mulf %157, %161 : vector<2x32xf32>
    %163 = arith.truncf %137 : vector<2x32xf32> to vector<2x32xbf16>
    %164 = arith.index_cast %c1_i32 : i32 to index
    %c0_63 = arith.constant 0 : index
    %c0_64 = arith.constant 0 : index
    %165 = vector.load %arg9[%164, %c0_63, %c0_64] : memref<8x2x32xbf16, #tpu.memory_space<vmem>>, vector<1x2x32xbf16>
    %166 = vector.shape_cast %165 : vector<1x2x32xbf16> to vector<2x32xbf16>
    %167 = vector.shape_cast %163 : vector<2x32xbf16> to vector<1x2x32xbf16>
    tpu.vector_store %arg9[%164, %c0_63, %c0_64], %167 {strides = array<i32>} : memref<8x2x32xbf16, #tpu.memory_space<vmem>>, vector<1x2x32xbf16>,
    %168 = arith.truncf %162 : vector<2x32xf32> to vector<2x32xbf16>
    %169 = arith.index_cast %100 : i32 to index
    %c0_65 = arith.constant 0 : index
    %c0_66 = arith.constant 0 : index
    %170 = vector.load %arg10[%169, %c0_65, %c0_66] : memref<8x2x32xbf16, #tpu.memory_space<vmem>>, vector<1x2x32xbf16>
    %171 = vector.shape_cast %170 : vector<1x2x32xbf16> to vector<2x32xbf16>
    %172 = vector.shape_cast %168 : vector<2x32xbf16> to vector<1x2x32xbf16>
    tpu.vector_store %arg10[%169, %c0_65, %c0_66], %172 {strides = array<i32>} : memref<8x2x32xbf16, #tpu.memory_space<vmem>>, vector<1x2x32xbf16>,
    %c2_i32 = arith.constant 2 : i32
    %c7_i32_67 = arith.constant 7 : i32
    %173 = arith.subi %c7_i32_67, %c2_i32 : i32
    %174 = arith.index_cast %c2_i32 : i32 to index
    %c0_68 = arith.constant 0 : index
    %c0_69 = arith.constant 0 : index
    %175 = vector.load %arg11[%174, %c0_68, %c0_69] : memref<8x2x128xf32, #tpu.memory_space<vmem>>, vector<1x2x128xf32>
    %176 = vector.shape_cast %175 : vector<1x2x128xf32> to vector<2x128xf32>
    %177 = arith.truncf %137 : vector<2x32xf32> to vector<2x32xbf16>
    %cst_70 = arith.constant dense<0.000000e+00> : vector<2x128xf32>
    %178 = tpu.matmul %177, %21, %cst_70 {dimension_numbers = #tpu.dot_dimension_numbers<[1], [0], [0], [1], [0, 0, 1, 1], [], []>} : vector<2x32xbf16>, vector<32x128xbf16>, vector<2x128xf32> -> vector<2x128xf32>
    %179 = arith.addf %176, %178 : vector<2x128xf32>
    %180 = arith.index_cast %173 : i32 to index
    %c0_71 = arith.constant 0 : index
    %c0_72 = arith.constant 0 : index
    %181 = vector.load %arg12[%180, %c0_71, %c0_72] : memref<8x2x128xf32, #tpu.memory_space<vmem>>, vector<1x2x128xf32>
    %182 = vector.shape_cast %181 : vector<1x2x128xf32> to vector<2x128xf32>
    %183 = arith.truncf %162 : vector<2x32xf32> to vector<2x32xbf16>
    %cst_73 = arith.constant dense<0.000000e+00> : vector<2x128xf32>
    %184 = tpu.matmul %183, %22, %cst_73 {dimension_numbers = #tpu.dot_dimension_numbers<[1], [0], [0], [1], [0, 0, 1, 1], [], []>} : vector<2x32xbf16>, vector<32x128xbf16>, vector<2x128xf32> -> vector<2x128xf32>
    %185 = arith.addf %182, %184 : vector<2x128xf32>
    %186 = vector.extract_strided_slice %179 {offsets = [0, 0], sizes = [2, 32], strides = [1, 1]} : vector<2x128xf32> to vector<2x32xf32>
    %187 = arith.negf %186 : vector<2x32xf32>
    %188 = math.exp %187 : vector<2x32xf32>
    %cst_74 = arith.constant 1.000000e+00 : f32
    %189 = vector.broadcast %cst_74 : f32 to vector<2x32xf32>
    %190 = arith.addf %189, %188 : vector<2x32xf32>
    %191 = arith.divf %189, %190 : vector<2x32xf32>
    %192 = vector.extract_strided_slice %179 {offsets = [0, 32], sizes = [2, 32], strides = [1, 1]} : vector<2x128xf32> to vector<2x32xf32>
    %193 = arith.negf %192 : vector<2x32xf32>
    %194 = math.exp %193 : vector<2x32xf32>
    %cst_75 = arith.constant 1.000000e+00 : f32
    %195 = vector.broadcast %cst_75 : f32 to vector<2x32xf32>
    %196 = arith.addf %195, %194 : vector<2x32xf32>
    %197 = arith.divf %195, %196 : vector<2x32xf32>
    %198 = vector.extract_strided_slice %179 {offsets = [0, 64], sizes = [2, 32], strides = [1, 1]} : vector<2x128xf32> to vector<2x32xf32>
    %199 = math.tanh %198 : vector<2x32xf32>
    %200 = vector.extract_strided_slice %179 {offsets = [0, 96], sizes = [2, 32], strides = [1, 1]} : vector<2x128xf32> to vector<2x32xf32>
    %201 = arith.negf %200 : vector<2x32xf32>
    %202 = math.exp %201 : vector<2x32xf32>
    %cst_76 = arith.constant 1.000000e+00 : f32
    %203 = vector.broadcast %cst_76 : f32 to vector<2x32xf32>
    %204 = arith.addf %203, %202 : vector<2x32xf32>
    %205 = arith.divf %203, %204 : vector<2x32xf32>
    %206 = arith.mulf %197, %135 : vector<2x32xf32>
    %207 = arith.mulf %191, %199 : vector<2x32xf32>
    %208 = arith.addf %206, %207 : vector<2x32xf32>
    %209 = math.tanh %208 : vector<2x32xf32>
    %210 = arith.mulf %205, %209 : vector<2x32xf32>
    %211 = vector.extract_strided_slice %185 {offsets = [0, 0], sizes = [2, 32], strides = [1, 1]} : vector<2x128xf32> to vector<2x32xf32>
    %212 = arith.negf %211 : vector<2x32xf32>
    %213 = math.exp %212 : vector<2x32xf32>
    %cst_77 = arith.constant 1.000000e+00 : f32
    %214 = vector.broadcast %cst_77 : f32 to vector<2x32xf32>
    %215 = arith.addf %214, %213 : vector<2x32xf32>
    %216 = arith.divf %214, %215 : vector<2x32xf32>
    %217 = vector.extract_strided_slice %185 {offsets = [0, 32], sizes = [2, 32], strides = [1, 1]} : vector<2x128xf32> to vector<2x32xf32>
    %218 = arith.negf %217 : vector<2x32xf32>
    %219 = math.exp %218 : vector<2x32xf32>
    %cst_78 = arith.constant 1.000000e+00 : f32
    %220 = vector.broadcast %cst_78 : f32 to vector<2x32xf32>
    %221 = arith.addf %220, %219 : vector<2x32xf32>
    %222 = arith.divf %220, %221 : vector<2x32xf32>
    %223 = vector.extract_strided_slice %185 {offsets = [0, 64], sizes = [2, 32], strides = [1, 1]} : vector<2x128xf32> to vector<2x32xf32>
    %224 = math.tanh %223 : vector<2x32xf32>
    %225 = vector.extract_strided_slice %185 {offsets = [0, 96], sizes = [2, 32], strides = [1, 1]} : vector<2x128xf32> to vector<2x32xf32>
    %226 = arith.negf %225 : vector<2x32xf32>
    %227 = math.exp %226 : vector<2x32xf32>
    %cst_79 = arith.constant 1.000000e+00 : f32
    %228 = vector.broadcast %cst_79 : f32 to vector<2x32xf32>
    %229 = arith.addf %228, %227 : vector<2x32xf32>
    %230 = arith.divf %228, %229 : vector<2x32xf32>
    %231 = arith.mulf %222, %160 : vector<2x32xf32>
    %232 = arith.mulf %216, %224 : vector<2x32xf32>
    %233 = arith.addf %231, %232 : vector<2x32xf32>
    %234 = math.tanh %233 : vector<2x32xf32>
    %235 = arith.mulf %230, %234 : vector<2x32xf32>
    %236 = arith.truncf %210 : vector<2x32xf32> to vector<2x32xbf16>
    %237 = arith.index_cast %c2_i32 : i32 to index
    %c0_80 = arith.constant 0 : index
    %c0_81 = arith.constant 0 : index
    %238 = vector.load %arg9[%237, %c0_80, %c0_81] : memref<8x2x32xbf16, #tpu.memory_space<vmem>>, vector<1x2x32xbf16>
    %239 = vector.shape_cast %238 : vector<1x2x32xbf16> to vector<2x32xbf16>
    %240 = vector.shape_cast %236 : vector<2x32xbf16> to vector<1x2x32xbf16>
    tpu.vector_store %arg9[%237, %c0_80, %c0_81], %240 {strides = array<i32>} : memref<8x2x32xbf16, #tpu.memory_space<vmem>>, vector<1x2x32xbf16>,
    %241 = arith.truncf %235 : vector<2x32xf32> to vector<2x32xbf16>
    %242 = arith.index_cast %173 : i32 to index
    %c0_82 = arith.constant 0 : index
    %c0_83 = arith.constant 0 : index
    %243 = vector.load %arg10[%242, %c0_82, %c0_83] : memref<8x2x32xbf16, #tpu.memory_space<vmem>>, vector<1x2x32xbf16>
    %244 = vector.shape_cast %243 : vector<1x2x32xbf16> to vector<2x32xbf16>
    %245 = vector.shape_cast %241 : vector<2x32xbf16> to vector<1x2x32xbf16>
    tpu.vector_store %arg10[%242, %c0_82, %c0_83], %245 {strides = array<i32>} : memref<8x2x32xbf16, #tpu.memory_space<vmem>>, vector<1x2x32xbf16>,
    %c3_i32 = arith.constant 3 : i32
    %c7_i32_84 = arith.constant 7 : i32
    %246 = arith.subi %c7_i32_84, %c3_i32 : i32
    %247 = arith.index_cast %c3_i32 : i32 to index
    %c0_85 = arith.constant 0 : index
    %c0_86 = arith.constant 0 : index
    %248 = vector.load %arg11[%247, %c0_85, %c0_86] : memref<8x2x128xf32, #tpu.memory_space<vmem>>, vector<1x2x128xf32>
    %249 = vector.shape_cast %248 : vector<1x2x128xf32> to vector<2x128xf32>
    %250 = arith.truncf %210 : vector<2x32xf32> to vector<2x32xbf16>
    %cst_87 = arith.constant dense<0.000000e+00> : vector<2x128xf32>
    %251 = tpu.matmul %250, %21, %cst_87 {dimension_numbers = #tpu.dot_dimension_numbers<[1], [0], [0], [1], [0, 0, 1, 1], [], []>} : vector<2x32xbf16>, vector<32x128xbf16>, vector<2x128xf32> -> vector<2x128xf32>
    %252 = arith.addf %249, %251 : vector<2x128xf32>
    %253 = arith.index_cast %246 : i32 to index
    %c0_88 = arith.constant 0 : index
    %c0_89 = arith.constant 0 : index
    %254 = vector.load %arg12[%253, %c0_88, %c0_89] : memref<8x2x128xf32, #tpu.memory_space<vmem>>, vector<1x2x128xf32>
    %255 = vector.shape_cast %254 : vector<1x2x128xf32> to vector<2x128xf32>
    %256 = arith.truncf %235 : vector<2x32xf32> to vector<2x32xbf16>
    %cst_90 = arith.constant dense<0.000000e+00> : vector<2x128xf32>
    %257 = tpu.matmul %256, %22, %cst_90 {dimension_numbers = #tpu.dot_dimension_numbers<[1], [0], [0], [1], [0, 0, 1, 1], [], []>} : vector<2x32xbf16>, vector<32x128xbf16>, vector<2x128xf32> -> vector<2x128xf32>
    %258 = arith.addf %255, %257 : vector<2x128xf32>
    %259 = vector.extract_strided_slice %252 {offsets = [0, 0], sizes = [2, 32], strides = [1, 1]} : vector<2x128xf32> to vector<2x32xf32>
    %260 = arith.negf %259 : vector<2x32xf32>
    %261 = math.exp %260 : vector<2x32xf32>
    %cst_91 = arith.constant 1.000000e+00 : f32
    %262 = vector.broadcast %cst_91 : f32 to vector<2x32xf32>
    %263 = arith.addf %262, %261 : vector<2x32xf32>
    %264 = arith.divf %262, %263 : vector<2x32xf32>
    %265 = vector.extract_strided_slice %252 {offsets = [0, 32], sizes = [2, 32], strides = [1, 1]} : vector<2x128xf32> to vector<2x32xf32>
    %266 = arith.negf %265 : vector<2x32xf32>
    %267 = math.exp %266 : vector<2x32xf32>
    %cst_92 = arith.constant 1.000000e+00 : f32
    %268 = vector.broadcast %cst_92 : f32 to vector<2x32xf32>
    %269 = arith.addf %268, %267 : vector<2x32xf32>
    %270 = arith.divf %268, %269 : vector<2x32xf32>
    %271 = vector.extract_strided_slice %252 {offsets = [0, 64], sizes = [2, 32], strides = [1, 1]} : vector<2x128xf32> to vector<2x32xf32>
    %272 = math.tanh %271 : vector<2x32xf32>
    %273 = vector.extract_strided_slice %252 {offsets = [0, 96], sizes = [2, 32], strides = [1, 1]} : vector<2x128xf32> to vector<2x32xf32>
    %274 = arith.negf %273 : vector<2x32xf32>
    %275 = math.exp %274 : vector<2x32xf32>
    %cst_93 = arith.constant 1.000000e+00 : f32
    %276 = vector.broadcast %cst_93 : f32 to vector<2x32xf32>
    %277 = arith.addf %276, %275 : vector<2x32xf32>
    %278 = arith.divf %276, %277 : vector<2x32xf32>
    %279 = arith.mulf %270, %208 : vector<2x32xf32>
    %280 = arith.mulf %264, %272 : vector<2x32xf32>
    %281 = arith.addf %279, %280 : vector<2x32xf32>
    %282 = math.tanh %281 : vector<2x32xf32>
    %283 = arith.mulf %278, %282 : vector<2x32xf32>
    %284 = vector.extract_strided_slice %258 {offsets = [0, 0], sizes = [2, 32], strides = [1, 1]} : vector<2x128xf32> to vector<2x32xf32>
    %285 = arith.negf %284 : vector<2x32xf32>
    %286 = math.exp %285 : vector<2x32xf32>
    %cst_94 = arith.constant 1.000000e+00 : f32
    %287 = vector.broadcast %cst_94 : f32 to vector<2x32xf32>
    %288 = arith.addf %287, %286 : vector<2x32xf32>
    %289 = arith.divf %287, %288 : vector<2x32xf32>
    %290 = vector.extract_strided_slice %258 {offsets = [0, 32], sizes = [2, 32], strides = [1, 1]} : vector<2x128xf32> to vector<2x32xf32>
    %291 = arith.negf %290 : vector<2x32xf32>
    %292 = math.exp %291 : vector<2x32xf32>
    %cst_95 = arith.constant 1.000000e+00 : f32
    %293 = vector.broadcast %cst_95 : f32 to vector<2x32xf32>
    %294 = arith.addf %293, %292 : vector<2x32xf32>
    %295 = arith.divf %293, %294 : vector<2x32xf32>
    %296 = vector.extract_strided_slice %258 {offsets = [0, 64], sizes = [2, 32], strides = [1, 1]} : vector<2x128xf32> to vector<2x32xf32>
    %297 = math.tanh %296 : vector<2x32xf32>
    %298 = vector.extract_strided_slice %258 {offsets = [0, 96], sizes = [2, 32], strides = [1, 1]} : vector<2x128xf32> to vector<2x32xf32>
    %299 = arith.negf %298 : vector<2x32xf32>
    %300 = math.exp %299 : vector<2x32xf32>
    %cst_96 = arith.constant 1.000000e+00 : f32
    %301 = vector.broadcast %cst_96 : f32 to vector<2x32xf32>
    %302 = arith.addf %301, %300 : vector<2x32xf32>
    %303 = arith.divf %301, %302 : vector<2x32xf32>
    %304 = arith.mulf %295, %233 : vector<2x32xf32>
    %305 = arith.mulf %289, %297 : vector<2x32xf32>
    %306 = arith.addf %304, %305 : vector<2x32xf32>
    %307 = math.tanh %306 : vector<2x32xf32>
    %308 = arith.mulf %303, %307 : vector<2x32xf32>
    %309 = arith.truncf %283 : vector<2x32xf32> to vector<2x32xbf16>
    %310 = arith.index_cast %c3_i32 : i32 to index
    %c0_97 = arith.constant 0 : index
    %c0_98 = arith.constant 0 : index
    %311 = vector.load %arg9[%310, %c0_97, %c0_98] : memref<8x2x32xbf16, #tpu.memory_space<vmem>>, vector<1x2x32xbf16>
    %312 = vector.shape_cast %311 : vector<1x2x32xbf16> to vector<2x32xbf16>
    %313 = vector.shape_cast %309 : vector<2x32xbf16> to vector<1x2x32xbf16>
    tpu.vector_store %arg9[%310, %c0_97, %c0_98], %313 {strides = array<i32>} : memref<8x2x32xbf16, #tpu.memory_space<vmem>>, vector<1x2x32xbf16>,
    %314 = arith.truncf %308 : vector<2x32xf32> to vector<2x32xbf16>
    %315 = arith.index_cast %246 : i32 to index
    %c0_99 = arith.constant 0 : index
    %c0_100 = arith.constant 0 : index
    %316 = vector.load %arg10[%315, %c0_99, %c0_100] : memref<8x2x32xbf16, #tpu.memory_space<vmem>>, vector<1x2x32xbf16>
    %317 = vector.shape_cast %316 : vector<1x2x32xbf16> to vector<2x32xbf16>
    %318 = vector.shape_cast %314 : vector<2x32xbf16> to vector<1x2x32xbf16>
    tpu.vector_store %arg10[%315, %c0_99, %c0_100], %318 {strides = array<i32>} : memref<8x2x32xbf16, #tpu.memory_space<vmem>>, vector<1x2x32xbf16>,
    %c4_i32 = arith.constant 4 : i32
    %c7_i32_101 = arith.constant 7 : i32
    %319 = arith.subi %c7_i32_101, %c4_i32 : i32
    %320 = arith.index_cast %c4_i32 : i32 to index
    %c0_102 = arith.constant 0 : index
    %c0_103 = arith.constant 0 : index
    %321 = vector.load %arg11[%320, %c0_102, %c0_103] : memref<8x2x128xf32, #tpu.memory_space<vmem>>, vector<1x2x128xf32>
    %322 = vector.shape_cast %321 : vector<1x2x128xf32> to vector<2x128xf32>
    %323 = arith.truncf %283 : vector<2x32xf32> to vector<2x32xbf16>
    %cst_104 = arith.constant dense<0.000000e+00> : vector<2x128xf32>
    %324 = tpu.matmul %323, %21, %cst_104 {dimension_numbers = #tpu.dot_dimension_numbers<[1], [0], [0], [1], [0, 0, 1, 1], [], []>} : vector<2x32xbf16>, vector<32x128xbf16>, vector<2x128xf32> -> vector<2x128xf32>
    %325 = arith.addf %322, %324 : vector<2x128xf32>
    %326 = arith.index_cast %319 : i32 to index
    %c0_105 = arith.constant 0 : index
    %c0_106 = arith.constant 0 : index
    %327 = vector.load %arg12[%326, %c0_105, %c0_106] : memref<8x2x128xf32, #tpu.memory_space<vmem>>, vector<1x2x128xf32>
    %328 = vector.shape_cast %327 : vector<1x2x128xf32> to vector<2x128xf32>
    %329 = arith.truncf %308 : vector<2x32xf32> to vector<2x32xbf16>
    %cst_107 = arith.constant dense<0.000000e+00> : vector<2x128xf32>
    %330 = tpu.matmul %329, %22, %cst_107 {dimension_numbers = #tpu.dot_dimension_numbers<[1], [0], [0], [1], [0, 0, 1, 1], [], []>} : vector<2x32xbf16>, vector<32x128xbf16>, vector<2x128xf32> -> vector<2x128xf32>
    %331 = arith.addf %328, %330 : vector<2x128xf32>
    %332 = vector.extract_strided_slice %325 {offsets = [0, 0], sizes = [2, 32], strides = [1, 1]} : vector<2x128xf32> to vector<2x32xf32>
    %333 = arith.negf %332 : vector<2x32xf32>
    %334 = math.exp %333 : vector<2x32xf32>
    %cst_108 = arith.constant 1.000000e+00 : f32
    %335 = vector.broadcast %cst_108 : f32 to vector<2x32xf32>
    %336 = arith.addf %335, %334 : vector<2x32xf32>
    %337 = arith.divf %335, %336 : vector<2x32xf32>
    %338 = vector.extract_strided_slice %325 {offsets = [0, 32], sizes = [2, 32], strides = [1, 1]} : vector<2x128xf32> to vector<2x32xf32>
    %339 = arith.negf %338 : vector<2x32xf32>
    %340 = math.exp %339 : vector<2x32xf32>
    %cst_109 = arith.constant 1.000000e+00 : f32
    %341 = vector.broadcast %cst_109 : f32 to vector<2x32xf32>
    %342 = arith.addf %341, %340 : vector<2x32xf32>
    %343 = arith.divf %341, %342 : vector<2x32xf32>
    %344 = vector.extract_strided_slice %325 {offsets = [0, 64], sizes = [2, 32], strides = [1, 1]} : vector<2x128xf32> to vector<2x32xf32>
    %345 = math.tanh %344 : vector<2x32xf32>
    %346 = vector.extract_strided_slice %325 {offsets = [0, 96], sizes = [2, 32], strides = [1, 1]} : vector<2x128xf32> to vector<2x32xf32>
    %347 = arith.negf %346 : vector<2x32xf32>
    %348 = math.exp %347 : vector<2x32xf32>
    %cst_110 = arith.constant 1.000000e+00 : f32
    %349 = vector.broadcast %cst_110 : f32 to vector<2x32xf32>
    %350 = arith.addf %349, %348 : vector<2x32xf32>
    %351 = arith.divf %349, %350 : vector<2x32xf32>
    %352 = arith.mulf %343, %281 : vector<2x32xf32>
    %353 = arith.mulf %337, %345 : vector<2x32xf32>
    %354 = arith.addf %352, %353 : vector<2x32xf32>
    %355 = math.tanh %354 : vector<2x32xf32>
    %356 = arith.mulf %351, %355 : vector<2x32xf32>
    %357 = vector.extract_strided_slice %331 {offsets = [0, 0], sizes = [2, 32], strides = [1, 1]} : vector<2x128xf32> to vector<2x32xf32>
    %358 = arith.negf %357 : vector<2x32xf32>
    %359 = math.exp %358 : vector<2x32xf32>
    %cst_111 = arith.constant 1.000000e+00 : f32
    %360 = vector.broadcast %cst_111 : f32 to vector<2x32xf32>
    %361 = arith.addf %360, %359 : vector<2x32xf32>
    %362 = arith.divf %360, %361 : vector<2x32xf32>
    %363 = vector.extract_strided_slice %331 {offsets = [0, 32], sizes = [2, 32], strides = [1, 1]} : vector<2x128xf32> to vector<2x32xf32>
    %364 = arith.negf %363 : vector<2x32xf32>
    %365 = math.exp %364 : vector<2x32xf32>
    %cst_112 = arith.constant 1.000000e+00 : f32
    %366 = vector.broadcast %cst_112 : f32 to vector<2x32xf32>
    %367 = arith.addf %366, %365 : vector<2x32xf32>
    %368 = arith.divf %366, %367 : vector<2x32xf32>
    %369 = vector.extract_strided_slice %331 {offsets = [0, 64], sizes = [2, 32], strides = [1, 1]} : vector<2x128xf32> to vector<2x32xf32>
    %370 = math.tanh %369 : vector<2x32xf32>
    %371 = vector.extract_strided_slice %331 {offsets = [0, 96], sizes = [2, 32], strides = [1, 1]} : vector<2x128xf32> to vector<2x32xf32>
    %372 = arith.negf %371 : vector<2x32xf32>
    %373 = math.exp %372 : vector<2x32xf32>
    %cst_113 = arith.constant 1.000000e+00 : f32
    %374 = vector.broadcast %cst_113 : f32 to vector<2x32xf32>
    %375 = arith.addf %374, %373 : vector<2x32xf32>
    %376 = arith.divf %374, %375 : vector<2x32xf32>
    %377 = arith.mulf %368, %306 : vector<2x32xf32>
    %378 = arith.mulf %362, %370 : vector<2x32xf32>
    %379 = arith.addf %377, %378 : vector<2x32xf32>
    %380 = math.tanh %379 : vector<2x32xf32>
    %381 = arith.mulf %376, %380 : vector<2x32xf32>
    %382 = arith.truncf %356 : vector<2x32xf32> to vector<2x32xbf16>
    %383 = arith.index_cast %c4_i32 : i32 to index
    %c0_114 = arith.constant 0 : index
    %c0_115 = arith.constant 0 : index
    %384 = vector.load %arg9[%383, %c0_114, %c0_115] : memref<8x2x32xbf16, #tpu.memory_space<vmem>>, vector<1x2x32xbf16>
    %385 = vector.shape_cast %384 : vector<1x2x32xbf16> to vector<2x32xbf16>
    %386 = vector.shape_cast %382 : vector<2x32xbf16> to vector<1x2x32xbf16>
    tpu.vector_store %arg9[%383, %c0_114, %c0_115], %386 {strides = array<i32>} : memref<8x2x32xbf16, #tpu.memory_space<vmem>>, vector<1x2x32xbf16>,
    %387 = arith.truncf %381 : vector<2x32xf32> to vector<2x32xbf16>
    %388 = arith.index_cast %319 : i32 to index
    %c0_116 = arith.constant 0 : index
    %c0_117 = arith.constant 0 : index
    %389 = vector.load %arg10[%388, %c0_116, %c0_117] : memref<8x2x32xbf16, #tpu.memory_space<vmem>>, vector<1x2x32xbf16>
    %390 = vector.shape_cast %389 : vector<1x2x32xbf16> to vector<2x32xbf16>
    %391 = vector.shape_cast %387 : vector<2x32xbf16> to vector<1x2x32xbf16>
    tpu.vector_store %arg10[%388, %c0_116, %c0_117], %391 {strides = array<i32>} : memref<8x2x32xbf16, #tpu.memory_space<vmem>>, vector<1x2x32xbf16>,
    %c5_i32 = arith.constant 5 : i32
    %c7_i32_118 = arith.constant 7 : i32
    %392 = arith.subi %c7_i32_118, %c5_i32 : i32
    %393 = arith.index_cast %c5_i32 : i32 to index
    %c0_119 = arith.constant 0 : index
    %c0_120 = arith.constant 0 : index
    %394 = vector.load %arg11[%393, %c0_119, %c0_120] : memref<8x2x128xf32, #tpu.memory_space<vmem>>, vector<1x2x128xf32>
    %395 = vector.shape_cast %394 : vector<1x2x128xf32> to vector<2x128xf32>
    %396 = arith.truncf %356 : vector<2x32xf32> to vector<2x32xbf16>
    %cst_121 = arith.constant dense<0.000000e+00> : vector<2x128xf32>
    %397 = tpu.matmul %396, %21, %cst_121 {dimension_numbers = #tpu.dot_dimension_numbers<[1], [0], [0], [1], [0, 0, 1, 1], [], []>} : vector<2x32xbf16>, vector<32x128xbf16>, vector<2x128xf32> -> vector<2x128xf32>
    %398 = arith.addf %395, %397 : vector<2x128xf32>
    %399 = arith.index_cast %392 : i32 to index
    %c0_122 = arith.constant 0 : index
    %c0_123 = arith.constant 0 : index
    %400 = vector.load %arg12[%399, %c0_122, %c0_123] : memref<8x2x128xf32, #tpu.memory_space<vmem>>, vector<1x2x128xf32>
    %401 = vector.shape_cast %400 : vector<1x2x128xf32> to vector<2x128xf32>
    %402 = arith.truncf %381 : vector<2x32xf32> to vector<2x32xbf16>
    %cst_124 = arith.constant dense<0.000000e+00> : vector<2x128xf32>
    %403 = tpu.matmul %402, %22, %cst_124 {dimension_numbers = #tpu.dot_dimension_numbers<[1], [0], [0], [1], [0, 0, 1, 1], [], []>} : vector<2x32xbf16>, vector<32x128xbf16>, vector<2x128xf32> -> vector<2x128xf32>
    %404 = arith.addf %401, %403 : vector<2x128xf32>
    %405 = vector.extract_strided_slice %398 {offsets = [0, 0], sizes = [2, 32], strides = [1, 1]} : vector<2x128xf32> to vector<2x32xf32>
    %406 = arith.negf %405 : vector<2x32xf32>
    %407 = math.exp %406 : vector<2x32xf32>
    %cst_125 = arith.constant 1.000000e+00 : f32
    %408 = vector.broadcast %cst_125 : f32 to vector<2x32xf32>
    %409 = arith.addf %408, %407 : vector<2x32xf32>
    %410 = arith.divf %408, %409 : vector<2x32xf32>
    %411 = vector.extract_strided_slice %398 {offsets = [0, 32], sizes = [2, 32], strides = [1, 1]} : vector<2x128xf32> to vector<2x32xf32>
    %412 = arith.negf %411 : vector<2x32xf32>
    %413 = math.exp %412 : vector<2x32xf32>
    %cst_126 = arith.constant 1.000000e+00 : f32
    %414 = vector.broadcast %cst_126 : f32 to vector<2x32xf32>
    %415 = arith.addf %414, %413 : vector<2x32xf32>
    %416 = arith.divf %414, %415 : vector<2x32xf32>
    %417 = vector.extract_strided_slice %398 {offsets = [0, 64], sizes = [2, 32], strides = [1, 1]} : vector<2x128xf32> to vector<2x32xf32>
    %418 = math.tanh %417 : vector<2x32xf32>
    %419 = vector.extract_strided_slice %398 {offsets = [0, 96], sizes = [2, 32], strides = [1, 1]} : vector<2x128xf32> to vector<2x32xf32>
    %420 = arith.negf %419 : vector<2x32xf32>
    %421 = math.exp %420 : vector<2x32xf32>
    %cst_127 = arith.constant 1.000000e+00 : f32
    %422 = vector.broadcast %cst_127 : f32 to vector<2x32xf32>
    %423 = arith.addf %422, %421 : vector<2x32xf32>
    %424 = arith.divf %422, %423 : vector<2x32xf32>
    %425 = arith.mulf %416, %354 : vector<2x32xf32>
    %426 = arith.mulf %410, %418 : vector<2x32xf32>
    %427 = arith.addf %425, %426 : vector<2x32xf32>
    %428 = math.tanh %427 : vector<2x32xf32>
    %429 = arith.mulf %424, %428 : vector<2x32xf32>
    %430 = vector.extract_strided_slice %404 {offsets = [0, 0], sizes = [2, 32], strides = [1, 1]} : vector<2x128xf32> to vector<2x32xf32>
    %431 = arith.negf %430 : vector<2x32xf32>
    %432 = math.exp %431 : vector<2x32xf32>
    %cst_128 = arith.constant 1.000000e+00 : f32
    %433 = vector.broadcast %cst_128 : f32 to vector<2x32xf32>
    %434 = arith.addf %433, %432 : vector<2x32xf32>
    %435 = arith.divf %433, %434 : vector<2x32xf32>
    %436 = vector.extract_strided_slice %404 {offsets = [0, 32], sizes = [2, 32], strides = [1, 1]} : vector<2x128xf32> to vector<2x32xf32>
    %437 = arith.negf %436 : vector<2x32xf32>
    %438 = math.exp %437 : vector<2x32xf32>
    %cst_129 = arith.constant 1.000000e+00 : f32
    %439 = vector.broadcast %cst_129 : f32 to vector<2x32xf32>
    %440 = arith.addf %439, %438 : vector<2x32xf32>
    %441 = arith.divf %439, %440 : vector<2x32xf32>
    %442 = vector.extract_strided_slice %404 {offsets = [0, 64], sizes = [2, 32], strides = [1, 1]} : vector<2x128xf32> to vector<2x32xf32>
    %443 = math.tanh %442 : vector<2x32xf32>
    %444 = vector.extract_strided_slice %404 {offsets = [0, 96], sizes = [2, 32], strides = [1, 1]} : vector<2x128xf32> to vector<2x32xf32>
    %445 = arith.negf %444 : vector<2x32xf32>
    %446 = math.exp %445 : vector<2x32xf32>
    %cst_130 = arith.constant 1.000000e+00 : f32
    %447 = vector.broadcast %cst_130 : f32 to vector<2x32xf32>
    %448 = arith.addf %447, %446 : vector<2x32xf32>
    %449 = arith.divf %447, %448 : vector<2x32xf32>
    %450 = arith.mulf %441, %379 : vector<2x32xf32>
    %451 = arith.mulf %435, %443 : vector<2x32xf32>
    %452 = arith.addf %450, %451 : vector<2x32xf32>
    %453 = math.tanh %452 : vector<2x32xf32>
    %454 = arith.mulf %449, %453 : vector<2x32xf32>
    %455 = arith.truncf %429 : vector<2x32xf32> to vector<2x32xbf16>
    %456 = arith.index_cast %c5_i32 : i32 to index
    %c0_131 = arith.constant 0 : index
    %c0_132 = arith.constant 0 : index
    %457 = vector.load %arg9[%456, %c0_131, %c0_132] : memref<8x2x32xbf16, #tpu.memory_space<vmem>>, vector<1x2x32xbf16>
    %458 = vector.shape_cast %457 : vector<1x2x32xbf16> to vector<2x32xbf16>
    %459 = vector.shape_cast %455 : vector<2x32xbf16> to vector<1x2x32xbf16>
    tpu.vector_store %arg9[%456, %c0_131, %c0_132], %459 {strides = array<i32>} : memref<8x2x32xbf16, #tpu.memory_space<vmem>>, vector<1x2x32xbf16>,
    %460 = arith.truncf %454 : vector<2x32xf32> to vector<2x32xbf16>
    %461 = arith.index_cast %392 : i32 to index
    %c0_133 = arith.constant 0 : index
    %c0_134 = arith.constant 0 : index
    %462 = vector.load %arg10[%461, %c0_133, %c0_134] : memref<8x2x32xbf16, #tpu.memory_space<vmem>>, vector<1x2x32xbf16>
    %463 = vector.shape_cast %462 : vector<1x2x32xbf16> to vector<2x32xbf16>
    %464 = vector.shape_cast %460 : vector<2x32xbf16> to vector<1x2x32xbf16>
    tpu.vector_store %arg10[%461, %c0_133, %c0_134], %464 {strides = array<i32>} : memref<8x2x32xbf16, #tpu.memory_space<vmem>>, vector<1x2x32xbf16>,
    %c6_i32 = arith.constant 6 : i32
    %c7_i32_135 = arith.constant 7 : i32
    %465 = arith.subi %c7_i32_135, %c6_i32 : i32
    %466 = arith.index_cast %c6_i32 : i32 to index
    %c0_136 = arith.constant 0 : index
    %c0_137 = arith.constant 0 : index
    %467 = vector.load %arg11[%466, %c0_136, %c0_137] : memref<8x2x128xf32, #tpu.memory_space<vmem>>, vector<1x2x128xf32>
    %468 = vector.shape_cast %467 : vector<1x2x128xf32> to vector<2x128xf32>
    %469 = arith.truncf %429 : vector<2x32xf32> to vector<2x32xbf16>
    %cst_138 = arith.constant dense<0.000000e+00> : vector<2x128xf32>
    %470 = tpu.matmul %469, %21, %cst_138 {dimension_numbers = #tpu.dot_dimension_numbers<[1], [0], [0], [1], [0, 0, 1, 1], [], []>} : vector<2x32xbf16>, vector<32x128xbf16>, vector<2x128xf32> -> vector<2x128xf32>
    %471 = arith.addf %468, %470 : vector<2x128xf32>
    %472 = arith.index_cast %465 : i32 to index
    %c0_139 = arith.constant 0 : index
    %c0_140 = arith.constant 0 : index
    %473 = vector.load %arg12[%472, %c0_139, %c0_140] : memref<8x2x128xf32, #tpu.memory_space<vmem>>, vector<1x2x128xf32>
    %474 = vector.shape_cast %473 : vector<1x2x128xf32> to vector<2x128xf32>
    %475 = arith.truncf %454 : vector<2x32xf32> to vector<2x32xbf16>
    %cst_141 = arith.constant dense<0.000000e+00> : vector<2x128xf32>
    %476 = tpu.matmul %475, %22, %cst_141 {dimension_numbers = #tpu.dot_dimension_numbers<[1], [0], [0], [1], [0, 0, 1, 1], [], []>} : vector<2x32xbf16>, vector<32x128xbf16>, vector<2x128xf32> -> vector<2x128xf32>
    %477 = arith.addf %474, %476 : vector<2x128xf32>
    %478 = vector.extract_strided_slice %471 {offsets = [0, 0], sizes = [2, 32], strides = [1, 1]} : vector<2x128xf32> to vector<2x32xf32>
    %479 = arith.negf %478 : vector<2x32xf32>
    %480 = math.exp %479 : vector<2x32xf32>
    %cst_142 = arith.constant 1.000000e+00 : f32
    %481 = vector.broadcast %cst_142 : f32 to vector<2x32xf32>
    %482 = arith.addf %481, %480 : vector<2x32xf32>
    %483 = arith.divf %481, %482 : vector<2x32xf32>
    %484 = vector.extract_strided_slice %471 {offsets = [0, 32], sizes = [2, 32], strides = [1, 1]} : vector<2x128xf32> to vector<2x32xf32>
    %485 = arith.negf %484 : vector<2x32xf32>
    %486 = math.exp %485 : vector<2x32xf32>
    %cst_143 = arith.constant 1.000000e+00 : f32
    %487 = vector.broadcast %cst_143 : f32 to vector<2x32xf32>
    %488 = arith.addf %487, %486 : vector<2x32xf32>
    %489 = arith.divf %487, %488 : vector<2x32xf32>
    %490 = vector.extract_strided_slice %471 {offsets = [0, 64], sizes = [2, 32], strides = [1, 1]} : vector<2x128xf32> to vector<2x32xf32>
    %491 = math.tanh %490 : vector<2x32xf32>
    %492 = vector.extract_strided_slice %471 {offsets = [0, 96], sizes = [2, 32], strides = [1, 1]} : vector<2x128xf32> to vector<2x32xf32>
    %493 = arith.negf %492 : vector<2x32xf32>
    %494 = math.exp %493 : vector<2x32xf32>
    %cst_144 = arith.constant 1.000000e+00 : f32
    %495 = vector.broadcast %cst_144 : f32 to vector<2x32xf32>
    %496 = arith.addf %495, %494 : vector<2x32xf32>
    %497 = arith.divf %495, %496 : vector<2x32xf32>
    %498 = arith.mulf %489, %427 : vector<2x32xf32>
    %499 = arith.mulf %483, %491 : vector<2x32xf32>
    %500 = arith.addf %498, %499 : vector<2x32xf32>
    %501 = math.tanh %500 : vector<2x32xf32>
    %502 = arith.mulf %497, %501 : vector<2x32xf32>
    %503 = vector.extract_strided_slice %477 {offsets = [0, 0], sizes = [2, 32], strides = [1, 1]} : vector<2x128xf32> to vector<2x32xf32>
    %504 = arith.negf %503 : vector<2x32xf32>
    %505 = math.exp %504 : vector<2x32xf32>
    %cst_145 = arith.constant 1.000000e+00 : f32
    %506 = vector.broadcast %cst_145 : f32 to vector<2x32xf32>
    %507 = arith.addf %506, %505 : vector<2x32xf32>
    %508 = arith.divf %506, %507 : vector<2x32xf32>
    %509 = vector.extract_strided_slice %477 {offsets = [0, 32], sizes = [2, 32], strides = [1, 1]} : vector<2x128xf32> to vector<2x32xf32>
    %510 = arith.negf %509 : vector<2x32xf32>
    %511 = math.exp %510 : vector<2x32xf32>
    %cst_146 = arith.constant 1.000000e+00 : f32
    %512 = vector.broadcast %cst_146 : f32 to vector<2x32xf32>
    %513 = arith.addf %512, %511 : vector<2x32xf32>
    %514 = arith.divf %512, %513 : vector<2x32xf32>
    %515 = vector.extract_strided_slice %477 {offsets = [0, 64], sizes = [2, 32], strides = [1, 1]} : vector<2x128xf32> to vector<2x32xf32>
    %516 = math.tanh %515 : vector<2x32xf32>
    %517 = vector.extract_strided_slice %477 {offsets = [0, 96], sizes = [2, 32], strides = [1, 1]} : vector<2x128xf32> to vector<2x32xf32>
    %518 = arith.negf %517 : vector<2x32xf32>
    %519 = math.exp %518 : vector<2x32xf32>
    %cst_147 = arith.constant 1.000000e+00 : f32
    %520 = vector.broadcast %cst_147 : f32 to vector<2x32xf32>
    %521 = arith.addf %520, %519 : vector<2x32xf32>
    %522 = arith.divf %520, %521 : vector<2x32xf32>
    %523 = arith.mulf %514, %452 : vector<2x32xf32>
    %524 = arith.mulf %508, %516 : vector<2x32xf32>
    %525 = arith.addf %523, %524 : vector<2x32xf32>
    %526 = math.tanh %525 : vector<2x32xf32>
    %527 = arith.mulf %522, %526 : vector<2x32xf32>
    %528 = arith.truncf %502 : vector<2x32xf32> to vector<2x32xbf16>
    %529 = arith.index_cast %c6_i32 : i32 to index
    %c0_148 = arith.constant 0 : index
    %c0_149 = arith.constant 0 : index
    %530 = vector.load %arg9[%529, %c0_148, %c0_149] : memref<8x2x32xbf16, #tpu.memory_space<vmem>>, vector<1x2x32xbf16>
    %531 = vector.shape_cast %530 : vector<1x2x32xbf16> to vector<2x32xbf16>
    %532 = vector.shape_cast %528 : vector<2x32xbf16> to vector<1x2x32xbf16>
    tpu.vector_store %arg9[%529, %c0_148, %c0_149], %532 {strides = array<i32>} : memref<8x2x32xbf16, #tpu.memory_space<vmem>>, vector<1x2x32xbf16>,
    %533 = arith.truncf %527 : vector<2x32xf32> to vector<2x32xbf16>
    %534 = arith.index_cast %465 : i32 to index
    %c0_150 = arith.constant 0 : index
    %c0_151 = arith.constant 0 : index
    %535 = vector.load %arg10[%534, %c0_150, %c0_151] : memref<8x2x32xbf16, #tpu.memory_space<vmem>>, vector<1x2x32xbf16>
    %536 = vector.shape_cast %535 : vector<1x2x32xbf16> to vector<2x32xbf16>
    %537 = vector.shape_cast %533 : vector<2x32xbf16> to vector<1x2x32xbf16>
    tpu.vector_store %arg10[%534, %c0_150, %c0_151], %537 {strides = array<i32>} : memref<8x2x32xbf16, #tpu.memory_space<vmem>>, vector<1x2x32xbf16>,
    %c7_i32_152 = arith.constant 7 : i32
    %c7_i32_153 = arith.constant 7 : i32
    %538 = arith.subi %c7_i32_153, %c7_i32_152 : i32
    %539 = arith.index_cast %c7_i32_152 : i32 to index
    %c0_154 = arith.constant 0 : index
    %c0_155 = arith.constant 0 : index
    %540 = vector.load %arg11[%539, %c0_154, %c0_155] : memref<8x2x128xf32, #tpu.memory_space<vmem>>, vector<1x2x128xf32>
    %541 = vector.shape_cast %540 : vector<1x2x128xf32> to vector<2x128xf32>
    %542 = arith.truncf %502 : vector<2x32xf32> to vector<2x32xbf16>
    %cst_156 = arith.constant dense<0.000000e+00> : vector<2x128xf32>
    %543 = tpu.matmul %542, %21, %cst_156 {dimension_numbers = #tpu.dot_dimension_numbers<[1], [0], [0], [1], [0, 0, 1, 1], [], []>} : vector<2x32xbf16>, vector<32x128xbf16>, vector<2x128xf32> -> vector<2x128xf32>
    %544 = arith.addf %541, %543 : vector<2x128xf32>
    %545 = arith.index_cast %538 : i32 to index
    %c0_157 = arith.constant 0 : index
    %c0_158 = arith.constant 0 : index
    %546 = vector.load %arg12[%545, %c0_157, %c0_158] : memref<8x2x128xf32, #tpu.memory_space<vmem>>, vector<1x2x128xf32>
    %547 = vector.shape_cast %546 : vector<1x2x128xf32> to vector<2x128xf32>
    %548 = arith.truncf %527 : vector<2x32xf32> to vector<2x32xbf16>
    %cst_159 = arith.constant dense<0.000000e+00> : vector<2x128xf32>
    %549 = tpu.matmul %548, %22, %cst_159 {dimension_numbers = #tpu.dot_dimension_numbers<[1], [0], [0], [1], [0, 0, 1, 1], [], []>} : vector<2x32xbf16>, vector<32x128xbf16>, vector<2x128xf32> -> vector<2x128xf32>
    %550 = arith.addf %547, %549 : vector<2x128xf32>
    %551 = vector.extract_strided_slice %544 {offsets = [0, 0], sizes = [2, 32], strides = [1, 1]} : vector<2x128xf32> to vector<2x32xf32>
    %552 = arith.negf %551 : vector<2x32xf32>
    %553 = math.exp %552 : vector<2x32xf32>
    %cst_160 = arith.constant 1.000000e+00 : f32
    %554 = vector.broadcast %cst_160 : f32 to vector<2x32xf32>
    %555 = arith.addf %554, %553 : vector<2x32xf32>
    %556 = arith.divf %554, %555 : vector<2x32xf32>
    %557 = vector.extract_strided_slice %544 {offsets = [0, 32], sizes = [2, 32], strides = [1, 1]} : vector<2x128xf32> to vector<2x32xf32>
    %558 = arith.negf %557 : vector<2x32xf32>
    %559 = math.exp %558 : vector<2x32xf32>
    %cst_161 = arith.constant 1.000000e+00 : f32
    %560 = vector.broadcast %cst_161 : f32 to vector<2x32xf32>
    %561 = arith.addf %560, %559 : vector<2x32xf32>
    %562 = arith.divf %560, %561 : vector<2x32xf32>
    %563 = vector.extract_strided_slice %544 {offsets = [0, 64], sizes = [2, 32], strides = [1, 1]} : vector<2x128xf32> to vector<2x32xf32>
    %564 = math.tanh %563 : vector<2x32xf32>
    %565 = vector.extract_strided_slice %544 {offsets = [0, 96], sizes = [2, 32], strides = [1, 1]} : vector<2x128xf32> to vector<2x32xf32>
    %566 = arith.negf %565 : vector<2x32xf32>
    %567 = math.exp %566 : vector<2x32xf32>
    %cst_162 = arith.constant 1.000000e+00 : f32
    %568 = vector.broadcast %cst_162 : f32 to vector<2x32xf32>
    %569 = arith.addf %568, %567 : vector<2x32xf32>
    %570 = arith.divf %568, %569 : vector<2x32xf32>
    %571 = arith.mulf %562, %500 : vector<2x32xf32>
    %572 = arith.mulf %556, %564 : vector<2x32xf32>
    %573 = arith.addf %571, %572 : vector<2x32xf32>
    %574 = math.tanh %573 : vector<2x32xf32>
    %575 = arith.mulf %570, %574 : vector<2x32xf32>
    %576 = vector.extract_strided_slice %550 {offsets = [0, 0], sizes = [2, 32], strides = [1, 1]} : vector<2x128xf32> to vector<2x32xf32>
    %577 = arith.negf %576 : vector<2x32xf32>
    %578 = math.exp %577 : vector<2x32xf32>
    %cst_163 = arith.constant 1.000000e+00 : f32
    %579 = vector.broadcast %cst_163 : f32 to vector<2x32xf32>
    %580 = arith.addf %579, %578 : vector<2x32xf32>
    %581 = arith.divf %579, %580 : vector<2x32xf32>
    %582 = vector.extract_strided_slice %550 {offsets = [0, 32], sizes = [2, 32], strides = [1, 1]} : vector<2x128xf32> to vector<2x32xf32>
    %583 = arith.negf %582 : vector<2x32xf32>
    %584 = math.exp %583 : vector<2x32xf32>
    %cst_164 = arith.constant 1.000000e+00 : f32
    %585 = vector.broadcast %cst_164 : f32 to vector<2x32xf32>
    %586 = arith.addf %585, %584 : vector<2x32xf32>
    %587 = arith.divf %585, %586 : vector<2x32xf32>
    %588 = vector.extract_strided_slice %550 {offsets = [0, 64], sizes = [2, 32], strides = [1, 1]} : vector<2x128xf32> to vector<2x32xf32>
    %589 = math.tanh %588 : vector<2x32xf32>
    %590 = vector.extract_strided_slice %550 {offsets = [0, 96], sizes = [2, 32], strides = [1, 1]} : vector<2x128xf32> to vector<2x32xf32>
    %591 = arith.negf %590 : vector<2x32xf32>
    %592 = math.exp %591 : vector<2x32xf32>
    %cst_165 = arith.constant 1.000000e+00 : f32
    %593 = vector.broadcast %cst_165 : f32 to vector<2x32xf32>
    %594 = arith.addf %593, %592 : vector<2x32xf32>
    %595 = arith.divf %593, %594 : vector<2x32xf32>
    %596 = arith.mulf %587, %525 : vector<2x32xf32>
    %597 = arith.mulf %581, %589 : vector<2x32xf32>
    %598 = arith.addf %596, %597 : vector<2x32xf32>
    %599 = math.tanh %598 : vector<2x32xf32>
    %600 = arith.mulf %595, %599 : vector<2x32xf32>
    %601 = arith.truncf %575 : vector<2x32xf32> to vector<2x32xbf16>
    %602 = arith.index_cast %c7_i32_152 : i32 to index
    %c0_166 = arith.constant 0 : index
    %c0_167 = arith.constant 0 : index
    %603 = vector.load %arg9[%602, %c0_166, %c0_167] : memref<8x2x32xbf16, #tpu.memory_space<vmem>>, vector<1x2x32xbf16>
    %604 = vector.shape_cast %603 : vector<1x2x32xbf16> to vector<2x32xbf16>
    %605 = vector.shape_cast %601 : vector<2x32xbf16> to vector<1x2x32xbf16>
    tpu.vector_store %arg9[%602, %c0_166, %c0_167], %605 {strides = array<i32>} : memref<8x2x32xbf16, #tpu.memory_space<vmem>>, vector<1x2x32xbf16>,
    %606 = arith.truncf %600 : vector<2x32xf32> to vector<2x32xbf16>
    %607 = arith.index_cast %538 : i32 to index
    %c0_168 = arith.constant 0 : index
    %c0_169 = arith.constant 0 : index
    %608 = vector.load %arg10[%607, %c0_168, %c0_169] : memref<8x2x32xbf16, #tpu.memory_space<vmem>>, vector<1x2x32xbf16>
    %609 = vector.shape_cast %608 : vector<1x2x32xbf16> to vector<2x32xbf16>
    %610 = vector.shape_cast %606 : vector<2x32xbf16> to vector<1x2x32xbf16>
    tpu.vector_store %arg10[%607, %c0_168, %c0_169], %610 {strides = array<i32>} : memref<8x2x32xbf16, #tpu.memory_space<vmem>>, vector<1x2x32xbf16>,
    %c8_i32 = arith.constant 8 : i32
    %c0_170 = arith.constant 0 : index
    %c0_171 = arith.constant 0 : index
    %611 = vector.load %arg13[%c0_170, %c0_171] : memref<2x32xf32, #tpu.memory_space<vmem>>, vector<2x32xf32>
    tpu.vector_store %arg13[%c0_170, %c0_171], %575 {strides = array<i32>} : memref<2x32xf32, #tpu.memory_space<vmem>>, vector<2x32xf32>,
    %c0_172 = arith.constant 0 : index
    %c0_173 = arith.constant 0 : index
    %612 = vector.load %arg14[%c0_172, %c0_173] : memref<2x32xf32, #tpu.memory_space<vmem>>, vector<2x32xf32>
    tpu.vector_store %arg14[%c0_172, %c0_173], %573 {strides = array<i32>} : memref<2x32xf32, #tpu.memory_space<vmem>>, vector<2x32xf32>,
    %c0_174 = arith.constant 0 : index
    %c0_175 = arith.constant 0 : index
    %613 = vector.load %arg15[%c0_174, %c0_175] : memref<2x32xf32, #tpu.memory_space<vmem>>, vector<2x32xf32>
    tpu.vector_store %arg15[%c0_174, %c0_175], %600 {strides = array<i32>} : memref<2x32xf32, #tpu.memory_space<vmem>>, vector<2x32xf32>,
    %c0_176 = arith.constant 0 : index
    %c0_177 = arith.constant 0 : index
    %614 = vector.load %arg16[%c0_176, %c0_177] : memref<2x32xf32, #tpu.memory_space<vmem>>, vector<2x32xf32>
    tpu.vector_store %arg16[%c0_176, %c0_177], %598 {strides = array<i32>} : memref<2x32xf32, #tpu.memory_space<vmem>>, vector<2x32xf32>,
    return
  }
  func.func @transform_0(%arg0: i32) -> (i32, i32, i32) {
    %c0_i32 = arith.constant 0 : i32
    %c0_i32_0 = arith.constant 0 : i32
    %c0_i32_1 = arith.constant 0 : i32
    return %arg0, %c0_i32, %c0_i32_0 : i32, i32, i32
  }
  func.func @transform_1(%arg0: i32) -> (i32, i32, i32) {
    %c0_i32 = arith.constant 0 : i32
    %0 = arith.subi %c0_i32, %arg0 : i32
    %c0_i32_0 = arith.constant 0 : i32
    %c0_i32_1 = arith.constant 0 : i32
    %c0_i32_2 = arith.constant 0 : i32
    return %0, %c0_i32_0, %c0_i32_1 : i32, i32, i32
  }
  func.func @transform_2(%arg0: i32) -> (i32, i32) {
    %c0_i32 = arith.constant 0 : i32
    %c0_i32_0 = arith.constant 0 : i32
    %c0_i32_1 = arith.constant 0 : i32
    return %c0_i32, %c0_i32_0 : i32, i32
  }
  func.func @transform_3(%arg0: i32) -> (i32, i32) {
    %c0_i32 = arith.constant 0 : i32
    %c0_i32_0 = arith.constant 0 : i32
    %c0_i32_1 = arith.constant 0 : i32
    return %c0_i32, %c0_i32_0 : i32, i32
  }
  func.func @transform_4(%arg0: i32) -> (i32, i32) {
    %c0_i32 = arith.constant 0 : i32
    %c0_i32_0 = arith.constant 0 : i32
    %c0_i32_1 = arith.constant 0 : i32
    return %c0_i32, %c0_i32_0 : i32, i32
  }
  func.func @transform_5(%arg0: i32) -> (i32, i32) {
    %c0_i32 = arith.constant 0 : i32
    %c0_i32_0 = arith.constant 0 : i32
    %c0_i32_1 = arith.constant 0 : i32
    return %c0_i32, %c0_i32_0 : i32, i32
  }
  func.func @transform_6(%arg0: i32) -> (i32, i32) {
    %c0_i32 = arith.constant 0 : i32
    %c0_i32_0 = arith.constant 0 : i32
    %c0_i32_1 = arith.constant 0 : i32
    return %c0_i32, %c0_i32_0 : i32, i32
  }
  func.func @transform_7(%arg0: i32) -> (i32, i32) {
    %c0_i32 = arith.constant 0 : i32
    %c0_i32_0 = arith.constant 0 : i32
    %c0_i32_1 = arith.constant 0 : i32
    return %c0_i32, %c0_i32_0 : i32, i32
  }
  func.func @transform_8(%arg0: i32) -> (i32, i32, i32) {
    %c0_i32 = arith.constant 0 : i32
    %c0_i32_0 = arith.constant 0 : i32
    %c0_i32_1 = arith.constant 0 : i32
    return %arg0, %c0_i32, %c0_i32_0 : i32, i32, i32
  }
  func.func @transform_9(%arg0: i32) -> (i32, i32, i32) {
    %c0_i32 = arith.constant 0 : i32
    %0 = arith.subi %c0_i32, %arg0 : i32
    %c0_i32_0 = arith.constant 0 : i32
    %c0_i32_1 = arith.constant 0 : i32
    %c0_i32_2 = arith.constant 0 : i32
    return %0, %c0_i32_0, %c0_i32_1 : i32, i32, i32
  }
}

</mosaic_0001>

<llo_original>
// kernel: lstm_encoder_forward.2
$region0: #{lstm_encoder_forward.2}
  #allocation0 [shape = 'u32[]', space=smem, size = 0x4, offset = 0x4, fixed_abs, tag = 'smem constant byte address 0x4 - core index']
  #allocation1 [shape = 'u32[144,128]{1,0:T(1,128)}', space=vmem, size = 0x12000, scoped, tag = 'internal scratch']
  #allocation2 [shape = 'f32[8,2,128]{2,1,0:T(2,128)}', space=vmem, size = 0x2000, scoped, tag = 'scratch operand']
  #allocation3 [shape = 'f32[8,2,128]{2,1,0:T(2,128)}', space=vmem, size = 0x2000, scoped, tag = 'scratch operand']
  #allocation4 [shape = 'f32[2,32]{1,0:T(2,128)}', space=vmem, size = 0x400, scoped, tag = 'scratch operand']
  #allocation5 [shape = 'f32[2,32]{1,0:T(2,128)}', space=vmem, size = 0x400, scoped, tag = 'scratch operand']
  #allocation6 [shape = 'f32[2,32]{1,0:T(2,128)}', space=vmem, size = 0x400, scoped, tag = 'scratch operand']
  #allocation7 [shape = 'f32[2,32]{1,0:T(2,128)}', space=vmem, size = 0x400, scoped, tag = 'scratch operand']
  %s0 = inlined_call_operand.vmem [shape: bf16[8,2,32], index: 0, kind: input, shape index: {}, may-alias: {0,1}]
  %s1 = inlined_call_operand.vmem [shape: bf16[8,2,32], index: 1, kind: input, shape index: {}, may-alias: {0,1}]
  %s2 = inlined_call_operand.vmem [shape: bf16[32,128], index: 2, kind: input, shape index: {}]
  %s3 = inlined_call_operand.vmem [shape: bf16[32,128], index: 3, kind: input, shape index: {}]
  %s4 = inlined_call_operand.vmem [shape: f32[1,128], index: 4, kind: input, shape index: {}]
  %s5 = inlined_call_operand.vmem [shape: f32[1,128], index: 5, kind: input, shape index: {}]
  %s6 = inlined_call_operand.hbm [shape: bf16[32,128], index: 6, kind: input, shape index: {}]
  %s7 = inlined_call_operand.hbm [shape: bf16[32,128], index: 7, kind: input, shape index: {}]
  %s8 = inlined_call_operand.vmem [shape: bf16[8,2,32], index: 8, kind: output, shape index: {0}]
  %s9 = inlined_call_operand.vmem [shape: bf16[8,2,32], index: 9, kind: output, shape index: {1}]
  %10 = xla_tuple %s8, %s9
  %s11 = sld [smem:[#allocation0]]
  $region62: #{lstm_encoder_forward.2} parent=0
    _
  %s13 = ssub.s32 1, %s11
  %s14 = scalar_select 0, %s13, %s11
  $region1: #{lstm_encoder_forward.2} parent=0
    #allocation8 [shape = 'u8[8192]{0}', space=vmem, size = 0x2000, scoped, tag = 'input window, operand 6, single buffered']
    #allocation9 [shape = 's32[1]{0}', space=sflag, size = 0x4, scoped, tag = 'scoped memory for lstm_encoder_forward.2']
    #allocation10 [shape = 'u8[8192]{0}', space=vmem, size = 0x2000, scoped, tag = 'input window, operand 7, single buffered']
    #allocation11 [shape = 's32[1]{0}', space=sflag, size = 0x4, scoped, tag = 'scoped memory for lstm_encoder_forward.2']
    %15 = vsyncpa [#allocation9], 0
    %16 = vsyncpa [#allocation11], 0
    // Predicated region
    $region2: #{lstm_encoder_forward.2} parent=1 // pred_check
      _
    $region3: #{lstm_encoder_forward.2} parent=1 // pred_check_branch
      %18 = sbr.rel (0) target = $region5
    $region4: #{lstm_encoder_forward.2} parent=1 // pred_region
      _
    $region5: #{lstm_encoder_forward.2} parent=1 // pred_fallthru
      _
    // Predicated region
    $region6: #{lstm_encoder_forward.2} parent=1 // pred_check
      _
    $region7: #{lstm_encoder_forward.2} parent=1 // pred_check_branch
      %20 = sbr.rel (0) target = $region9
    $region8: #{lstm_encoder_forward.2} parent=1 // pred_region
      %s21 = ssub.s32 0, 0
      %s22 = smul.u32 8, %s21
      %p23 = scmp.lt.s32.totalorder %s22, 7
      %s24 = scalar_select %p23, %s22, 7
      %s25 = scalar_lea.vmem %s1, %s24
      %s26 = ssub.s32 0, 0
      %s27 = smul.u32 8, %s26
    $region9: #{lstm_encoder_forward.2} parent=1 // pred_fallthru
      _
    // Predicated region
    $region10: #{lstm_encoder_forward.2} parent=1 // pred_check
      _
    $region11: #{lstm_encoder_forward.2} parent=1 // pred_check_branch
      %29 = sbr.rel (0) target = $region13
    $region12: #{lstm_encoder_forward.2} parent=1 // pred_region
      _
    $region13: #{lstm_encoder_forward.2} parent=1 // pred_fallthru
      _
    // Predicated region
    $region14: #{lstm_encoder_forward.2} parent=1 // pred_check
      _
    $region15: #{lstm_encoder_forward.2} parent=1 // pred_check_branch
      %31 = sbr.rel (0) target = $region17
    $region16: #{lstm_encoder_forward.2} parent=1 // pred_region
      _
    $region17: #{lstm_encoder_forward.2} parent=1 // pred_fallthru
      _
    // Predicated region
    $region18: #{lstm_encoder_forward.2} parent=1 // pred_check
      _
    $region19: #{lstm_encoder_forward.2} parent=1 // pred_check_branch
      %33 = sbr.rel (0) target = $region21
    $region20: #{lstm_encoder_forward.2} parent=1 // pred_region
      _
    $region21: #{lstm_encoder_forward.2} parent=1 // pred_fallthru
      _
    // Predicated region
    $region22: #{lstm_encoder_forward.2} parent=1 // pred_check
      _
    $region23: #{lstm_encoder_forward.2} parent=1 // pred_check_branch
      %35 = sbr.rel (0) target = $region25
    $region24: #{lstm_encoder_forward.2} parent=1 // pred_region
      _
    $region25: #{lstm_encoder_forward.2} parent=1 // pred_fallthru
      _
    // Predicated region
    $region26: #{lstm_encoder_forward.2} parent=1 // pred_check
      _
    $region27: #{lstm_encoder_forward.2} parent=1 // pred_check_branch
      %37 = sbr.rel (0) target = $region29
    $region28: #{lstm_encoder_forward.2} parent=1 // pred_region
      %s39 = ssub.s32 256, 256
      %40 = vsyncadd [#allocation9], %s39
      %s41 = sshll.u32 [#allocation8], 4
      %s42 = int_to_ptr.vmem [resolvable:$true] %s41
      %47 = dma.hbm_to_vmem [thread:$0]  %s6, 256, %s42, [#allocation9], 64, 64, 4
    $region29: #{lstm_encoder_forward.2} parent=1 // pred_fallthru
      _
    // Predicated region
    $region30: #{lstm_encoder_forward.2} parent=1 // pred_check
      _
    $region31: #{lstm_encoder_forward.2} parent=1 // pred_check_branch
      %49 = sbr.rel (0) target = $region33
    $region32: #{lstm_encoder_forward.2} parent=1 // pred_region
      %s51 = ssub.s32 256, 256
      %52 = vsyncadd [#allocation11], %s51
      %s53 = sshll.u32 [#allocation10], 4
      %s54 = int_to_ptr.vmem [resolvable:$true] %s53
      %59 = dma.hbm_to_vmem [thread:$0]  %s7, 256, %s54, [#allocation11], 64, 64, 4
    $region33: #{lstm_encoder_forward.2} parent=1 // pred_fallthru
      _
    // Predicated region
    $region34: #{lstm_encoder_forward.2} parent=1 // pred_check
      _
    $region35: #{lstm_encoder_forward.2} parent=1 // pred_check_branch
      %61 = sbr.rel (0) target = $region37
    $region36: #{lstm_encoder_forward.2} parent=1 // pred_region
      %62 = dma.done [#allocation9], 256
    $region37: #{lstm_encoder_forward.2} parent=1 // pred_fallthru
      _
    // Predicated region
    $region38: #{lstm_encoder_forward.2} parent=1 // pred_check
      _
    $region39: #{lstm_encoder_forward.2} parent=1 // pred_check_branch
      %64 = sbr.rel (0) target = $region41
    $region40: #{lstm_encoder_forward.2} parent=1 // pred_region
      %65 = dma.done [#allocation11], 256
    $region41: #{lstm_encoder_forward.2} parent=1 // pred_fallthru
      _
    %s66 = ssub.s32 0, 0
    %s67 = smul.u32 8, %s66
    %p68 = scmp.lt.s32.totalorder %s67, 7
    %s69 = scalar_select %p68, %s67, 7
    %s70 = scalar_lea.vmem %s1, %s69
    %s71 = ssub.s32 0, 0
    %s72 = smul.u32 8, %s71
    %p73 = scmp.lt.s32.totalorder %s72, 7
    %s74 = scalar_select %p73, %s72, 7
    %s75 = scalar_lea.vmem %s9, %s74
    %s76 = ssub.s32 0, 0
    %s77 = smul.u32 8, %s76
    %p78 = scmp.lt.s32.totalorder %s77, 7
    %s79 = scalar_select %p78, %s77, 7
    %s80 = scalar_lea.vmem %s1, %s79
    %s81 = ssub.s32 0, 0
    %s82 = smul.u32 8, %s81
    %s83 = ssub.s32 0, 0
    %s84 = smul.u32 8, %s83
    %p85 = scmp.lt.s32.totalorder %s84, 7
    %s86 = scalar_select %p85, %s84, 7
    %s87 = scalar_lea.vmem %s9, %s86
    %s88 = ssub.s32 0, 0
    %s89 = smul.u32 8, %s88
    %p91 = scmp.eq.s32.totalorder 0, 0
    // Predicated region
    $region42: #{lstm_encoder_forward.2} parent=1 // pred_check
      %p92 = pneg %p91
    $region43: #{lstm_encoder_forward.2} parent=1 // pred_check_branch
      %94 = sbr.rel (%p92) target = $region45
    $region44: #{lstm_encoder_forward.2} parent=1 // pred_region
      %vm95 = vcmask 254976
      %96 = vst.msk [vmem:[#allocation4] sm:$0x3] %vm95, 0.0
      %97 = vst.msk [vmem:[#allocation5] sm:$0x3] %vm95, 0.0
      %98 = vst.msk [vmem:[#allocation6] sm:$0x3] %vm95, 0.0
      %99 = vst.msk [vmem:[#allocation7] sm:$0x3] %vm95, 0.0
    $region45: #{lstm_encoder_forward.2} parent=1 // pred_fallthru
      _
    %v100 = vld [vmem:[%s0] sm:$0x1]
    %v101 = vld [vmem:[%s0 + $0x1] sm:$0x1]
    %v102 = vld [vmem:[%s0 + $0x2] sm:$0x1]
    %v103 = vld [vmem:[%s0 + $0x3] sm:$0x1]
    %v104 = vld [vmem:[%s0 + $0x4] sm:$0x1]
    %v105 = vld [vmem:[%s0 + $0x5] sm:$0x1]
    %v106 = vld [vmem:[%s0 + $0x6] sm:$0x1]
    %v107 = vld [vmem:[%s0 + $0x7] sm:$0x1]
    %v108 = vld [vmem:[%s80] sm:$0x1]
    %v109 = vld [vmem:[%s80 + $0x1] sm:$0x1]
    %v110 = vld [vmem:[%s80 + $0x2] sm:$0x1]
    %v111 = vld [vmem:[%s80 + $0x3] sm:$0x1]
    %v112 = vld [vmem:[%s80 + $0x4] sm:$0x1]
    %v113 = vld [vmem:[%s80 + $0x5] sm:$0x1]
    %v114 = vld [vmem:[%s80 + $0x6] sm:$0x1]
    %v115 = vld [vmem:[%s80 + $0x7] sm:$0x1]
    %v116 = vld [vmem:[%s2] sm:$0xf]
    %v117 = vld [vmem:[%s2 + $0x4] sm:$0xf]
    %v118 = vld [vmem:[%s2 + $0x8] sm:$0xf]
    %v119 = vld [vmem:[%s2 + $0xc] sm:$0xf]
    %v120 = vld [vmem:[%s4] sm:$0x1]
    %v122 = vlaneseq
    %v123 = vshrl.u32 %v122, 7
    %v124 = vsub.s32 0, %v123
    %v125 = vrot.slane %v120, %v124
    %v135 = vcombine.low %v100, %v101
    %v136 = vcombine.low %v102, %v103
    %v137 = vcombine.low %v104, %v105
    %v138 = vcombine.low %v106, %v107
    %v140 = vunpack.c.l.s4 1966171168
    %v141 = vunpack.c.0.s8 %v140
    %v142 = vlaneseq
    %v143 = vshrl.u32 %v142, 7
    %v144 = vsub.s32 %v141, %v143
    %v145 = vrot.slane %v135, %v144
    %v147 = vunpack.c.l.s4 1966171168
    %v148 = vunpack.c.0.s8 %v147
    %v149 = vlaneseq
    %v150 = vshrl.u32 %v149, 7
    %v151 = vsub.s32 %v148, %v150
    %v152 = vrot.slane %v136, %v151
    %v154 = vunpack.c.l.s4 1966171168
    %v155 = vunpack.c.0.s8 %v154
    %v156 = vlaneseq
    %v157 = vshrl.u32 %v156, 7
    %v158 = vsub.s32 %v155, %v157
    %v159 = vrot.slane %v137, %v158
    %v161 = vunpack.c.l.s4 1966171168
    %v162 = vunpack.c.0.s8 %v161
    %v163 = vlaneseq
    %v164 = vshrl.u32 %v163, 7
    %v165 = vsub.s32 %v162, %v164
    %v166 = vrot.slane %v138, %v165
    %v167 = vcombine.low %v145, %v152
    %v168 = vcombine.low %v159, %v166
    %v170 = vunpack.c.l.s4 1966171168
    %v171 = vunpack.c.0.s8 %v170
    %v172 = vlaneseq
    %v173 = vshrl.u32 %v172, 7
    %v174 = vsub.s32 %v171, %v173
    %v175 = vrot.slane %v167, %v174
    %v177 = vunpack.c.l.s4 1966171168
    %v178 = vunpack.c.0.s8 %v177
    %v179 = vlaneseq
    %v180 = vshrl.u32 %v179, 7
    %v181 = vsub.s32 %v178, %v180
    %v182 = vrot.slane %v168, %v181
    %v183 = vcombine.low %v175, %v182
    %v188 = vunpack.c.l.b16 %v116
    %v189 = vunpack.c.l.b16 %v117
    %v190 = vunpack.c.l.b16 %v118
    %v191 = vunpack.c.l.b16 %v119
    %v192 = vpack.c.b16 %v189, %v188
    %v193 = vpack.c.b16 %v191, %v190
    %vm196 = vcmask 261120
    %v198 = vsel %vm196, %v183, 0
    %200 = vmatprep.subr.bf16.mxu0 0
    %201 = vmatpush1.bf16.msra.mxu0 %v192
    %202 = vmatprep.subr.bf16.mxu0 0
    %203 = vmatpush1.bf16.msra.mxu0 %v193
    %204 = vmatprep.subr.bf16.mxu0 0
    %205 = vmatpush1.bf16.msra.mxu0 0
    %206 = vmatprep.subr.bf16.mxu0 0
    %207 = vmatpush1.bf16.msra.mxu0 0
    %208 = vmatprep.subr.bf16.mxu0 0
    %209 = vmatpush1.bf16.msra.mxu0 0
    %210 = vmatprep.subr.bf16.mxu0 0
    %211 = vmatpush1.bf16.msra.mxu0 0
    %212 = vmatprep.subr.bf16.mxu0 0
    %213 = vmatpush1.bf16.msra.mxu0 0
    %214 = vmatprep.subr.bf16.mxu0 0
    %215 = vmatpush1.bf16.msra.mxu0 0
    %216 = vmatprep.subr.bf16.mxu0 0
    %217 = vmatpush1.bf16.msra.mxu0 0
    %218 = vmatprep.subr.bf16.mxu0 0
    %219 = vmatpush1.bf16.msra.mxu0 0
    %220 = vmatprep.subr.bf16.mxu0 0
    %221 = vmatpush1.bf16.msra.mxu0 0
    %222 = vmatprep.subr.bf16.mxu0 0
    %223 = vmatpush1.bf16.msra.mxu0 0
    %224 = vmatprep.subr.bf16.mxu0 0
    %225 = vmatpush1.bf16.msra.mxu0 0
    %226 = vmatprep.subr.bf16.mxu0 0
    %227 = vmatpush1.bf16.msra.mxu0 0
    %228 = vmatprep.subr.bf16.mxu0 0
    %229 = vmatpush1.bf16.msra.mxu0 0
    %230 = vmatprep.subr.bf16.mxu0 0
    %231 = vmatpush1.bf16.msra.mxu0 0
    %232 = vmatprep.mubr.bf16.mxu0 0
    %233 = vmatmul.mubr.bf16.gmra.mrb[0].mxu0 %v198
    %v234 = vpop.f32.mrb[0].mxu0
    %v235 = vadd.f32 %v125, %v234
    %v236 = vpop.f32.mrb[0].mxu0
    %v237 = vpop.f32.mrb[0].mxu0
    %v238 = vadd.f32 %v125, %v237
    %v239 = vpop.f32.mrb[0].mxu0
    %240 = vdwg.mxu0
    %v243 = vcombine.high %v235, %v235
    %v245 = vunpack.c.l.s4 1983009808
    %v246 = vunpack.c.0.s8 %v245
    %v247 = vlaneseq
    %v248 = vshrl.u32 %v247, 7
    %v249 = vsub.s32 %v246, %v248
    %v250 = vrot.slane %v235, %v249
    %v252 = vunpack.c.l.s4 1983009808
    %v253 = vunpack.c.0.s8 %v252
    %v254 = vlaneseq
    %v255 = vshrl.u32 %v254, 7
    %v256 = vsub.s32 %v253, %v255
    %v257 = vrot.slane %v243, %v256
    %v258 = vcombine.high %v250, %v250
    %v259 = vcombine.high %v257, %v257
    %v260 = vcombine.high %v238, %v238
    %v262 = vunpack.c.l.s4 1983009808
    %v263 = vunpack.c.0.s8 %v262
    %v264 = vlaneseq
    %v265 = vshrl.u32 %v264, 7
    %v266 = vsub.s32 %v263, %v265
    %v267 = vrot.slane %v238, %v266
    %v269 = vunpack.c.l.s4 1983009808
    %v270 = vunpack.c.0.s8 %v269
    %v271 = vlaneseq
    %v272 = vshrl.u32 %v271, 7
    %v273 = vsub.s32 %v270, %v272
    %v274 = vrot.slane %v260, %v273
    %v275 = vcombine.high %v267, %v267
    %v276 = vcombine.high %v274, %v274
    %285 = vst [vmem:[#allocation2] sm:$0x3] %v250
    %286 = vst [vmem:[#allocation2 + $0x2] sm:$0x3] %v258
    %287 = vst [vmem:[#allocation2 + $0x4] sm:$0x3] %v257
    %288 = vst [vmem:[#allocation2 + $0x6] sm:$0x3] %v259
    %289 = vst [vmem:[#allocation2 + $0x8] sm:$0x3] %v267
    %290 = vst [vmem:[#allocation2 + $0xa] sm:$0x3] %v275
    %291 = vst [vmem:[#allocation2 + $0xc] sm:$0x3] %v274
    %292 = vst [vmem:[#allocation2 + $0xe] sm:$0x3] %v276
    %v293 = vld [vmem:[%s3] sm:$0xf]
    %v294 = vld [vmem:[%s3 + $0x4] sm:$0xf]
    %v295 = vld [vmem:[%s3 + $0x8] sm:$0xf]
    %v296 = vld [vmem:[%s3 + $0xc] sm:$0xf]
    %v297 = vld [vmem:[%s5] sm:$0x1]
    %v299 = vlaneseq
    %v300 = vshrl.u32 %v299, 7
    %v301 = vsub.s32 0, %v300
    %v302 = vrot.slane %v297, %v301
    %v312 = vcombine.low %v108, %v109
    %v313 = vcombine.low %v110, %v111
    %v314 = vcombine.low %v112, %v113
    %v315 = vcombine.low %v114, %v115
    %v317 = vunpack.c.l.s4 1966171168
    %v318 = vunpack.c.0.s8 %v317
    %v319 = vlaneseq
    %v320 = vshrl.u32 %v319, 7
    %v321 = vsub.s32 %v318, %v320
    %v322 = vrot.slane %v312, %v321
    %v324 = vunpack.c.l.s4 1966171168
    %v325 = vunpack.c.0.s8 %v324
    %v326 = vlaneseq
    %v327 = vshrl.u32 %v326, 7
    %v328 = vsub.s32 %v325, %v327
    %v329 = vrot.slane %v313, %v328
    %v331 = vunpack.c.l.s4 1966171168
    %v332 = vunpack.c.0.s8 %v331
    %v333 = vlaneseq
    %v334 = vshrl.u32 %v333, 7
    %v335 = vsub.s32 %v332, %v334
    %v336 = vrot.slane %v314, %v335
    %v338 = vunpack.c.l.s4 1966171168
    %v339 = vunpack.c.0.s8 %v338
    %v340 = vlaneseq
    %v341 = vshrl.u32 %v340, 7
    %v342 = vsub.s32 %v339, %v341
    %v343 = vrot.slane %v315, %v342
    %v344 = vcombine.low %v322, %v329
    %v345 = vcombine.low %v336, %v343
    %v347 = vunpack.c.l.s4 1966171168
    %v348 = vunpack.c.0.s8 %v347
    %v349 = vlaneseq
    %v350 = vshrl.u32 %v349, 7
    %v351 = vsub.s32 %v348, %v350
    %v352 = vrot.slane %v344, %v351
    %v354 = vunpack.c.l.s4 1966171168
    %v355 = vunpack.c.0.s8 %v354
    %v356 = vlaneseq
    %v357 = vshrl.u32 %v356, 7
    %v358 = vsub.s32 %v355, %v357
    %v359 = vrot.slane %v345, %v358
    %v360 = vcombine.low %v352, %v359
    %v365 = vunpack.c.l.b16 %v293
    %v366 = vunpack.c.l.b16 %v294
    %v367 = vunpack.c.l.b16 %v295
    %v368 = vunpack.c.l.b16 %v296
    %v369 = vpack.c.b16 %v366, %v365
    %v370 = vpack.c.b16 %v368, %v367
    %v374 = vsel %vm196, %v360, 0
    %376 = vmatprep.subr.bf16.mxu0 0
    %377 = vmatpush1.bf16.msra.mxu0 %v369
    %378 = vmatprep.subr.bf16.mxu0 0
    %379 = vmatpush1.bf16.msra.mxu0 %v370
    %380 = vmatprep.subr.bf16.mxu0 0
    %381 = vmatpush1.bf16.msra.mxu0 0
    %382 = vmatprep.subr.bf16.mxu0 0
    %383 = vmatpush1.bf16.msra.mxu0 0
    %384 = vmatprep.subr.bf16.mxu0 0
    %385 = vmatpush1.bf16.msra.mxu0 0
    %386 = vmatprep.subr.bf16.mxu0 0
    %387 = vmatpush1.bf16.msra.mxu0 0
    %388 = vmatprep.subr.bf16.mxu0 0
    %389 = vmatpush1.bf16.msra.mxu0 0
    %390 = vmatprep.subr.bf16.mxu0 0
    %391 = vmatpush1.bf16.msra.mxu0 0
    %392 = vmatprep.subr.bf16.mxu0 0
    %393 = vmatpush1.bf16.msra.mxu0 0
    %394 = vmatprep.subr.bf16.mxu0 0
    %395 = vmatpush1.bf16.msra.mxu0 0
    %396 = vmatprep.subr.bf16.mxu0 0
    %397 = vmatpush1.bf16.msra.mxu0 0
    %398 = vmatprep.subr.bf16.mxu0 0
    %399 = vmatpush1.bf16.msra.mxu0 0
    %400 = vmatprep.subr.bf16.mxu0 0
    %401 = vmatpush1.bf16.msra.mxu0 0
    %402 = vmatprep.subr.bf16.mxu0 0
    %403 = vmatpush1.bf16.msra.mxu0 0
    %404 = vmatprep.subr.bf16.mxu0 0
    %405 = vmatpush1.bf16.msra.mxu0 0
    %406 = vmatprep.subr.bf16.mxu0 0
    %407 = vmatpush1.bf16.msra.mxu0 0
    %408 = vmatprep.mubr.bf16.mxu0 0
    %409 = vmatmul.mubr.bf16.gmra.mrb[0].mxu0 %v374
    %v410 = vpop.f32.mrb[0].mxu0
    %v411 = vadd.f32 %v302, %v410
    %v412 = vpop.f32.mrb[0].mxu0
    %v413 = vpop.f32.mrb[0].mxu0
    %v414 = vadd.f32 %v302, %v413
    %v415 = vpop.f32.mrb[0].mxu0
    %416 = vdwg.mxu0
    %v419 = vcombine.high %v411, %v411
    %v421 = vunpack.c.l.s4 1983009808
    %v422 = vunpack.c.0.s8 %v421
    %v423 = vlaneseq
    %v424 = vshrl.u32 %v423, 7
    %v425 = vsub.s32 %v422, %v424
    %v426 = vrot.slane %v411, %v425
    %v428 = vunpack.c.l.s4 1983009808
    %v429 = vunpack.c.0.s8 %v428
    %v430 = vlaneseq
    %v431 = vshrl.u32 %v430, 7
    %v432 = vsub.s32 %v429, %v431
    %v433 = vrot.slane %v419, %v432
    %v434 = vcombine.high %v426, %v426
    %v435 = vcombine.high %v433, %v433
    %v436 = vcombine.high %v414, %v414
    %v438 = vunpack.c.l.s4 1983009808
    %v439 = vunpack.c.0.s8 %v438
    %v440 = vlaneseq
    %v441 = vshrl.u32 %v440, 7
    %v442 = vsub.s32 %v439, %v441
    %v443 = vrot.slane %v414, %v442
    %v445 = vunpack.c.l.s4 1983009808
    %v446 = vunpack.c.0.s8 %v445
    %v447 = vlaneseq
    %v448 = vshrl.u32 %v447, 7
    %v449 = vsub.s32 %v446, %v448
    %v450 = vrot.slane %v436, %v449
    %v451 = vcombine.high %v443, %v443
    %v452 = vcombine.high %v450, %v450
    %461 = vst [vmem:[#allocation3] sm:$0x3] %v426
    %462 = vst [vmem:[#allocation3 + $0x2] sm:$0x3] %v434
    %463 = vst [vmem:[#allocation3 + $0x4] sm:$0x3] %v433
    %464 = vst [vmem:[#allocation3 + $0x6] sm:$0x3] %v435
    %465 = vst [vmem:[#allocation3 + $0x8] sm:$0x3] %v443
    %466 = vst [vmem:[#allocation3 + $0xa] sm:$0x3] %v451
    %467 = vst [vmem:[#allocation3 + $0xc] sm:$0x3] %v450
    %468 = vst [vmem:[#allocation3 + $0xe] sm:$0x3] %v452
    %v469 = vld [vmem:[#allocation8] sm:$0xf]
    %v470 = vld [vmem:[#allocation8 + $0x4] sm:$0xf]
    %v471 = vld [vmem:[#allocation8 + $0x8] sm:$0xf]
    %v472 = vld [vmem:[#allocation8 + $0xc] sm:$0xf]
    %v473 = vld [vmem:[#allocation10] sm:$0xf]
    %v474 = vld [vmem:[#allocation10 + $0x4] sm:$0xf]
    %v475 = vld [vmem:[#allocation10 + $0x8] sm:$0xf]
    %v476 = vld [vmem:[#allocation10 + $0xc] sm:$0xf]
    %v477 = vld [vmem:[#allocation4] sm:$0x3]
    %v478 = vld [vmem:[#allocation5] sm:$0x3]
    %v479 = vld [vmem:[#allocation6] sm:$0x3]
    %v480 = vld [vmem:[#allocation7] sm:$0x3]
    %v481 = vld [vmem:[#allocation2] sm:$0x3]
    %v482 = vpack.c.bf16 %v477, %v477
    %v487 = vunpack.c.l.b16 %v469
    %v488 = vunpack.c.l.b16 %v470
    %v489 = vunpack.c.l.b16 %v471
    %v490 = vunpack.c.l.b16 %v472
    %v491 = vpack.c.b16 %v488, %v487
    %v492 = vpack.c.b16 %v490, %v489
    %v496 = vsel %vm196, %v482, 0
    %498 = vmatprep.subr.bf16.mxu0 0
    %499 = vmatpush1.bf16.msra.mxu0 %v491
    %500 = vmatprep.subr.bf16.mxu0 0
    %501 = vmatpush1.bf16.msra.mxu0 %v492
    %502 = vmatprep.subr.bf16.mxu0 0
    %503 = vmatpush1.bf16.msra.mxu0 0
    %504 = vmatprep.subr.bf16.mxu0 0
    %505 = vmatpush1.bf16.msra.mxu0 0
    %506 = vmatprep.subr.bf16.mxu0 0
    %507 = vmatpush1.bf16.msra.mxu0 0
    %508 = vmatprep.subr.bf16.mxu0 0
    %509 = vmatpush1.bf16.msra.mxu0 0
    %510 = vmatprep.subr.bf16.mxu0 0
    %511 = vmatpush1.bf16.msra.mxu0 0
    %512 = vmatprep.subr.bf16.mxu0 0
    %513 = vmatpush1.bf16.msra.mxu0 0
    %514 = vmatprep.subr.bf16.mxu0 0
    %515 = vmatpush1.bf16.msra.mxu0 0
    %516 = vmatprep.subr.bf16.mxu0 0
    %517 = vmatpush1.bf16.msra.mxu0 0
    %518 = vmatprep.subr.bf16.mxu0 0
    %519 = vmatpush1.bf16.msra.mxu0 0
    %520 = vmatprep.subr.bf16.mxu0 0
    %521 = vmatpush1.bf16.msra.mxu0 0
    %522 = vmatprep.subr.bf16.mxu0 0
    %523 = vmatpush1.bf16.msra.mxu0 0
    %524 = vmatprep.subr.bf16.mxu0 0
    %525 = vmatpush1.bf16.msra.mxu0 0
    %526 = vmatprep.subr.bf16.mxu0 0
    %527 = vmatpush1.bf16.msra.mxu0 0
    %528 = vmatprep.subr.bf16.mxu0 0
    %529 = vmatpush1.bf16.msra.mxu0 0
    %530 = vmatprep.mubr.bf16.mxu0 0
    %531 = vmatmul.mubr.bf16.gmra.mrb[0].mxu0 %v496
    %v532 = vpop.f32.mrb[0].mxu0
    %v533 = vadd.f32 0.0, %v532
    %v534 = vpop.f32.mrb[0].mxu0
    %v535 = vpop.f32.mrb[0].mxu0
    %v536 = vpop.f32.mrb[0].mxu0
    %537 = vdwg.mxu0
    %v538 = vadd.f32 %v481, %v533
    %s539 = scalar_lea.vmem [#allocation3], 14
    %v540 = vld [vmem:[%s539] sm:$0x3]
    %v541 = vpack.c.bf16 %v479, %v479
    %v546 = vunpack.c.l.b16 %v473
    %v547 = vunpack.c.l.b16 %v474
    %v548 = vunpack.c.l.b16 %v475
    %v549 = vunpack.c.l.b16 %v476
    %v550 = vpack.c.b16 %v547, %v546
    %v551 = vpack.c.b16 %v549, %v548
    %v555 = vsel %vm196, %v541, 0
    %557 = vmatprep.subr.bf16.mxu0 0
    %558 = vmatpush1.bf16.msra.mxu0 %v550
    %559 = vmatprep.subr.bf16.mxu0 0
    %560 = vmatpush1.bf16.msra.mxu0 %v551
    %561 = vmatprep.subr.bf16.mxu0 0
    %562 = vmatpush1.bf16.msra.mxu0 0
    %563 = vmatprep.subr.bf16.mxu0 0
    %564 = vmatpush1.bf16.msra.mxu0 0
    %565 = vmatprep.subr.bf16.mxu0 0
    %566 = vmatpush1.bf16.msra.mxu0 0
    %567 = vmatprep.subr.bf16.mxu0 0
    %568 = vmatpush1.bf16.msra.mxu0 0
    %569 = vmatprep.subr.bf16.mxu0 0
    %570 = vmatpush1.bf16.msra.mxu0 0
    %571 = vmatprep.subr.bf16.mxu0 0
    %572 = vmatpush1.bf16.msra.mxu0 0
    %573 = vmatprep.subr.bf16.mxu0 0
    %574 = vmatpush1.bf16.msra.mxu0 0
    %575 = vmatprep.subr.bf16.mxu0 0
    %576 = vmatpush1.bf16.msra.mxu0 0
    %577 = vmatprep.subr.bf16.mxu0 0
    %578 = vmatpush1.bf16.msra.mxu0 0
    %579 = vmatprep.subr.bf16.mxu0 0
    %580 = vmatpush1.bf16.msra.mxu0 0
    %581 = vmatprep.subr.bf16.mxu0 0
    %582 = vmatpush1.bf16.msra.mxu0 0
    %583 = vmatprep.subr.bf16.mxu0 0
    %584 = vmatpush1.bf16.msra.mxu0 0
    %585 = vmatprep.subr.bf16.mxu0 0
    %586 = vmatpush1.bf16.msra.mxu0 0
    %587 = vmatprep.subr.bf16.mxu0 0
    %588 = vmatpush1.bf16.msra.mxu0 0
    %589 = vmatprep.mubr.bf16.mxu0 0
    %590 = vmatmul.mubr.bf16.gmra.mrb[0].mxu0 %v555
    %v591 = vpop.f32.mrb[0].mxu0
    %v592 = vadd.f32 0.0, %v591
    %v593 = vpop.f32.mrb[0].mxu0
    %v594 = vpop.f32.mrb[0].mxu0
    %v595 = vpop.f32.mrb[0].mxu0
    %596 = vdwg.mxu0
    %v597 = vadd.f32 %v540, %v592
    %v598 = vxor.u32 %v538, 2147483648
    %v599 = vmul.f32 %v598, 1.442695
    %v600 = vpow.pop %v599
    %v601 = vadd.f32 %v600, 1.0
    %v602 = vrcp.pop %v601
    %v603 = vmul.f32 1.0, %v602
    %v604 = vtanh.pop %v538
    %606 = vrot.lane.b32.xlu0 %v478, 32
    %v607 = vpop.permute.xlu0 %606
    %v609 = vmul.f32 %v603, %v607
    %611 = vrot.lane.b32.xlu0 %v604, 64
    %v612 = vpop.permute.xlu0 %611
    %v614 = vmul.f32 %v603, %v612
    %616 = vrot.lane.b32.xlu0 %v614, 32
    %v617 = vpop.permute.xlu0 %616
    %v619 = vadd.f32 %v609, %v617
    %v620 = vtanh.pop %v619
    %622 = vrot.lane.b32.xlu0 %v620, 64
    %v623 = vpop.permute.xlu0 %622
    %v625 = vmul.f32 %v603, %v623
    %v626 = vxor.u32 %v597, 2147483648
    %v627 = vmul.f32 %v626, 1.442695
    %v628 = vpow.pop %v627
    %v629 = vadd.f32 %v628, 1.0
    %v630 = vrcp.pop %v629
    %v631 = vmul.f32 1.0, %v630
    %v632 = vtanh.pop %v597
    %634 = vrot.lane.b32.xlu0 %v480, 32
    %v635 = vpop.permute.xlu0 %634
    %v637 = vmul.f32 %v631, %v635
    %639 = vrot.lane.b32.xlu0 %v632, 64
    %v640 = vpop.permute.xlu0 %639
    %v642 = vmul.f32 %v631, %v640
    %644 = vrot.lane.b32.xlu0 %v642, 32
    %v645 = vpop.permute.xlu0 %644
    %v647 = vadd.f32 %v637, %v645
    %v648 = vtanh.pop %v647
    %650 = vrot.lane.b32.xlu0 %v648, 64
    %v651 = vpop.permute.xlu0 %650
    %v653 = vmul.f32 %v631, %v651
    %v654 = vpack.c.bf16 %v625, %v625
    %v657 = vunpack.c.l.s4 1966171168
    %v658 = vunpack.c.0.s8 %v657
    %v659 = vlaneseq
    %v660 = vshrl.u32 %v659, 7
    %v661 = vsub.s32 %v658, %v660
    %v662 = vrot.slane %v654, %v661
    %v664 = vunpack.c.l.s4 1966171168
    %v665 = vunpack.c.0.s8 %v664
    %v666 = vlaneseq
    %v667 = vshrl.u32 %v666, 7
    %v668 = vsub.s32 %v665, %v667
    %v669 = vrot.slane %v662, %v668
    %670 = vrot.lane.b32.xlu0 %v669, 32
    %v671 = vpop.permute.xlu0 %670
    %vm673 = vcmask 253952
    %674 = vst.msk [vmem:[%s8] sm:$0x1] %vm673, %v671
    %v675 = vpack.c.bf16 %v653, %v653
    %v678 = vunpack.c.l.s4 1966171168
    %v679 = vunpack.c.0.s8 %v678
    %v680 = vlaneseq
    %v681 = vshrl.u32 %v680, 7
    %v682 = vsub.s32 %v679, %v681
    %v683 = vrot.slane %v675, %v682
    %v685 = vunpack.c.l.s4 1966171168
    %v686 = vunpack.c.0.s8 %v685
    %v687 = vlaneseq
    %v688 = vshrl.u32 %v687, 7
    %v689 = vsub.s32 %v686, %v688
    %v690 = vrot.slane %v683, %v689
    %691 = vrot.lane.b32.xlu0 %v690, 32
    %v692 = vpop.permute.xlu0 %691
    %s694 = scalar_lea.vmem %s87, 7
    %695 = vst.msk [vmem:[%s694] sm:$0x1] %vm673, %v692
    %s696 = scalar_lea.vmem [#allocation2], 2
    %v697 = vld [vmem:[%s696] sm:$0x3]
    %698 = vrot.lane.b32.xlu0 %v654, 32
    %v699 = vpop.permute.xlu0 %698
    %v701 = vsel %vm196, %v699, 0
    %703 = vmatprep.subr.bf16.mxu0 0
    %704 = vmatpush1.bf16.msra.mxu0 %v491
    %705 = vmatprep.subr.bf16.mxu0 0
    %706 = vmatpush1.bf16.msra.mxu0 %v492
    %707 = vmatprep.subr.bf16.mxu0 0
    %708 = vmatpush1.bf16.msra.mxu0 0
    %709 = vmatprep.subr.bf16.mxu0 0
    %710 = vmatpush1.bf16.msra.mxu0 0
    %711 = vmatprep.subr.bf16.mxu0 0
    %712 = vmatpush1.bf16.msra.mxu0 0
    %713 = vmatprep.subr.bf16.mxu0 0
    %714 = vmatpush1.bf16.msra.mxu0 0
    %715 = vmatprep.subr.bf16.mxu0 0
    %716 = vmatpush1.bf16.msra.mxu0 0
    %717 = vmatprep.subr.bf16.mxu0 0
    %718 = vmatpush1.bf16.msra.mxu0 0
    %719 = vmatprep.subr.bf16.mxu0 0
    %720 = vmatpush1.bf16.msra.mxu0 0
    %721 = vmatprep.subr.bf16.mxu0 0
    %722 = vmatpush1.bf16.msra.mxu0 0
    %723 = vmatprep.subr.bf16.mxu0 0
    %724 = vmatpush1.bf16.msra.mxu0 0
    %725 = vmatprep.subr.bf16.mxu0 0
    %726 = vmatpush1.bf16.msra.mxu0 0
    %727 = vmatprep.subr.bf16.mxu0 0
    %728 = vmatpush1.bf16.msra.mxu0 0
    %729 = vmatprep.subr.bf16.mxu0 0
    %730 = vmatpush1.bf16.msra.mxu0 0
    %731 = vmatprep.subr.bf16.mxu0 0
    %732 = vmatpush1.bf16.msra.mxu0 0
    %733 = vmatprep.subr.bf16.mxu0 0
    %734 = vmatpush1.bf16.msra.mxu0 0
    %735 = vmatprep.mubr.bf16.mxu0 0
    %736 = vmatmul.mubr.bf16.gmra.mrb[0].mxu0 %v701
    %v737 = vpop.f32.mrb[0].mxu0
    %v738 = vadd.f32 0.0, %v737
    %v739 = vpop.f32.mrb[0].mxu0
    %v740 = vpop.f32.mrb[0].mxu0
    %v741 = vpop.f32.mrb[0].mxu0
    %742 = vdwg.mxu0
    %v743 = vadd.f32 %v697, %v738
    %s744 = scalar_lea.vmem [#allocation3], 12
    %v745 = vld [vmem:[%s744] sm:$0x3]
    %746 = vrot.lane.b32.xlu0 %v675, 32
    %v747 = vpop.permute.xlu0 %746
    %v749 = vsel %vm196, %v747, 0
    %751 = vmatprep.subr.bf16.mxu0 0
    %752 = vmatpush1.bf16.msra.mxu0 %v550
    %753 = vmatprep.subr.bf16.mxu0 0
    %754 = vmatpush1.bf16.msra.mxu0 %v551
    %755 = vmatprep.subr.bf16.mxu0 0
    %756 = vmatpush1.bf16.msra.mxu0 0
    %757 = vmatprep.subr.bf16.mxu0 0
    %758 = vmatpush1.bf16.msra.mxu0 0
    %759 = vmatprep.subr.bf16.mxu0 0
    %760 = vmatpush1.bf16.msra.mxu0 0
    %761 = vmatprep.subr.bf16.mxu0 0
    %762 = vmatpush1.bf16.msra.mxu0 0
    %763 = vmatprep.subr.bf16.mxu0 0
    %764 = vmatpush1.bf16.msra.mxu0 0
    %765 = vmatprep.subr.bf16.mxu0 0
    %766 = vmatpush1.bf16.msra.mxu0 0
    %767 = vmatprep.subr.bf16.mxu0 0
    %768 = vmatpush1.bf16.msra.mxu0 0
    %769 = vmatprep.subr.bf16.mxu0 0
    %770 = vmatpush1.bf16.msra.mxu0 0
    %771 = vmatprep.subr.bf16.mxu0 0
    %772 = vmatpush1.bf16.msra.mxu0 0
    %773 = vmatprep.subr.bf16.mxu0 0
    %774 = vmatpush1.bf16.msra.mxu0 0
    %775 = vmatprep.subr.bf16.mxu0 0
    %776 = vmatpush1.bf16.msra.mxu0 0
    %777 = vmatprep.subr.bf16.mxu0 0
    %778 = vmatpush1.bf16.msra.mxu0 0
    %779 = vmatprep.subr.bf16.mxu0 0
    %780 = vmatpush1.bf16.msra.mxu0 0
    %781 = vmatprep.subr.bf16.mxu0 0
    %782 = vmatpush1.bf16.msra.mxu0 0
    %783 = vmatprep.mubr.bf16.mxu0 0
    %784 = vmatmul.mubr.bf16.gmra.mrb[0].mxu0 %v749
    %v785 = vpop.f32.mrb[0].mxu0
    %v786 = vadd.f32 0.0, %v785
    %v787 = vpop.f32.mrb[0].mxu0
    %v788 = vpop.f32.mrb[0].mxu0
    %v789 = vpop.f32.mrb[0].mxu0
    %790 = vdwg.mxu0
    %v791 = vadd.f32 %v745, %v786
    %v792 = vxor.u32 %v743, 2147483648
    %v793 = vmul.f32 %v792, 1.442695
    %v794 = vpow.pop %v793
    %v795 = vadd.f32 %v794, 1.0
    %v796 = vrcp.pop %v795
    %v797 = vmul.f32 1.0, %v796
    %v798 = vtanh.pop %v743
    %v799 = vmul.f32 %v797, %v619
    %801 = vrot.lane.b32.xlu0 %v798, 64
    %v802 = vpop.permute.xlu0 %801
    %v804 = vmul.f32 %v797, %v802
    %806 = vrot.lane.b32.xlu0 %v804, 32
    %v807 = vpop.permute.xlu0 %806
    %v809 = vadd.f32 %v799, %v807
    %v810 = vtanh.pop %v809
    %812 = vrot.lane.b32.xlu0 %v810, 64
    %v813 = vpop.permute.xlu0 %812
    %v815 = vmul.f32 %v797, %v813
    %v816 = vxor.u32 %v791, 2147483648
    %v817 = vmul.f32 %v816, 1.442695
    %v818 = vpow.pop %v817
    %v819 = vadd.f32 %v818, 1.0
    %v820 = vrcp.pop %v819
    %v821 = vmul.f32 1.0, %v820
    %v822 = vtanh.pop %v791
    %v823 = vmul.f32 %v821, %v647
    %825 = vrot.lane.b32.xlu0 %v822, 64
    %v826 = vpop.permute.xlu0 %825
    %v828 = vmul.f32 %v821, %v826
    %830 = vrot.lane.b32.xlu0 %v828, 32
    %v831 = vpop.permute.xlu0 %830
    %v833 = vadd.f32 %v823, %v831
    %v834 = vtanh.pop %v833
    %836 = vrot.lane.b32.xlu0 %v834, 64
    %v837 = vpop.permute.xlu0 %836
    %v839 = vmul.f32 %v821, %v837
    %v840 = vpack.c.bf16 %v815, %v815
    %v843 = vunpack.c.l.s4 1966171168
    %v844 = vunpack.c.0.s8 %v843
    %v845 = vlaneseq
    %v846 = vshrl.u32 %v845, 7
    %v847 = vsub.s32 %v844, %v846
    %v848 = vrot.slane %v840, %v847
    %v850 = vunpack.c.l.s4 1966171168
    %v851 = vunpack.c.0.s8 %v850
    %v852 = vlaneseq
    %v853 = vshrl.u32 %v852, 7
    %v854 = vsub.s32 %v851, %v853
    %v855 = vrot.slane %v848, %v854
    %856 = vrot.lane.b32.xlu0 %v855, 32
    %v857 = vpop.permute.xlu0 %856
    %s859 = scalar_lea.vmem %s8, 1
    %860 = vst.msk [vmem:[%s859] sm:$0x1] %vm673, %v857
    %v861 = vpack.c.bf16 %v839, %v839
    %v864 = vunpack.c.l.s4 1966171168
    %v865 = vunpack.c.0.s8 %v864
    %v866 = vlaneseq
    %v867 = vshrl.u32 %v866, 7
    %v868 = vsub.s32 %v865, %v867
    %v869 = vrot.slane %v861, %v868
    %v871 = vunpack.c.l.s4 1966171168
    %v872 = vunpack.c.0.s8 %v871
    %v873 = vlaneseq
    %v874 = vshrl.u32 %v873, 7
    %v875 = vsub.s32 %v872, %v874
    %v876 = vrot.slane %v869, %v875
    %877 = vrot.lane.b32.xlu0 %v876, 32
    %v878 = vpop.permute.xlu0 %877
    %s880 = scalar_lea.vmem %s87, 6
    %881 = vst.msk [vmem:[%s880] sm:$0x1] %vm673, %v878
    %s882 = scalar_lea.vmem [#allocation2], 4
    %v883 = vld [vmem:[%s882] sm:$0x3]
    %884 = vrot.lane.b32.xlu0 %v840, 32
    %v885 = vpop.permute.xlu0 %884
    %v887 = vsel %vm196, %v885, 0
    %889 = vmatprep.subr.bf16.mxu0 0
    %890 = vmatpush1.bf16.msra.mxu0 %v491
    %891 = vmatprep.subr.bf16.mxu0 0
    %892 = vmatpush1.bf16.msra.mxu0 %v492
    %893 = vmatprep.subr.bf16.mxu0 0
    %894 = vmatpush1.bf16.msra.mxu0 0
    %895 = vmatprep.subr.bf16.mxu0 0
    %896 = vmatpush1.bf16.msra.mxu0 0
    %897 = vmatprep.subr.bf16.mxu0 0
    %898 = vmatpush1.bf16.msra.mxu0 0
    %899 = vmatprep.subr.bf16.mxu0 0
    %900 = vmatpush1.bf16.msra.mxu0 0
    %901 = vmatprep.subr.bf16.mxu0 0
    %902 = vmatpush1.bf16.msra.mxu0 0
    %903 = vmatprep.subr.bf16.mxu0 0
    %904 = vmatpush1.bf16.msra.mxu0 0
    %905 = vmatprep.subr.bf16.mxu0 0
    %906 = vmatpush1.bf16.msra.mxu0 0
    %907 = vmatprep.subr.bf16.mxu0 0
    %908 = vmatpush1.bf16.msra.mxu0 0
    %909 = vmatprep.subr.bf16.mxu0 0
    %910 = vmatpush1.bf16.msra.mxu0 0
    %911 = vmatprep.subr.bf16.mxu0 0
    %912 = vmatpush1.bf16.msra.mxu0 0
    %913 = vmatprep.subr.bf16.mxu0 0
    %914 = vmatpush1.bf16.msra.mxu0 0
    %915 = vmatprep.subr.bf16.mxu0 0
    %916 = vmatpush1.bf16.msra.mxu0 0
    %917 = vmatprep.subr.bf16.mxu0 0
    %918 = vmatpush1.bf16.msra.mxu0 0
    %919 = vmatprep.subr.bf16.mxu0 0
    %920 = vmatpush1.bf16.msra.mxu0 0
    %921 = vmatprep.mubr.bf16.mxu0 0
    %922 = vmatmul.mubr.bf16.gmra.mrb[0].mxu0 %v887
    %v923 = vpop.f32.mrb[0].mxu0
    %v924 = vadd.f32 0.0, %v923
    %v925 = vpop.f32.mrb[0].mxu0
    %v926 = vpop.f32.mrb[0].mxu0
    %v927 = vpop.f32.mrb[0].mxu0
    %928 = vdwg.mxu0
    %v929 = vadd.f32 %v883, %v924
    %s930 = scalar_lea.vmem [#allocation3], 10
    %v931 = vld [vmem:[%s930] sm:$0x3]
    %932 = vrot.lane.b32.xlu0 %v861, 32
    %v933 = vpop.permute.xlu0 %932
    %v935 = vsel %vm196, %v933, 0
    %937 = vmatprep.subr.bf16.mxu0 0
    %938 = vmatpush1.bf16.msra.mxu0 %v550
    %939 = vmatprep.subr.bf16.mxu0 0
    %940 = vmatpush1.bf16.msra.mxu0 %v551
    %941 = vmatprep.subr.bf16.mxu0 0
    %942 = vmatpush1.bf16.msra.mxu0 0
    %943 = vmatprep.subr.bf16.mxu0 0
    %944 = vmatpush1.bf16.msra.mxu0 0
    %945 = vmatprep.subr.bf16.mxu0 0
    %946 = vmatpush1.bf16.msra.mxu0 0
    %947 = vmatprep.subr.bf16.mxu0 0
    %948 = vmatpush1.bf16.msra.mxu0 0
    %949 = vmatprep.subr.bf16.mxu0 0
    %950 = vmatpush1.bf16.msra.mxu0 0
    %951 = vmatprep.subr.bf16.mxu0 0
    %952 = vmatpush1.bf16.msra.mxu0 0
    %953 = vmatprep.subr.bf16.mxu0 0
    %954 = vmatpush1.bf16.msra.mxu0 0
    %955 = vmatprep.subr.bf16.mxu0 0
    %956 = vmatpush1.bf16.msra.mxu0 0
    %957 = vmatprep.subr.bf16.mxu0 0
    %958 = vmatpush1.bf16.msra.mxu0 0
    %959 = vmatprep.subr.bf16.mxu0 0
    %960 = vmatpush1.bf16.msra.mxu0 0
    %961 = vmatprep.subr.bf16.mxu0 0
    %962 = vmatpush1.bf16.msra.mxu0 0
    %963 = vmatprep.subr.bf16.mxu0 0
    %964 = vmatpush1.bf16.msra.mxu0 0
    %965 = vmatprep.subr.bf16.mxu0 0
    %966 = vmatpush1.bf16.msra.mxu0 0
    %967 = vmatprep.subr.bf16.mxu0 0
    %968 = vmatpush1.bf16.msra.mxu0 0
    %969 = vmatprep.mubr.bf16.mxu0 0
    %970 = vmatmul.mubr.bf16.gmra.mrb[0].mxu0 %v935
    %v971 = vpop.f32.mrb[0].mxu0
    %v972 = vadd.f32 0.0, %v971
    %v973 = vpop.f32.mrb[0].mxu0
    %v974 = vpop.f32.mrb[0].mxu0
    %v975 = vpop.f32.mrb[0].mxu0
    %976 = vdwg.mxu0
    %v977 = vadd.f32 %v931, %v972
    %v978 = vxor.u32 %v929, 2147483648
    %v979 = vmul.f32 %v978, 1.442695
    %v980 = vpow.pop %v979
    %v981 = vadd.f32 %v980, 1.0
    %v982 = vrcp.pop %v981
    %v983 = vmul.f32 1.0, %v982
    %v984 = vtanh.pop %v929
    %v985 = vmul.f32 %v983, %v809
    %987 = vrot.lane.b32.xlu0 %v984, 64
    %v988 = vpop.permute.xlu0 %987
    %v990 = vmul.f32 %v983, %v988
    %992 = vrot.lane.b32.xlu0 %v990, 32
    %v993 = vpop.permute.xlu0 %992
    %v995 = vadd.f32 %v985, %v993
    %v996 = vtanh.pop %v995
    %998 = vrot.lane.b32.xlu0 %v996, 64
    %v999 = vpop.permute.xlu0 %998
    %v1001 = vmul.f32 %v983, %v999
    %v1002 = vxor.u32 %v977, 2147483648
    %v1003 = vmul.f32 %v1002, 1.442695
    %v1004 = vpow.pop %v1003
    %v1005 = vadd.f32 %v1004, 1.0
    %v1006 = vrcp.pop %v1005
    %v1007 = vmul.f32 1.0, %v1006
    %v1008 = vtanh.pop %v977
    %v1009 = vmul.f32 %v1007, %v833
    %1011 = vrot.lane.b32.xlu0 %v1008, 64
    %v1012 = vpop.permute.xlu0 %1011
    %v1014 = vmul.f32 %v1007, %v1012
    %1016 = vrot.lane.b32.xlu0 %v1014, 32
    %v1017 = vpop.permute.xlu0 %1016
    %v1019 = vadd.f32 %v1009, %v1017
    %v1020 = vtanh.pop %v1019
    %1022 = vrot.lane.b32.xlu0 %v1020, 64
    %v1023 = vpop.permute.xlu0 %1022
    %v1025 = vmul.f32 %v1007, %v1023
    %v1026 = vpack.c.bf16 %v1001, %v1001
    %v1029 = vunpack.c.l.s4 1966171168
    %v1030 = vunpack.c.0.s8 %v1029
    %v1031 = vlaneseq
    %v1032 = vshrl.u32 %v1031, 7
    %v1033 = vsub.s32 %v1030, %v1032
    %v1034 = vrot.slane %v1026, %v1033
    %v1036 = vunpack.c.l.s4 1966171168
    %v1037 = vunpack.c.0.s8 %v1036
    %v1038 = vlaneseq
    %v1039 = vshrl.u32 %v1038, 7
    %v1040 = vsub.s32 %v1037, %v1039
    %v1041 = vrot.slane %v1034, %v1040
    %1042 = vrot.lane.b32.xlu0 %v1041, 32
    %v1043 = vpop.permute.xlu0 %1042
    %s1045 = scalar_lea.vmem %s8, 2
    %1046 = vst.msk [vmem:[%s1045] sm:$0x1] %vm673, %v1043
    %v1047 = vpack.c.bf16 %v1025, %v1025
    %v1050 = vunpack.c.l.s4 1966171168
    %v1051 = vunpack.c.0.s8 %v1050
    %v1052 = vlaneseq
    %v1053 = vshrl.u32 %v1052, 7
    %v1054 = vsub.s32 %v1051, %v1053
    %v1055 = vrot.slane %v1047, %v1054
    %v1057 = vunpack.c.l.s4 1966171168
    %v1058 = vunpack.c.0.s8 %v1057
    %v1059 = vlaneseq
    %v1060 = vshrl.u32 %v1059, 7
    %v1061 = vsub.s32 %v1058, %v1060
    %v1062 = vrot.slane %v1055, %v1061
    %1063 = vrot.lane.b32.xlu0 %v1062, 32
    %v1064 = vpop.permute.xlu0 %1063
    %s1066 = scalar_lea.vmem %s87, 5
    %1067 = vst.msk [vmem:[%s1066] sm:$0x1] %vm673, %v1064
    %s1068 = scalar_lea.vmem [#allocation2], 6
    %v1069 = vld [vmem:[%s1068] sm:$0x3]
    %1070 = vrot.lane.b32.xlu0 %v1026, 32
    %v1071 = vpop.permute.xlu0 %1070
    %v1073 = vsel %vm196, %v1071, 0
    %1075 = vmatprep.subr.bf16.mxu0 0
    %1076 = vmatpush1.bf16.msra.mxu0 %v491
    %1077 = vmatprep.subr.bf16.mxu0 0
    %1078 = vmatpush1.bf16.msra.mxu0 %v492
    %1079 = vmatprep.subr.bf16.mxu0 0
    %1080 = vmatpush1.bf16.msra.mxu0 0
    %1081 = vmatprep.subr.bf16.mxu0 0
    %1082 = vmatpush1.bf16.msra.mxu0 0
    %1083 = vmatprep.subr.bf16.mxu0 0
    %1084 = vmatpush1.bf16.msra.mxu0 0
    %1085 = vmatprep.subr.bf16.mxu0 0
    %1086 = vmatpush1.bf16.msra.mxu0 0
    %1087 = vmatprep.subr.bf16.mxu0 0
    %1088 = vmatpush1.bf16.msra.mxu0 0
    %1089 = vmatprep.subr.bf16.mxu0 0
    %1090 = vmatpush1.bf16.msra.mxu0 0
    %1091 = vmatprep.subr.bf16.mxu0 0
    %1092 = vmatpush1.bf16.msra.mxu0 0
    %1093 = vmatprep.subr.bf16.mxu0 0
    %1094 = vmatpush1.bf16.msra.mxu0 0
    %1095 = vmatprep.subr.bf16.mxu0 0
    %1096 = vmatpush1.bf16.msra.mxu0 0
    %1097 = vmatprep.subr.bf16.mxu0 0
    %1098 = vmatpush1.bf16.msra.mxu0 0
    %1099 = vmatprep.subr.bf16.mxu0 0
    %1100 = vmatpush1.bf16.msra.mxu0 0
    %1101 = vmatprep.subr.bf16.mxu0 0
    %1102 = vmatpush1.bf16.msra.mxu0 0
    %1103 = vmatprep.subr.bf16.mxu0 0
    %1104 = vmatpush1.bf16.msra.mxu0 0
    %1105 = vmatprep.subr.bf16.mxu0 0
    %1106 = vmatpush1.bf16.msra.mxu0 0
    %1107 = vmatprep.mubr.bf16.mxu0 0
    %1108 = vmatmul.mubr.bf16.gmra.mrb[0].mxu0 %v1073
    %v1109 = vpop.f32.mrb[0].mxu0
    %v1110 = vadd.f32 0.0, %v1109
    %v1111 = vpop.f32.mrb[0].mxu0
    %v1112 = vpop.f32.mrb[0].mxu0
    %v1113 = vpop.f32.mrb[0].mxu0
    %1114 = vdwg.mxu0
    %v1115 = vadd.f32 %v1069, %v1110
    %s1116 = scalar_lea.vmem [#allocation3], 8
    %v1117 = vld [vmem:[%s1116] sm:$0x3]
    %1118 = vrot.lane.b32.xlu0 %v1047, 32
    %v1119 = vpop.permute.xlu0 %1118
    %v1121 = vsel %vm196, %v1119, 0
    %1123 = vmatprep.subr.bf16.mxu0 0
    %1124 = vmatpush1.bf16.msra.mxu0 %v550
    %1125 = vmatprep.subr.bf16.mxu0 0
    %1126 = vmatpush1.bf16.msra.mxu0 %v551
    %1127 = vmatprep.subr.bf16.mxu0 0
    %1128 = vmatpush1.bf16.msra.mxu0 0
    %1129 = vmatprep.subr.bf16.mxu0 0
    %1130 = vmatpush1.bf16.msra.mxu0 0
    %1131 = vmatprep.subr.bf16.mxu0 0
    %1132 = vmatpush1.bf16.msra.mxu0 0
    %1133 = vmatprep.subr.bf16.mxu0 0
    %1134 = vmatpush1.bf16.msra.mxu0 0
    %1135 = vmatprep.subr.bf16.mxu0 0
    %1136 = vmatpush1.bf16.msra.mxu0 0
    %1137 = vmatprep.subr.bf16.mxu0 0
    %1138 = vmatpush1.bf16.msra.mxu0 0
    %1139 = vmatprep.subr.bf16.mxu0 0
    %1140 = vmatpush1.bf16.msra.mxu0 0
    %1141 = vmatprep.subr.bf16.mxu0 0
    %1142 = vmatpush1.bf16.msra.mxu0 0
    %1143 = vmatprep.subr.bf16.mxu0 0
    %1144 = vmatpush1.bf16.msra.mxu0 0
    %1145 = vmatprep.subr.bf16.mxu0 0
    %1146 = vmatpush1.bf16.msra.mxu0 0
    %1147 = vmatprep.subr.bf16.mxu0 0
    %1148 = vmatpush1.bf16.msra.mxu0 0
    %1149 = vmatprep.subr.bf16.mxu0 0
    %1150 = vmatpush1.bf16.msra.mxu0 0
    %1151 = vmatprep.subr.bf16.mxu0 0
    %1152 = vmatpush1.bf16.msra.mxu0 0
    %1153 = vmatprep.subr.bf16.mxu0 0
    %1154 = vmatpush1.bf16.msra.mxu0 0
    %1155 = vmatprep.mubr.bf16.mxu0 0
    %1156 = vmatmul.mubr.bf16.gmra.mrb[0].mxu0 %v1121
    %v1157 = vpop.f32.mrb[0].mxu0
    %v1158 = vadd.f32 0.0, %v1157
    %v1159 = vpop.f32.mrb[0].mxu0
    %v1160 = vpop.f32.mrb[0].mxu0
    %v1161 = vpop.f32.mrb[0].mxu0
    %1162 = vdwg.mxu0
    %v1163 = vadd.f32 %v1117, %v1158
    %v1164 = vxor.u32 %v1115, 2147483648
    %v1165 = vmul.f32 %v1164, 1.442695
    %v1166 = vpow.pop %v1165
    %v1167 = vadd.f32 %v1166, 1.0
    %v1168 = vrcp.pop %v1167
    %v1169 = vmul.f32 1.0, %v1168
    %v1170 = vtanh.pop %v1115
    %v1171 = vmul.f32 %v1169, %v995
    %1173 = vrot.lane.b32.xlu0 %v1170, 64
    %v1174 = vpop.permute.xlu0 %1173
    %v1176 = vmul.f32 %v1169, %v1174
    %1178 = vrot.lane.b32.xlu0 %v1176, 32
    %v1179 = vpop.permute.xlu0 %1178
    %v1181 = vadd.f32 %v1171, %v1179
    %v1182 = vtanh.pop %v1181
    %1184 = vrot.lane.b32.xlu0 %v1182, 64
    %v1185 = vpop.permute.xlu0 %1184
    %v1187 = vmul.f32 %v1169, %v1185
    %v1188 = vxor.u32 %v1163, 2147483648
    %v1189 = vmul.f32 %v1188, 1.442695
    %v1190 = vpow.pop %v1189
    %v1191 = vadd.f32 %v1190, 1.0
    %v1192 = vrcp.pop %v1191
    %v1193 = vmul.f32 1.0, %v1192
    %v1194 = vtanh.pop %v1163
    %v1195 = vmul.f32 %v1193, %v1019
    %1197 = vrot.lane.b32.xlu0 %v1194, 64
    %v1198 = vpop.permute.xlu0 %1197
    %v1200 = vmul.f32 %v1193, %v1198
    %1202 = vrot.lane.b32.xlu0 %v1200, 32
    %v1203 = vpop.permute.xlu0 %1202
    %v1205 = vadd.f32 %v1195, %v1203
    %v1206 = vtanh.pop %v1205
    %1208 = vrot.lane.b32.xlu0 %v1206, 64
    %v1209 = vpop.permute.xlu0 %1208
    %v1211 = vmul.f32 %v1193, %v1209
    %v1212 = vpack.c.bf16 %v1187, %v1187
    %v1215 = vunpack.c.l.s4 1966171168
    %v1216 = vunpack.c.0.s8 %v1215
    %v1217 = vlaneseq
    %v1218 = vshrl.u32 %v1217, 7
    %v1219 = vsub.s32 %v1216, %v1218
    %v1220 = vrot.slane %v1212, %v1219
    %v1222 = vunpack.c.l.s4 1966171168
    %v1223 = vunpack.c.0.s8 %v1222
    %v1224 = vlaneseq
    %v1225 = vshrl.u32 %v1224, 7
    %v1226 = vsub.s32 %v1223, %v1225
    %v1227 = vrot.slane %v1220, %v1226
    %1228 = vrot.lane.b32.xlu0 %v1227, 32
    %v1229 = vpop.permute.xlu0 %1228
    %s1231 = scalar_lea.vmem %s8, 3
    %1232 = vst.msk [vmem:[%s1231] sm:$0x1] %vm673, %v1229
    %v1233 = vpack.c.bf16 %v1211, %v1211
    %v1236 = vunpack.c.l.s4 1966171168
    %v1237 = vunpack.c.0.s8 %v1236
    %v1238 = vlaneseq
    %v1239 = vshrl.u32 %v1238, 7
    %v1240 = vsub.s32 %v1237, %v1239
    %v1241 = vrot.slane %v1233, %v1240
    %v1243 = vunpack.c.l.s4 1966171168
    %v1244 = vunpack.c.0.s8 %v1243
    %v1245 = vlaneseq
    %v1246 = vshrl.u32 %v1245, 7
    %v1247 = vsub.s32 %v1244, %v1246
    %v1248 = vrot.slane %v1241, %v1247
    %1249 = vrot.lane.b32.xlu0 %v1248, 32
    %v1250 = vpop.permute.xlu0 %1249
    %s1252 = scalar_lea.vmem %s87, 4
    %1253 = vst.msk [vmem:[%s1252] sm:$0x1] %vm673, %v1250
    %s1254 = scalar_lea.vmem [#allocation2], 8
    %v1255 = vld [vmem:[%s1254] sm:$0x3]
    %1256 = vrot.lane.b32.xlu0 %v1212, 32
    %v1257 = vpop.permute.xlu0 %1256
    %v1259 = vsel %vm196, %v1257, 0
    %1261 = vmatprep.subr.bf16.mxu0 0
    %1262 = vmatpush1.bf16.msra.mxu0 %v491
    %1263 = vmatprep.subr.bf16.mxu0 0
    %1264 = vmatpush1.bf16.msra.mxu0 %v492
    %1265 = vmatprep.subr.bf16.mxu0 0
    %1266 = vmatpush1.bf16.msra.mxu0 0
    %1267 = vmatprep.subr.bf16.mxu0 0
    %1268 = vmatpush1.bf16.msra.mxu0 0
    %1269 = vmatprep.subr.bf16.mxu0 0
    %1270 = vmatpush1.bf16.msra.mxu0 0
    %1271 = vmatprep.subr.bf16.mxu0 0
    %1272 = vmatpush1.bf16.msra.mxu0 0
    %1273 = vmatprep.subr.bf16.mxu0 0
    %1274 = vmatpush1.bf16.msra.mxu0 0
    %1275 = vmatprep.subr.bf16.mxu0 0
    %1276 = vmatpush1.bf16.msra.mxu0 0
    %1277 = vmatprep.subr.bf16.mxu0 0
    %1278 = vmatpush1.bf16.msra.mxu0 0
    %1279 = vmatprep.subr.bf16.mxu0 0
    %1280 = vmatpush1.bf16.msra.mxu0 0
    %1281 = vmatprep.subr.bf16.mxu0 0
    %1282 = vmatpush1.bf16.msra.mxu0 0
    %1283 = vmatprep.subr.bf16.mxu0 0
    %1284 = vmatpush1.bf16.msra.mxu0 0
    %1285 = vmatprep.subr.bf16.mxu0 0
    %1286 = vmatpush1.bf16.msra.mxu0 0
    %1287 = vmatprep.subr.bf16.mxu0 0
    %1288 = vmatpush1.bf16.msra.mxu0 0
    %1289 = vmatprep.subr.bf16.mxu0 0
    %1290 = vmatpush1.bf16.msra.mxu0 0
    %1291 = vmatprep.subr.bf16.mxu0 0
    %1292 = vmatpush1.bf16.msra.mxu0 0
    %1293 = vmatprep.mubr.bf16.mxu0 0
    %1294 = vmatmul.mubr.bf16.gmra.mrb[0].mxu0 %v1259
    %v1295 = vpop.f32.mrb[0].mxu0
    %v1296 = vadd.f32 0.0, %v1295
    %v1297 = vpop.f32.mrb[0].mxu0
    %v1298 = vpop.f32.mrb[0].mxu0
    %v1299 = vpop.f32.mrb[0].mxu0
    %1300 = vdwg.mxu0
    %v1301 = vadd.f32 %v1255, %v1296
    %s1302 = scalar_lea.vmem [#allocation3], 6
    %v1303 = vld [vmem:[%s1302] sm:$0x3]
    %1304 = vrot.lane.b32.xlu0 %v1233, 32
    %v1305 = vpop.permute.xlu0 %1304
    %v1307 = vsel %vm196, %v1305, 0
    %1309 = vmatprep.subr.bf16.mxu0 0
    %1310 = vmatpush1.bf16.msra.mxu0 %v550
    %1311 = vmatprep.subr.bf16.mxu0 0
    %1312 = vmatpush1.bf16.msra.mxu0 %v551
    %1313 = vmatprep.subr.bf16.mxu0 0
    %1314 = vmatpush1.bf16.msra.mxu0 0
    %1315 = vmatprep.subr.bf16.mxu0 0
    %1316 = vmatpush1.bf16.msra.mxu0 0
    %1317 = vmatprep.subr.bf16.mxu0 0
    %1318 = vmatpush1.bf16.msra.mxu0 0
    %1319 = vmatprep.subr.bf16.mxu0 0
    %1320 = vmatpush1.bf16.msra.mxu0 0
    %1321 = vmatprep.subr.bf16.mxu0 0
    %1322 = vmatpush1.bf16.msra.mxu0 0
    %1323 = vmatprep.subr.bf16.mxu0 0
    %1324 = vmatpush1.bf16.msra.mxu0 0
    %1325 = vmatprep.subr.bf16.mxu0 0
    %1326 = vmatpush1.bf16.msra.mxu0 0
    %1327 = vmatprep.subr.bf16.mxu0 0
    %1328 = vmatpush1.bf16.msra.mxu0 0
    %1329 = vmatprep.subr.bf16.mxu0 0
    %1330 = vmatpush1.bf16.msra.mxu0 0
    %1331 = vmatprep.subr.bf16.mxu0 0
    %1332 = vmatpush1.bf16.msra.mxu0 0
    %1333 = vmatprep.subr.bf16.mxu0 0
    %1334 = vmatpush1.bf16.msra.mxu0 0
    %1335 = vmatprep.subr.bf16.mxu0 0
    %1336 = vmatpush1.bf16.msra.mxu0 0
    %1337 = vmatprep.subr.bf16.mxu0 0
    %1338 = vmatpush1.bf16.msra.mxu0 0
    %1339 = vmatprep.subr.bf16.mxu0 0
    %1340 = vmatpush1.bf16.msra.mxu0 0
    %1341 = vmatprep.mubr.bf16.mxu0 0
    %1342 = vmatmul.mubr.bf16.gmra.mrb[0].mxu0 %v1307
    %v1343 = vpop.f32.mrb[0].mxu0
    %v1344 = vadd.f32 0.0, %v1343
    %v1345 = vpop.f32.mrb[0].mxu0
    %v1346 = vpop.f32.mrb[0].mxu0
    %v1347 = vpop.f32.mrb[0].mxu0
    %1348 = vdwg.mxu0
    %v1349 = vadd.f32 %v1303, %v1344
    %v1350 = vxor.u32 %v1301, 2147483648
    %v1351 = vmul.f32 %v1350, 1.442695
    %v1352 = vpow.pop %v1351
    %v1353 = vadd.f32 %v1352, 1.0
    %v1354 = vrcp.pop %v1353
    %v1355 = vmul.f32 1.0, %v1354
    %v1356 = vtanh.pop %v1301
    %v1357 = vmul.f32 %v1355, %v1181
    %1359 = vrot.lane.b32.xlu0 %v1356, 64
    %v1360 = vpop.permute.xlu0 %1359
    %v1362 = vmul.f32 %v1355, %v1360
    %1364 = vrot.lane.b32.xlu0 %v1362, 32
    %v1365 = vpop.permute.xlu0 %1364
    %v1367 = vadd.f32 %v1357, %v1365
    %v1368 = vtanh.pop %v1367
    %1370 = vrot.lane.b32.xlu0 %v1368, 64
    %v1371 = vpop.permute.xlu0 %1370
    %v1373 = vmul.f32 %v1355, %v1371
    %v1374 = vxor.u32 %v1349, 2147483648
    %v1375 = vmul.f32 %v1374, 1.442695
    %v1376 = vpow.pop %v1375
    %v1377 = vadd.f32 %v1376, 1.0
    %v1378 = vrcp.pop %v1377
    %v1379 = vmul.f32 1.0, %v1378
    %v1380 = vtanh.pop %v1349
    %v1381 = vmul.f32 %v1379, %v1205
    %1383 = vrot.lane.b32.xlu0 %v1380, 64
    %v1384 = vpop.permute.xlu0 %1383
    %v1386 = vmul.f32 %v1379, %v1384
    %1388 = vrot.lane.b32.xlu0 %v1386, 32
    %v1389 = vpop.permute.xlu0 %1388
    %v1391 = vadd.f32 %v1381, %v1389
    %v1392 = vtanh.pop %v1391
    %1394 = vrot.lane.b32.xlu0 %v1392, 64
    %v1395 = vpop.permute.xlu0 %1394
    %v1397 = vmul.f32 %v1379, %v1395
    %v1398 = vpack.c.bf16 %v1373, %v1373
    %v1401 = vunpack.c.l.s4 1966171168
    %v1402 = vunpack.c.0.s8 %v1401
    %v1403 = vlaneseq
    %v1404 = vshrl.u32 %v1403, 7
    %v1405 = vsub.s32 %v1402, %v1404
    %v1406 = vrot.slane %v1398, %v1405
    %v1408 = vunpack.c.l.s4 1966171168
    %v1409 = vunpack.c.0.s8 %v1408
    %v1410 = vlaneseq
    %v1411 = vshrl.u32 %v1410, 7
    %v1412 = vsub.s32 %v1409, %v1411
    %v1413 = vrot.slane %v1406, %v1412
    %1414 = vrot.lane.b32.xlu0 %v1413, 32
    %v1415 = vpop.permute.xlu0 %1414
    %s1417 = scalar_lea.vmem %s8, 4
    %1418 = vst.msk [vmem:[%s1417] sm:$0x1] %vm673, %v1415
    %v1419 = vpack.c.bf16 %v1397, %v1397
    %v1422 = vunpack.c.l.s4 1966171168
    %v1423 = vunpack.c.0.s8 %v1422
    %v1424 = vlaneseq
    %v1425 = vshrl.u32 %v1424, 7
    %v1426 = vsub.s32 %v1423, %v1425
    %v1427 = vrot.slane %v1419, %v1426
    %v1429 = vunpack.c.l.s4 1966171168
    %v1430 = vunpack.c.0.s8 %v1429
    %v1431 = vlaneseq
    %v1432 = vshrl.u32 %v1431, 7
    %v1433 = vsub.s32 %v1430, %v1432
    %v1434 = vrot.slane %v1427, %v1433
    %1435 = vrot.lane.b32.xlu0 %v1434, 32
    %v1436 = vpop.permute.xlu0 %1435
    %s1438 = scalar_lea.vmem %s87, 3
    %1439 = vst.msk [vmem:[%s1438] sm:$0x1] %vm673, %v1436
    %s1440 = scalar_lea.vmem [#allocation2], 10
    %v1441 = vld [vmem:[%s1440] sm:$0x3]
    %1442 = vrot.lane.b32.xlu0 %v1398, 32
    %v1443 = vpop.permute.xlu0 %1442
    %v1445 = vsel %vm196, %v1443, 0
    %1447 = vmatprep.subr.bf16.mxu0 0
    %1448 = vmatpush1.bf16.msra.mxu0 %v491
    %1449 = vmatprep.subr.bf16.mxu0 0
    %1450 = vmatpush1.bf16.msra.mxu0 %v492
    %1451 = vmatprep.subr.bf16.mxu0 0
    %1452 = vmatpush1.bf16.msra.mxu0 0
    %1453 = vmatprep.subr.bf16.mxu0 0
    %1454 = vmatpush1.bf16.msra.mxu0 0
    %1455 = vmatprep.subr.bf16.mxu0 0
    %1456 = vmatpush1.bf16.msra.mxu0 0
    %1457 = vmatprep.subr.bf16.mxu0 0
    %1458 = vmatpush1.bf16.msra.mxu0 0
    %1459 = vmatprep.subr.bf16.mxu0 0
    %1460 = vmatpush1.bf16.msra.mxu0 0
    %1461 = vmatprep.subr.bf16.mxu0 0
    %1462 = vmatpush1.bf16.msra.mxu0 0
    %1463 = vmatprep.subr.bf16.mxu0 0
    %1464 = vmatpush1.bf16.msra.mxu0 0
    %1465 = vmatprep.subr.bf16.mxu0 0
    %1466 = vmatpush1.bf16.msra.mxu0 0
    %1467 = vmatprep.subr.bf16.mxu0 0
    %1468 = vmatpush1.bf16.msra.mxu0 0
    %1469 = vmatprep.subr.bf16.mxu0 0
    %1470 = vmatpush1.bf16.msra.mxu0 0
    %1471 = vmatprep.subr.bf16.mxu0 0
    %1472 = vmatpush1.bf16.msra.mxu0 0
    %1473 = vmatprep.subr.bf16.mxu0 0
    %1474 = vmatpush1.bf16.msra.mxu0 0
    %1475 = vmatprep.subr.bf16.mxu0 0
    %1476 = vmatpush1.bf16.msra.mxu0 0
    %1477 = vmatprep.subr.bf16.mxu0 0
    %1478 = vmatpush1.bf16.msra.mxu0 0
    %1479 = vmatprep.mubr.bf16.mxu0 0
    %1480 = vmatmul.mubr.bf16.gmra.mrb[0].mxu0 %v1445
    %v1481 = vpop.f32.mrb[0].mxu0
    %v1482 = vadd.f32 0.0, %v1481
    %v1483 = vpop.f32.mrb[0].mxu0
    %v1484 = vpop.f32.mrb[0].mxu0
    %v1485 = vpop.f32.mrb[0].mxu0
    %1486 = vdwg.mxu0
    %v1487 = vadd.f32 %v1441, %v1482
    %s1488 = scalar_lea.vmem [#allocation3], 4
    %v1489 = vld [vmem:[%s1488] sm:$0x3]
    %1490 = vrot.lane.b32.xlu0 %v1419, 32
    %v1491 = vpop.permute.xlu0 %1490
    %v1493 = vsel %vm196, %v1491, 0
    %1495 = vmatprep.subr.bf16.mxu0 0
    %1496 = vmatpush1.bf16.msra.mxu0 %v550
    %1497 = vmatprep.subr.bf16.mxu0 0
    %1498 = vmatpush1.bf16.msra.mxu0 %v551
    %1499 = vmatprep.subr.bf16.mxu0 0
    %1500 = vmatpush1.bf16.msra.mxu0 0
    %1501 = vmatprep.subr.bf16.mxu0 0
    %1502 = vmatpush1.bf16.msra.mxu0 0
    %1503 = vmatprep.subr.bf16.mxu0 0
    %1504 = vmatpush1.bf16.msra.mxu0 0
    %1505 = vmatprep.subr.bf16.mxu0 0
    %1506 = vmatpush1.bf16.msra.mxu0 0
    %1507 = vmatprep.subr.bf16.mxu0 0
    %1508 = vmatpush1.bf16.msra.mxu0 0
    %1509 = vmatprep.subr.bf16.mxu0 0
    %1510 = vmatpush1.bf16.msra.mxu0 0
    %1511 = vmatprep.subr.bf16.mxu0 0
    %1512 = vmatpush1.bf16.msra.mxu0 0
    %1513 = vmatprep.subr.bf16.mxu0 0
    %1514 = vmatpush1.bf16.msra.mxu0 0
    %1515 = vmatprep.subr.bf16.mxu0 0
    %1516 = vmatpush1.bf16.msra.mxu0 0
    %1517 = vmatprep.subr.bf16.mxu0 0
    %1518 = vmatpush1.bf16.msra.mxu0 0
    %1519 = vmatprep.subr.bf16.mxu0 0
    %1520 = vmatpush1.bf16.msra.mxu0 0
    %1521 = vmatprep.subr.bf16.mxu0 0
    %1522 = vmatpush1.bf16.msra.mxu0 0
    %1523 = vmatprep.subr.bf16.mxu0 0
    %1524 = vmatpush1.bf16.msra.mxu0 0
    %1525 = vmatprep.subr.bf16.mxu0 0
    %1526 = vmatpush1.bf16.msra.mxu0 0
    %1527 = vmatprep.mubr.bf16.mxu0 0
    %1528 = vmatmul.mubr.bf16.gmra.mrb[0].mxu0 %v1493
    %v1529 = vpop.f32.mrb[0].mxu0
    %v1530 = vadd.f32 0.0, %v1529
    %v1531 = vpop.f32.mrb[0].mxu0
    %v1532 = vpop.f32.mrb[0].mxu0
    %v1533 = vpop.f32.mrb[0].mxu0
    %1534 = vdwg.mxu0
    %v1535 = vadd.f32 %v1489, %v1530
    %v1536 = vxor.u32 %v1487, 2147483648
    %v1537 = vmul.f32 %v1536, 1.442695
    %v1538 = vpow.pop %v1537
    %v1539 = vadd.f32 %v1538, 1.0
    %v1540 = vrcp.pop %v1539
    %v1541 = vmul.f32 1.0, %v1540
    %v1542 = vtanh.pop %v1487
    %v1543 = vmul.f32 %v1541, %v1367
    %1545 = vrot.lane.b32.xlu0 %v1542, 64
    %v1546 = vpop.permute.xlu0 %1545
    %v1548 = vmul.f32 %v1541, %v1546
    %1550 = vrot.lane.b32.xlu0 %v1548, 32
    %v1551 = vpop.permute.xlu0 %1550
    %v1553 = vadd.f32 %v1543, %v1551
    %v1554 = vtanh.pop %v1553
    %1556 = vrot.lane.b32.xlu0 %v1554, 64
    %v1557 = vpop.permute.xlu0 %1556
    %v1559 = vmul.f32 %v1541, %v1557
    %v1560 = vxor.u32 %v1535, 2147483648
    %v1561 = vmul.f32 %v1560, 1.442695
    %v1562 = vpow.pop %v1561
    %v1563 = vadd.f32 %v1562, 1.0
    %v1564 = vrcp.pop %v1563
    %v1565 = vmul.f32 1.0, %v1564
    %v1566 = vtanh.pop %v1535
    %v1567 = vmul.f32 %v1565, %v1391
    %1569 = vrot.lane.b32.xlu0 %v1566, 64
    %v1570 = vpop.permute.xlu0 %1569
    %v1572 = vmul.f32 %v1565, %v1570
    %1574 = vrot.lane.b32.xlu0 %v1572, 32
    %v1575 = vpop.permute.xlu0 %1574
    %v1577 = vadd.f32 %v1567, %v1575
    %v1578 = vtanh.pop %v1577
    %1580 = vrot.lane.b32.xlu0 %v1578, 64
    %v1581 = vpop.permute.xlu0 %1580
    %v1583 = vmul.f32 %v1565, %v1581
    %v1584 = vpack.c.bf16 %v1559, %v1559
    %v1587 = vunpack.c.l.s4 1966171168
    %v1588 = vunpack.c.0.s8 %v1587
    %v1589 = vlaneseq
    %v1590 = vshrl.u32 %v1589, 7
    %v1591 = vsub.s32 %v1588, %v1590
    %v1592 = vrot.slane %v1584, %v1591
    %v1594 = vunpack.c.l.s4 1966171168
    %v1595 = vunpack.c.0.s8 %v1594
    %v1596 = vlaneseq
    %v1597 = vshrl.u32 %v1596, 7
    %v1598 = vsub.s32 %v1595, %v1597
    %v1599 = vrot.slane %v1592, %v1598
    %1600 = vrot.lane.b32.xlu0 %v1599, 32
    %v1601 = vpop.permute.xlu0 %1600
    %s1603 = scalar_lea.vmem %s8, 5
    %1604 = vst.msk [vmem:[%s1603] sm:$0x1] %vm673, %v1601
    %v1605 = vpack.c.bf16 %v1583, %v1583
    %v1608 = vunpack.c.l.s4 1966171168
    %v1609 = vunpack.c.0.s8 %v1608
    %v1610 = vlaneseq
    %v1611 = vshrl.u32 %v1610, 7
    %v1612 = vsub.s32 %v1609, %v1611
    %v1613 = vrot.slane %v1605, %v1612
    %v1615 = vunpack.c.l.s4 1966171168
    %v1616 = vunpack.c.0.s8 %v1615
    %v1617 = vlaneseq
    %v1618 = vshrl.u32 %v1617, 7
    %v1619 = vsub.s32 %v1616, %v1618
    %v1620 = vrot.slane %v1613, %v1619
    %1621 = vrot.lane.b32.xlu0 %v1620, 32
    %v1622 = vpop.permute.xlu0 %1621
    %s1624 = scalar_lea.vmem %s87, 2
    %1625 = vst.msk [vmem:[%s1624] sm:$0x1] %vm673, %v1622
    %s1626 = scalar_lea.vmem [#allocation2], 12
    %v1627 = vld [vmem:[%s1626] sm:$0x3]
    %1628 = vrot.lane.b32.xlu0 %v1584, 32
    %v1629 = vpop.permute.xlu0 %1628
    %v1631 = vsel %vm196, %v1629, 0
    %1633 = vmatprep.subr.bf16.mxu0 0
    %1634 = vmatpush1.bf16.msra.mxu0 %v491
    %1635 = vmatprep.subr.bf16.mxu0 0
    %1636 = vmatpush1.bf16.msra.mxu0 %v492
    %1637 = vmatprep.subr.bf16.mxu0 0
    %1638 = vmatpush1.bf16.msra.mxu0 0
    %1639 = vmatprep.subr.bf16.mxu0 0
    %1640 = vmatpush1.bf16.msra.mxu0 0
    %1641 = vmatprep.subr.bf16.mxu0 0
    %1642 = vmatpush1.bf16.msra.mxu0 0
    %1643 = vmatprep.subr.bf16.mxu0 0
    %1644 = vmatpush1.bf16.msra.mxu0 0
    %1645 = vmatprep.subr.bf16.mxu0 0
    %1646 = vmatpush1.bf16.msra.mxu0 0
    %1647 = vmatprep.subr.bf16.mxu0 0
    %1648 = vmatpush1.bf16.msra.mxu0 0
    %1649 = vmatprep.subr.bf16.mxu0 0
    %1650 = vmatpush1.bf16.msra.mxu0 0
    %1651 = vmatprep.subr.bf16.mxu0 0
    %1652 = vmatpush1.bf16.msra.mxu0 0
    %1653 = vmatprep.subr.bf16.mxu0 0
    %1654 = vmatpush1.bf16.msra.mxu0 0
    %1655 = vmatprep.subr.bf16.mxu0 0
    %1656 = vmatpush1.bf16.msra.mxu0 0
    %1657 = vmatprep.subr.bf16.mxu0 0
    %1658 = vmatpush1.bf16.msra.mxu0 0
    %1659 = vmatprep.subr.bf16.mxu0 0
    %1660 = vmatpush1.bf16.msra.mxu0 0
    %1661 = vmatprep.subr.bf16.mxu0 0
    %1662 = vmatpush1.bf16.msra.mxu0 0
    %1663 = vmatprep.subr.bf16.mxu0 0
    %1664 = vmatpush1.bf16.msra.mxu0 0
    %1665 = vmatprep.mubr.bf16.mxu0 0
    %1666 = vmatmul.mubr.bf16.gmra.mrb[0].mxu0 %v1631
    %v1667 = vpop.f32.mrb[0].mxu0
    %v1668 = vadd.f32 0.0, %v1667
    %v1669 = vpop.f32.mrb[0].mxu0
    %v1670 = vpop.f32.mrb[0].mxu0
    %v1671 = vpop.f32.mrb[0].mxu0
    %1672 = vdwg.mxu0
    %v1673 = vadd.f32 %v1627, %v1668
    %s1674 = scalar_lea.vmem [#allocation3], 2
    %v1675 = vld [vmem:[%s1674] sm:$0x3]
    %1676 = vrot.lane.b32.xlu0 %v1605, 32
    %v1677 = vpop.permute.xlu0 %1676
    %v1679 = vsel %vm196, %v1677, 0
    %1681 = vmatprep.subr.bf16.mxu0 0
    %1682 = vmatpush1.bf16.msra.mxu0 %v550
    %1683 = vmatprep.subr.bf16.mxu0 0
    %1684 = vmatpush1.bf16.msra.mxu0 %v551
    %1685 = vmatprep.subr.bf16.mxu0 0
    %1686 = vmatpush1.bf16.msra.mxu0 0
    %1687 = vmatprep.subr.bf16.mxu0 0
    %1688 = vmatpush1.bf16.msra.mxu0 0
    %1689 = vmatprep.subr.bf16.mxu0 0
    %1690 = vmatpush1.bf16.msra.mxu0 0
    %1691 = vmatprep.subr.bf16.mxu0 0
    %1692 = vmatpush1.bf16.msra.mxu0 0
    %1693 = vmatprep.subr.bf16.mxu0 0
    %1694 = vmatpush1.bf16.msra.mxu0 0
    %1695 = vmatprep.subr.bf16.mxu0 0
    %1696 = vmatpush1.bf16.msra.mxu0 0
    %1697 = vmatprep.subr.bf16.mxu0 0
    %1698 = vmatpush1.bf16.msra.mxu0 0
    %1699 = vmatprep.subr.bf16.mxu0 0
    %1700 = vmatpush1.bf16.msra.mxu0 0
    %1701 = vmatprep.subr.bf16.mxu0 0
    %1702 = vmatpush1.bf16.msra.mxu0 0
    %1703 = vmatprep.subr.bf16.mxu0 0
    %1704 = vmatpush1.bf16.msra.mxu0 0
    %1705 = vmatprep.subr.bf16.mxu0 0
    %1706 = vmatpush1.bf16.msra.mxu0 0
    %1707 = vmatprep.subr.bf16.mxu0 0
    %1708 = vmatpush1.bf16.msra.mxu0 0
    %1709 = vmatprep.subr.bf16.mxu0 0
    %1710 = vmatpush1.bf16.msra.mxu0 0
    %1711 = vmatprep.subr.bf16.mxu0 0
    %1712 = vmatpush1.bf16.msra.mxu0 0
    %1713 = vmatprep.mubr.bf16.mxu0 0
    %1714 = vmatmul.mubr.bf16.gmra.mrb[0].mxu0 %v1679
    %v1715 = vpop.f32.mrb[0].mxu0
    %v1716 = vadd.f32 0.0, %v1715
    %v1717 = vpop.f32.mrb[0].mxu0
    %v1718 = vpop.f32.mrb[0].mxu0
    %v1719 = vpop.f32.mrb[0].mxu0
    %1720 = vdwg.mxu0
    %v1721 = vadd.f32 %v1675, %v1716
    %v1722 = vxor.u32 %v1673, 2147483648
    %v1723 = vmul.f32 %v1722, 1.442695
    %v1724 = vpow.pop %v1723
    %v1725 = vadd.f32 %v1724, 1.0
    %v1726 = vrcp.pop %v1725
    %v1727 = vmul.f32 1.0, %v1726
    %v1728 = vtanh.pop %v1673
    %v1729 = vmul.f32 %v1727, %v1553
    %1731 = vrot.lane.b32.xlu0 %v1728, 64
    %v1732 = vpop.permute.xlu0 %1731
    %v1734 = vmul.f32 %v1727, %v1732
    %1736 = vrot.lane.b32.xlu0 %v1734, 32
    %v1737 = vpop.permute.xlu0 %1736
    %v1739 = vadd.f32 %v1729, %v1737
    %v1740 = vtanh.pop %v1739
    %1742 = vrot.lane.b32.xlu0 %v1740, 64
    %v1743 = vpop.permute.xlu0 %1742
    %v1745 = vmul.f32 %v1727, %v1743
    %v1746 = vxor.u32 %v1721, 2147483648
    %v1747 = vmul.f32 %v1746, 1.442695
    %v1748 = vpow.pop %v1747
    %v1749 = vadd.f32 %v1748, 1.0
    %v1750 = vrcp.pop %v1749
    %v1751 = vmul.f32 1.0, %v1750
    %v1752 = vtanh.pop %v1721
    %v1753 = vmul.f32 %v1751, %v1577
    %1755 = vrot.lane.b32.xlu0 %v1752, 64
    %v1756 = vpop.permute.xlu0 %1755
    %v1758 = vmul.f32 %v1751, %v1756
    %1760 = vrot.lane.b32.xlu0 %v1758, 32
    %v1761 = vpop.permute.xlu0 %1760
    %v1763 = vadd.f32 %v1753, %v1761
    %v1764 = vtanh.pop %v1763
    %1766 = vrot.lane.b32.xlu0 %v1764, 64
    %v1767 = vpop.permute.xlu0 %1766
    %v1769 = vmul.f32 %v1751, %v1767
    %v1770 = vpack.c.bf16 %v1745, %v1745
    %v1773 = vunpack.c.l.s4 1966171168
    %v1774 = vunpack.c.0.s8 %v1773
    %v1775 = vlaneseq
    %v1776 = vshrl.u32 %v1775, 7
    %v1777 = vsub.s32 %v1774, %v1776
    %v1778 = vrot.slane %v1770, %v1777
    %v1780 = vunpack.c.l.s4 1966171168
    %v1781 = vunpack.c.0.s8 %v1780
    %v1782 = vlaneseq
    %v1783 = vshrl.u32 %v1782, 7
    %v1784 = vsub.s32 %v1781, %v1783
    %v1785 = vrot.slane %v1778, %v1784
    %1786 = vrot.lane.b32.xlu0 %v1785, 32
    %v1787 = vpop.permute.xlu0 %1786
    %s1789 = scalar_lea.vmem %s8, 6
    %1790 = vst.msk [vmem:[%s1789] sm:$0x1] %vm673, %v1787
    %v1791 = vpack.c.bf16 %v1769, %v1769
    %v1794 = vunpack.c.l.s4 1966171168
    %v1795 = vunpack.c.0.s8 %v1794
    %v1796 = vlaneseq
    %v1797 = vshrl.u32 %v1796, 7
    %v1798 = vsub.s32 %v1795, %v1797
    %v1799 = vrot.slane %v1791, %v1798
    %v1801 = vunpack.c.l.s4 1966171168
    %v1802 = vunpack.c.0.s8 %v1801
    %v1803 = vlaneseq
    %v1804 = vshrl.u32 %v1803, 7
    %v1805 = vsub.s32 %v1802, %v1804
    %v1806 = vrot.slane %v1799, %v1805
    %1807 = vrot.lane.b32.xlu0 %v1806, 32
    %v1808 = vpop.permute.xlu0 %1807
    %s1810 = scalar_lea.vmem %s87, 1
    %1811 = vst.msk [vmem:[%s1810] sm:$0x1] %vm673, %v1808
    %s1812 = scalar_lea.vmem [#allocation2], 14
    %v1813 = vld [vmem:[%s1812] sm:$0x3]
    %1814 = vrot.lane.b32.xlu0 %v1770, 32
    %v1815 = vpop.permute.xlu0 %1814
    %v1817 = vsel %vm196, %v1815, 0
    %1819 = vmatprep.subr.bf16.mxu0 0
    %1820 = vmatpush1.bf16.msra.mxu0 %v491
    %1821 = vmatprep.subr.bf16.mxu0 0
    %1822 = vmatpush1.bf16.msra.mxu0 %v492
    %1823 = vmatprep.subr.bf16.mxu0 0
    %1824 = vmatpush1.bf16.msra.mxu0 0
    %1825 = vmatprep.subr.bf16.mxu0 0
    %1826 = vmatpush1.bf16.msra.mxu0 0
    %1827 = vmatprep.subr.bf16.mxu0 0
    %1828 = vmatpush1.bf16.msra.mxu0 0
    %1829 = vmatprep.subr.bf16.mxu0 0
    %1830 = vmatpush1.bf16.msra.mxu0 0
    %1831 = vmatprep.subr.bf16.mxu0 0
    %1832 = vmatpush1.bf16.msra.mxu0 0
    %1833 = vmatprep.subr.bf16.mxu0 0
    %1834 = vmatpush1.bf16.msra.mxu0 0
    %1835 = vmatprep.subr.bf16.mxu0 0
    %1836 = vmatpush1.bf16.msra.mxu0 0
    %1837 = vmatprep.subr.bf16.mxu0 0
    %1838 = vmatpush1.bf16.msra.mxu0 0
    %1839 = vmatprep.subr.bf16.mxu0 0
    %1840 = vmatpush1.bf16.msra.mxu0 0
    %1841 = vmatprep.subr.bf16.mxu0 0
    %1842 = vmatpush1.bf16.msra.mxu0 0
    %1843 = vmatprep.subr.bf16.mxu0 0
    %1844 = vmatpush1.bf16.msra.mxu0 0
    %1845 = vmatprep.subr.bf16.mxu0 0
    %1846 = vmatpush1.bf16.msra.mxu0 0
    %1847 = vmatprep.subr.bf16.mxu0 0
    %1848 = vmatpush1.bf16.msra.mxu0 0
    %1849 = vmatprep.subr.bf16.mxu0 0
    %1850 = vmatpush1.bf16.msra.mxu0 0
    %1851 = vmatprep.mubr.bf16.mxu0 0
    %1852 = vmatmul.mubr.bf16.gmra.mrb[0].mxu0 %v1817
    %v1853 = vpop.f32.mrb[0].mxu0
    %v1854 = vadd.f32 0.0, %v1853
    %v1855 = vpop.f32.mrb[0].mxu0
    %v1856 = vpop.f32.mrb[0].mxu0
    %v1857 = vpop.f32.mrb[0].mxu0
    %1858 = vdwg.mxu0
    %v1859 = vadd.f32 %v1813, %v1854
    %v1860 = vld [vmem:[#allocation3] sm:$0x3]
    %1861 = vrot.lane.b32.xlu0 %v1791, 32
    %v1862 = vpop.permute.xlu0 %1861
    %v1864 = vsel %vm196, %v1862, 0
    %1866 = vmatprep.subr.bf16.mxu0 0
    %1867 = vmatpush1.bf16.msra.mxu0 %v550
    %1868 = vmatprep.subr.bf16.mxu0 0
    %1869 = vmatpush1.bf16.msra.mxu0 %v551
    %1870 = vmatprep.subr.bf16.mxu0 0
    %1871 = vmatpush1.bf16.msra.mxu0 0
    %1872 = vmatprep.subr.bf16.mxu0 0
    %1873 = vmatpush1.bf16.msra.mxu0 0
    %1874 = vmatprep.subr.bf16.mxu0 0
    %1875 = vmatpush1.bf16.msra.mxu0 0
    %1876 = vmatprep.subr.bf16.mxu0 0
    %1877 = vmatpush1.bf16.msra.mxu0 0
    %1878 = vmatprep.subr.bf16.mxu0 0
    %1879 = vmatpush1.bf16.msra.mxu0 0
    %1880 = vmatprep.subr.bf16.mxu0 0
    %1881 = vmatpush1.bf16.msra.mxu0 0
    %1882 = vmatprep.subr.bf16.mxu0 0
    %1883 = vmatpush1.bf16.msra.mxu0 0
    %1884 = vmatprep.subr.bf16.mxu0 0
    %1885 = vmatpush1.bf16.msra.mxu0 0
    %1886 = vmatprep.subr.bf16.mxu0 0
    %1887 = vmatpush1.bf16.msra.mxu0 0
    %1888 = vmatprep.subr.bf16.mxu0 0
    %1889 = vmatpush1.bf16.msra.mxu0 0
    %1890 = vmatprep.subr.bf16.mxu0 0
    %1891 = vmatpush1.bf16.msra.mxu0 0
    %1892 = vmatprep.subr.bf16.mxu0 0
    %1893 = vmatpush1.bf16.msra.mxu0 0
    %1894 = vmatprep.subr.bf16.mxu0 0
    %1895 = vmatpush1.bf16.msra.mxu0 0
    %1896 = vmatprep.subr.bf16.mxu0 0
    %1897 = vmatpush1.bf16.msra.mxu0 0
    %1898 = vmatprep.mubr.bf16.mxu0 0
    %1899 = vmatmul.mubr.bf16.gmra.mrb[0].mxu0 %v1864
    %v1900 = vpop.f32.mrb[0].mxu0
    %v1901 = vadd.f32 0.0, %v1900
    %v1902 = vpop.f32.mrb[0].mxu0
    %v1903 = vpop.f32.mrb[0].mxu0
    %v1904 = vpop.f32.mrb[0].mxu0
    %1905 = vdwg.mxu0
    %v1906 = vadd.f32 %v1860, %v1901
    %v1907 = vxor.u32 %v1859, 2147483648
    %v1908 = vmul.f32 %v1907, 1.442695
    %v1909 = vpow.pop %v1908
    %v1910 = vadd.f32 %v1909, 1.0
    %v1911 = vrcp.pop %v1910
    %v1912 = vmul.f32 1.0, %v1911
    %v1913 = vtanh.pop %v1859
    %v1914 = vmul.f32 %v1912, %v1739
    %1916 = vrot.lane.b32.xlu0 %v1913, 64
    %v1917 = vpop.permute.xlu0 %1916
    %v1919 = vmul.f32 %v1912, %v1917
    %1921 = vrot.lane.b32.xlu0 %v1919, 32
    %v1922 = vpop.permute.xlu0 %1921
    %v1924 = vadd.f32 %v1914, %v1922
    %v1925 = vtanh.pop %v1924
    %1927 = vrot.lane.b32.xlu0 %v1925, 64
    %v1928 = vpop.permute.xlu0 %1927
    %v1930 = vmul.f32 %v1912, %v1928
    %v1931 = vxor.u32 %v1906, 2147483648
    %v1932 = vmul.f32 %v1931, 1.442695
    %v1933 = vpow.pop %v1932
    %v1934 = vadd.f32 %v1933, 1.0
    %v1935 = vrcp.pop %v1934
    %v1936 = vmul.f32 1.0, %v1935
    %v1937 = vtanh.pop %v1906
    %v1938 = vmul.f32 %v1936, %v1763
    %1940 = vrot.lane.b32.xlu0 %v1937, 64
    %v1941 = vpop.permute.xlu0 %1940
    %v1943 = vmul.f32 %v1936, %v1941
    %1945 = vrot.lane.b32.xlu0 %v1943, 32
    %v1946 = vpop.permute.xlu0 %1945
    %v1948 = vadd.f32 %v1938, %v1946
    %v1949 = vtanh.pop %v1948
    %1951 = vrot.lane.b32.xlu0 %v1949, 64
    %v1952 = vpop.permute.xlu0 %1951
    %v1954 = vmul.f32 %v1936, %v1952
    %v1955 = vpack.c.bf16 %v1930, %v1930
    %v1958 = vunpack.c.l.s4 1966171168
    %v1959 = vunpack.c.0.s8 %v1958
    %v1960 = vlaneseq
    %v1961 = vshrl.u32 %v1960, 7
    %v1962 = vsub.s32 %v1959, %v1961
    %v1963 = vrot.slane %v1955, %v1962
    %v1965 = vunpack.c.l.s4 1966171168
    %v1966 = vunpack.c.0.s8 %v1965
    %v1967 = vlaneseq
    %v1968 = vshrl.u32 %v1967, 7
    %v1969 = vsub.s32 %v1966, %v1968
    %v1970 = vrot.slane %v1963, %v1969
    %1971 = vrot.lane.b32.xlu0 %v1970, 32
    %v1972 = vpop.permute.xlu0 %1971
    %s1974 = scalar_lea.vmem %s8, 7
    %1975 = vst.msk [vmem:[%s1974] sm:$0x1] %vm673, %v1972
    %v1976 = vpack.c.bf16 %v1954, %v1954
    %v1979 = vunpack.c.l.s4 1966171168
    %v1980 = vunpack.c.0.s8 %v1979
    %v1981 = vlaneseq
    %v1982 = vshrl.u32 %v1981, 7
    %v1983 = vsub.s32 %v1980, %v1982
    %v1984 = vrot.slane %v1976, %v1983
    %v1986 = vunpack.c.l.s4 1966171168
    %v1987 = vunpack.c.0.s8 %v1986
    %v1988 = vlaneseq
    %v1989 = vshrl.u32 %v1988, 7
    %v1990 = vsub.s32 %v1987, %v1989
    %v1991 = vrot.slane %v1984, %v1990
    %1992 = vrot.lane.b32.xlu0 %v1991, 32
    %v1993 = vpop.permute.xlu0 %1992
    %1995 = vst.msk [vmem:[%s87] sm:$0x1] %vm673, %v1993
    %1997 = vrot.lane.b32.xlu0 %v1930, 32
    %v1998 = vpop.permute.xlu0 %1997
    %vm2000 = vcmask 254976
    %2001 = vst.msk [vmem:[#allocation4] sm:$0x3] %vm2000, %v1998
    %2003 = vrot.lane.b32.xlu0 %v1924, 96
    %v2004 = vpop.permute.xlu0 %2003
    %2006 = vst.msk [vmem:[#allocation5] sm:$0x3] %vm2000, %v2004
    %2008 = vrot.lane.b32.xlu0 %v1954, 32
    %v2009 = vpop.permute.xlu0 %2008
    %2011 = vst.msk [vmem:[#allocation6] sm:$0x3] %vm2000, %v2009
    %2013 = vrot.lane.b32.xlu0 %v1948, 96
    %v2014 = vpop.permute.xlu0 %2013
    %2016 = vst.msk [vmem:[#allocation7] sm:$0x3] %vm2000, %v2014
    %s2017 = ssub.s32 0, 0
    %s2018 = smul.u32 8, %s2017
    %p2019 = scmp.lt.s32.totalorder %s2018, 7
    %s2020 = scalar_select %p2019, %s2018, 7
    %s2021 = scalar_lea.vmem %s9, %s2020
    // Predicated region
    $region46: #{lstm_encoder_forward.2} parent=1 // pred_check
      _
    $region47: #{lstm_encoder_forward.2} parent=1 // pred_check_branch
      %2023 = sbr.rel (0) target = $region49
    $region48: #{lstm_encoder_forward.2} parent=1 // pred_region
      _
    $region49: #{lstm_encoder_forward.2} parent=1 // pred_fallthru
      _
    // Predicated region
    $region50: #{lstm_encoder_forward.2} parent=1 // pred_check
      _
    $region51: #{lstm_encoder_forward.2} parent=1 // pred_check_branch
      %2025 = sbr.rel (0) target = $region53
    $region52: #{lstm_encoder_forward.2} parent=1 // pred_region
      %s2026 = ssub.s32 0, 0
      %s2027 = smul.u32 8, %s2026
    $region53: #{lstm_encoder_forward.2} parent=1 // pred_fallthru
      _
    // Predicated region
    $region54: #{lstm_encoder_forward.2} parent=1 // pred_check
      _
    $region55: #{lstm_encoder_forward.2} parent=1 // pred_check_branch
      %2029 = sbr.rel (0) target = $region57
    $region56: #{lstm_encoder_forward.2} parent=1 // pred_region
      _
    $region57: #{lstm_encoder_forward.2} parent=1 // pred_fallthru
      _
    // Predicated region
    $region58: #{lstm_encoder_forward.2} parent=1 // pred_check
      _
    $region59: #{lstm_encoder_forward.2} parent=1 // pred_check_branch
      %2031 = sbr.rel (0) target = $region61
    $region60: #{lstm_encoder_forward.2} parent=1 // pred_region
      %s2032 = ssub.s32 0, 0
      %s2033 = smul.u32 8, %s2032
      %p2034 = scmp.lt.s32.totalorder %s2033, 7
      %s2035 = scalar_select %p2034, %s2033, 7
      %s2036 = scalar_lea.vmem %s9, %s2035
    $region61: #{lstm_encoder_forward.2} parent=1 // pred_fallthru
      _
    %2037 = vsyncpa [#allocation9], 1
    %2038 = vsyncpa [#allocation11], 1

// kernel: lstm_encoder_forward.3
$region0: #{lstm_encoder_forward.3}
  #allocation0 [shape = 'u32[]', space=smem, size = 0x4, offset = 0x4, fixed_abs, tag = 'smem constant byte address 0x4 - core index']
  #allocation1 [shape = 'u32[144,128]{1,0:T(1,128)}', space=vmem, size = 0x12000, scoped, tag = 'internal scratch']
  #allocation2 [shape = 'f32[8,2,128]{2,1,0:T(2,128)}', space=vmem, size = 0x2000, scoped, tag = 'scratch operand']
  #allocation3 [shape = 'f32[8,2,128]{2,1,0:T(2,128)}', space=vmem, size = 0x2000, scoped, tag = 'scratch operand']
  #allocation4 [shape = 'f32[2,32]{1,0:T(2,128)}', space=vmem, size = 0x400, scoped, tag = 'scratch operand']
  #allocation5 [shape = 'f32[2,32]{1,0:T(2,128)}', space=vmem, size = 0x400, scoped, tag = 'scratch operand']
  #allocation6 [shape = 'f32[2,32]{1,0:T(2,128)}', space=vmem, size = 0x400, scoped, tag = 'scratch operand']
  #allocation7 [shape = 'f32[2,32]{1,0:T(2,128)}', space=vmem, size = 0x400, scoped, tag = 'scratch operand']
  %s0 = inlined_call_operand.vmem [shape: bf16[8,2,64], index: 0, kind: input, shape index: {}, may-alias: {0,1}]
  %s1 = inlined_call_operand.vmem [shape: bf16[8,2,64], index: 1, kind: input, shape index: {}, may-alias: {0,1}]
  %s2 = inlined_call_operand.vmem [shape: bf16[64,128], index: 2, kind: input, shape index: {}]
  %s3 = inlined_call_operand.vmem [shape: bf16[64,128], index: 3, kind: input, shape index: {}]
  %s4 = inlined_call_operand.vmem [shape: f32[1,128], index: 4, kind: input, shape index: {}]
  %s5 = inlined_call_operand.vmem [shape: f32[1,128], index: 5, kind: input, shape index: {}]
  %s6 = inlined_call_operand.vmem [shape: bf16[32,128], index: 6, kind: input, shape index: {}]
  %s7 = inlined_call_operand.vmem [shape: bf16[32,128], index: 7, kind: input, shape index: {}]
  %s8 = inlined_call_operand.vmem [shape: bf16[8,2,32], index: 8, kind: output, shape index: {0}]
  %s9 = inlined_call_operand.vmem [shape: bf16[8,2,32], index: 9, kind: output, shape index: {1}]
  %10 = xla_tuple %s8, %s9
  %s11 = sld [smem:[#allocation0]]
  $region54: #{lstm_encoder_forward.3} parent=0
    _
  %s13 = ssub.s32 1, %s11
  %s14 = scalar_select 0, %s13, %s11
  // Predicated region
  $region2: #{lstm_encoder_forward.3} parent=0 // pred_check
    _
  $region3: #{lstm_encoder_forward.3} parent=0 // pred_check_branch
    %16 = sbr.rel (0) target = $region5
  $region4: #{lstm_encoder_forward.3} parent=0 // pred_region
    _
  $region5: #{lstm_encoder_forward.3} parent=0 // pred_fallthru
    _
  // Predicated region
  $region6: #{lstm_encoder_forward.3} parent=0 // pred_check
    _
  $region7: #{lstm_encoder_forward.3} parent=0 // pred_check_branch
    %18 = sbr.rel (0) target = $region9
  $region8: #{lstm_encoder_forward.3} parent=0 // pred_region
    %s19 = ssub.s32 0, 0
    %s20 = smul.u32 8, %s19
    %p21 = scmp.lt.s32.totalorder %s20, 7
    %s22 = scalar_select %p21, %s20, 7
    %s23 = scalar_lea.vmem %s1, %s22
    %s24 = ssub.s32 0, 0
    %s25 = smul.u32 8, %s24
  $region9: #{lstm_encoder_forward.3} parent=0 // pred_fallthru
    _
  // Predicated region
  $region10: #{lstm_encoder_forward.3} parent=0 // pred_check
    _
  $region11: #{lstm_encoder_forward.3} parent=0 // pred_check_branch
    %27 = sbr.rel (0) target = $region13
  $region12: #{lstm_encoder_forward.3} parent=0 // pred_region
    _
  $region13: #{lstm_encoder_forward.3} parent=0 // pred_fallthru
    _
  // Predicated region
  $region14: #{lstm_encoder_forward.3} parent=0 // pred_check
    _
  $region15: #{lstm_encoder_forward.3} parent=0 // pred_check_branch
    %29 = sbr.rel (0) target = $region17
  $region16: #{lstm_encoder_forward.3} parent=0 // pred_region
    _
  $region17: #{lstm_encoder_forward.3} parent=0 // pred_fallthru
    _
  // Predicated region
  $region18: #{lstm_encoder_forward.3} parent=0 // pred_check
    _
  $region19: #{lstm_encoder_forward.3} parent=0 // pred_check_branch
    %31 = sbr.rel (0) target = $region21
  $region20: #{lstm_encoder_forward.3} parent=0 // pred_region
    _
  $region21: #{lstm_encoder_forward.3} parent=0 // pred_fallthru
    _
  // Predicated region
  $region22: #{lstm_encoder_forward.3} parent=0 // pred_check
    _
  $region23: #{lstm_encoder_forward.3} parent=0 // pred_check_branch
    %33 = sbr.rel (0) target = $region25
  $region24: #{lstm_encoder_forward.3} parent=0 // pred_region
    _
  $region25: #{lstm_encoder_forward.3} parent=0 // pred_fallthru
    _
  // Predicated region
  $region26: #{lstm_encoder_forward.3} parent=0 // pred_check
    _
  $region27: #{lstm_encoder_forward.3} parent=0 // pred_check_branch
    %35 = sbr.rel (0) target = $region29
  $region28: #{lstm_encoder_forward.3} parent=0 // pred_region
    _
  $region29: #{lstm_encoder_forward.3} parent=0 // pred_fallthru
    _
  // Predicated region
  $region30: #{lstm_encoder_forward.3} parent=0 // pred_check
    _
  $region31: #{lstm_encoder_forward.3} parent=0 // pred_check_branch
    %37 = sbr.rel (0) target = $region33
  $region32: #{lstm_encoder_forward.3} parent=0 // pred_region
    _
  $region33: #{lstm_encoder_forward.3} parent=0 // pred_fallthru
    _
  %s38 = ssub.s32 0, 0
  %s39 = smul.u32 8, %s38
  %p40 = scmp.lt.s32.totalorder %s39, 7
  %s41 = scalar_select %p40, %s39, 7
  %s42 = scalar_lea.vmem %s1, %s41
  %s43 = ssub.s32 0, 0
  %s44 = smul.u32 8, %s43
  %p45 = scmp.lt.s32.totalorder %s44, 7
  %s46 = scalar_select %p45, %s44, 7
  %s47 = scalar_lea.vmem %s9, %s46
  %s48 = ssub.s32 0, 0
  %s49 = smul.u32 8, %s48
  %p50 = scmp.lt.s32.totalorder %s49, 7
  %s51 = scalar_select %p50, %s49, 7
  %s52 = scalar_lea.vmem %s1, %s51
  %s53 = ssub.s32 0, 0
  %s54 = smul.u32 8, %s53
  %s55 = ssub.s32 0, 0
  %s56 = smul.u32 8, %s55
  %p57 = scmp.lt.s32.totalorder %s56, 7
  %s58 = scalar_select %p57, %s56, 7
  %s59 = scalar_lea.vmem %s9, %s58
  %s60 = ssub.s32 0, 0
  %s61 = smul.u32 8, %s60
  %p63 = scmp.eq.s32.totalorder 0, 0
  // Predicated region
  $region34: #{lstm_encoder_forward.3} parent=0 // pred_check
    %p64 = pneg %p63
  $region35: #{lstm_encoder_forward.3} parent=0 // pred_check_branch
    %66 = sbr.rel (%p64) target = $region37
  $region36: #{lstm_encoder_forward.3} parent=0 // pred_region
    %vm67 = vcmask 254976
    %68 = vst.msk [vmem:[#allocation4] sm:$0x3] %vm67, 0.0
    %69 = vst.msk [vmem:[#allocation5] sm:$0x3] %vm67, 0.0
    %70 = vst.msk [vmem:[#allocation6] sm:$0x3] %vm67, 0.0
    %71 = vst.msk [vmem:[#allocation7] sm:$0x3] %vm67, 0.0
  $region37: #{lstm_encoder_forward.3} parent=0 // pred_fallthru
    _
  %v72 = vld [vmem:[%s0] sm:$0x1]
  %v73 = vld [vmem:[%s0 + $0x1] sm:$0x1]
  %v74 = vld [vmem:[%s0 + $0x2] sm:$0x1]
  %v75 = vld [vmem:[%s0 + $0x3] sm:$0x1]
  %v76 = vld [vmem:[%s0 + $0x4] sm:$0x1]
  %v77 = vld [vmem:[%s0 + $0x5] sm:$0x1]
  %v78 = vld [vmem:[%s0 + $0x6] sm:$0x1]
  %v79 = vld [vmem:[%s0 + $0x7] sm:$0x1]
  %v80 = vld [vmem:[%s52] sm:$0x1]
  %v81 = vld [vmem:[%s52 + $0x1] sm:$0x1]
  %v82 = vld [vmem:[%s52 + $0x2] sm:$0x1]
  %v83 = vld [vmem:[%s52 + $0x3] sm:$0x1]
  %v84 = vld [vmem:[%s52 + $0x4] sm:$0x1]
  %v85 = vld [vmem:[%s52 + $0x5] sm:$0x1]
  %v86 = vld [vmem:[%s52 + $0x6] sm:$0x1]
  %v87 = vld [vmem:[%s52 + $0x7] sm:$0x1]
  %v88 = vld [vmem:[%s2] sm:$0xf]
  %v89 = vld [vmem:[%s2 + $0x4] sm:$0xf]
  %v90 = vld [vmem:[%s2 + $0x8] sm:$0xf]
  %v91 = vld [vmem:[%s2 + $0xc] sm:$0xf]
  %v92 = vld [vmem:[%s2 + $0x10] sm:$0xf]
  %v93 = vld [vmem:[%s2 + $0x14] sm:$0xf]
  %v94 = vld [vmem:[%s2 + $0x18] sm:$0xf]
  %v95 = vld [vmem:[%s2 + $0x1c] sm:$0xf]
  %v96 = vld [vmem:[%s4] sm:$0x1]
  %v98 = vlaneseq
  %v99 = vshrl.u32 %v98, 7
  %v100 = vsub.s32 0, %v99
  %v101 = vrot.slane %v96, %v100
  %v111 = vcombine.low %v72, %v73
  %v112 = vcombine.low %v74, %v75
  %v113 = vcombine.low %v76, %v77
  %v114 = vcombine.low %v78, %v79
  %v116 = vunpack.c.l.s4 1966171168
  %v117 = vunpack.c.0.s8 %v116
  %v118 = vlaneseq
  %v119 = vshrl.u32 %v118, 7
  %v120 = vsub.s32 %v117, %v119
  %v121 = vrot.slane %v111, %v120
  %v123 = vunpack.c.l.s4 1966171168
  %v124 = vunpack.c.0.s8 %v123
  %v125 = vlaneseq
  %v126 = vshrl.u32 %v125, 7
  %v127 = vsub.s32 %v124, %v126
  %v128 = vrot.slane %v112, %v127
  %v130 = vunpack.c.l.s4 1966171168
  %v131 = vunpack.c.0.s8 %v130
  %v132 = vlaneseq
  %v133 = vshrl.u32 %v132, 7
  %v134 = vsub.s32 %v131, %v133
  %v135 = vrot.slane %v113, %v134
  %v137 = vunpack.c.l.s4 1966171168
  %v138 = vunpack.c.0.s8 %v137
  %v139 = vlaneseq
  %v140 = vshrl.u32 %v139, 7
  %v141 = vsub.s32 %v138, %v140
  %v142 = vrot.slane %v114, %v141
  %v143 = vcombine.low %v121, %v128
  %v144 = vcombine.low %v135, %v142
  %v146 = vunpack.c.l.s4 1966171168
  %v147 = vunpack.c.0.s8 %v146
  %v148 = vlaneseq
  %v149 = vshrl.u32 %v148, 7
  %v150 = vsub.s32 %v147, %v149
  %v151 = vrot.slane %v143, %v150
  %v153 = vunpack.c.l.s4 1966171168
  %v154 = vunpack.c.0.s8 %v153
  %v155 = vlaneseq
  %v156 = vshrl.u32 %v155, 7
  %v157 = vsub.s32 %v154, %v156
  %v158 = vrot.slane %v144, %v157
  %v159 = vcombine.low %v151, %v158
  %v168 = vunpack.c.l.b16 %v88
  %v169 = vunpack.c.l.b16 %v89
  %v170 = vunpack.c.l.b16 %v90
  %v171 = vunpack.c.l.b16 %v91
  %v172 = vunpack.c.l.b16 %v92
  %v173 = vunpack.c.l.b16 %v93
  %v174 = vunpack.c.l.b16 %v94
  %v175 = vunpack.c.l.b16 %v95
  %v176 = vpack.c.b16 %v169, %v168
  %v177 = vpack.c.b16 %v171, %v170
  %v178 = vpack.c.b16 %v173, %v172
  %v179 = vpack.c.b16 %v175, %v174
  %vm184 = vcmask 523264
  %v186 = vsel %vm184, %v159, 0
  %188 = vmatprep.subr.bf16.mxu0 0
  %189 = vmatpush1.bf16.msra.mxu0 %v176
  %190 = vmatprep.subr.bf16.mxu0 0
  %191 = vmatpush1.bf16.msra.mxu0 %v177
  %192 = vmatprep.subr.bf16.mxu0 0
  %193 = vmatpush1.bf16.msra.mxu0 %v178
  %194 = vmatprep.subr.bf16.mxu0 0
  %195 = vmatpush1.bf16.msra.mxu0 %v179
  %196 = vmatprep.subr.bf16.mxu0 0
  %197 = vmatpush1.bf16.msra.mxu0 0
  %198 = vmatprep.subr.bf16.mxu0 0
  %199 = vmatpush1.bf16.msra.mxu0 0
  %200 = vmatprep.subr.bf16.mxu0 0
  %201 = vmatpush1.bf16.msra.mxu0 0
  %202 = vmatprep.subr.bf16.mxu0 0
  %203 = vmatpush1.bf16.msra.mxu0 0
  %204 = vmatprep.subr.bf16.mxu0 0
  %205 = vmatpush1.bf16.msra.mxu0 0
  %206 = vmatprep.subr.bf16.mxu0 0
  %207 = vmatpush1.bf16.msra.mxu0 0
  %208 = vmatprep.subr.bf16.mxu0 0
  %209 = vmatpush1.bf16.msra.mxu0 0
  %210 = vmatprep.subr.bf16.mxu0 0
  %211 = vmatpush1.bf16.msra.mxu0 0
  %212 = vmatprep.subr.bf16.mxu0 0
  %213 = vmatpush1.bf16.msra.mxu0 0
  %214 = vmatprep.subr.bf16.mxu0 0
  %215 = vmatpush1.bf16.msra.mxu0 0
  %216 = vmatprep.subr.bf16.mxu0 0
  %217 = vmatpush1.bf16.msra.mxu0 0
  %218 = vmatprep.subr.bf16.mxu0 0
  %219 = vmatpush1.bf16.msra.mxu0 0
  %220 = vmatprep.mubr.bf16.mxu0 0
  %221 = vmatmul.mubr.bf16.gmra.mrb[0].mxu0 %v186
  %v222 = vpop.f32.mrb[0].mxu0
  %v223 = vadd.f32 %v101, %v222
  %v224 = vpop.f32.mrb[0].mxu0
  %v225 = vpop.f32.mrb[0].mxu0
  %v226 = vadd.f32 %v101, %v225
  %v227 = vpop.f32.mrb[0].mxu0
  %228 = vdwg.mxu0
  %v231 = vcombine.high %v223, %v223
  %v233 = vunpack.c.l.s4 1983009808
  %v234 = vunpack.c.0.s8 %v233
  %v235 = vlaneseq
  %v236 = vshrl.u32 %v235, 7
  %v237 = vsub.s32 %v234, %v236
  %v238 = vrot.slane %v223, %v237
  %v240 = vunpack.c.l.s4 1983009808
  %v241 = vunpack.c.0.s8 %v240
  %v242 = vlaneseq
  %v243 = vshrl.u32 %v242, 7
  %v244 = vsub.s32 %v241, %v243
  %v245 = vrot.slane %v231, %v244
  %v246 = vcombine.high %v238, %v238
  %v247 = vcombine.high %v245, %v245
  %v248 = vcombine.high %v226, %v226
  %v250 = vunpack.c.l.s4 1983009808
  %v251 = vunpack.c.0.s8 %v250
  %v252 = vlaneseq
  %v253 = vshrl.u32 %v252, 7
  %v254 = vsub.s32 %v251, %v253
  %v255 = vrot.slane %v226, %v254
  %v257 = vunpack.c.l.s4 1983009808
  %v258 = vunpack.c.0.s8 %v257
  %v259 = vlaneseq
  %v260 = vshrl.u32 %v259, 7
  %v261 = vsub.s32 %v258, %v260
  %v262 = vrot.slane %v248, %v261
  %v263 = vcombine.high %v255, %v255
  %v264 = vcombine.high %v262, %v262
  %273 = vst [vmem:[#allocation2] sm:$0x3] %v238
  %274 = vst [vmem:[#allocation2 + $0x2] sm:$0x3] %v246
  %275 = vst [vmem:[#allocation2 + $0x4] sm:$0x3] %v245
  %276 = vst [vmem:[#allocation2 + $0x6] sm:$0x3] %v247
  %277 = vst [vmem:[#allocation2 + $0x8] sm:$0x3] %v255
  %278 = vst [vmem:[#allocation2 + $0xa] sm:$0x3] %v263
  %279 = vst [vmem:[#allocation2 + $0xc] sm:$0x3] %v262
  %280 = vst [vmem:[#allocation2 + $0xe] sm:$0x3] %v264
  %v281 = vld [vmem:[%s3] sm:$0xf]
  %v282 = vld [vmem:[%s3 + $0x4] sm:$0xf]
  %v283 = vld [vmem:[%s3 + $0x8] sm:$0xf]
  %v284 = vld [vmem:[%s3 + $0xc] sm:$0xf]
  %v285 = vld [vmem:[%s3 + $0x10] sm:$0xf]
  %v286 = vld [vmem:[%s3 + $0x14] sm:$0xf]
  %v287 = vld [vmem:[%s3 + $0x18] sm:$0xf]
  %v288 = vld [vmem:[%s3 + $0x1c] sm:$0xf]
  %v289 = vld [vmem:[%s5] sm:$0x1]
  %v291 = vlaneseq
  %v292 = vshrl.u32 %v291, 7
  %v293 = vsub.s32 0, %v292
  %v294 = vrot.slane %v289, %v293
  %v304 = vcombine.low %v80, %v81
  %v305 = vcombine.low %v82, %v83
  %v306 = vcombine.low %v84, %v85
  %v307 = vcombine.low %v86, %v87
  %v309 = vunpack.c.l.s4 1966171168
  %v310 = vunpack.c.0.s8 %v309
  %v311 = vlaneseq
  %v312 = vshrl.u32 %v311, 7
  %v313 = vsub.s32 %v310, %v312
  %v314 = vrot.slane %v304, %v313
  %v316 = vunpack.c.l.s4 1966171168
  %v317 = vunpack.c.0.s8 %v316
  %v318 = vlaneseq
  %v319 = vshrl.u32 %v318, 7
  %v320 = vsub.s32 %v317, %v319
  %v321 = vrot.slane %v305, %v320
  %v323 = vunpack.c.l.s4 1966171168
  %v324 = vunpack.c.0.s8 %v323
  %v325 = vlaneseq
  %v326 = vshrl.u32 %v325, 7
  %v327 = vsub.s32 %v324, %v326
  %v328 = vrot.slane %v306, %v327
  %v330 = vunpack.c.l.s4 1966171168
  %v331 = vunpack.c.0.s8 %v330
  %v332 = vlaneseq
  %v333 = vshrl.u32 %v332, 7
  %v334 = vsub.s32 %v331, %v333
  %v335 = vrot.slane %v307, %v334
  %v336 = vcombine.low %v314, %v321
  %v337 = vcombine.low %v328, %v335
  %v339 = vunpack.c.l.s4 1966171168
  %v340 = vunpack.c.0.s8 %v339
  %v341 = vlaneseq
  %v342 = vshrl.u32 %v341, 7
  %v343 = vsub.s32 %v340, %v342
  %v344 = vrot.slane %v336, %v343
  %v346 = vunpack.c.l.s4 1966171168
  %v347 = vunpack.c.0.s8 %v346
  %v348 = vlaneseq
  %v349 = vshrl.u32 %v348, 7
  %v350 = vsub.s32 %v347, %v349
  %v351 = vrot.slane %v337, %v350
  %v352 = vcombine.low %v344, %v351
  %v361 = vunpack.c.l.b16 %v281
  %v362 = vunpack.c.l.b16 %v282
  %v363 = vunpack.c.l.b16 %v283
  %v364 = vunpack.c.l.b16 %v284
  %v365 = vunpack.c.l.b16 %v285
  %v366 = vunpack.c.l.b16 %v286
  %v367 = vunpack.c.l.b16 %v287
  %v368 = vunpack.c.l.b16 %v288
  %v369 = vpack.c.b16 %v362, %v361
  %v370 = vpack.c.b16 %v364, %v363
  %v371 = vpack.c.b16 %v366, %v365
  %v372 = vpack.c.b16 %v368, %v367
  %v378 = vsel %vm184, %v352, 0
  %380 = vmatprep.subr.bf16.mxu0 0
  %381 = vmatpush1.bf16.msra.mxu0 %v369
  %382 = vmatprep.subr.bf16.mxu0 0
  %383 = vmatpush1.bf16.msra.mxu0 %v370
  %384 = vmatprep.subr.bf16.mxu0 0
  %385 = vmatpush1.bf16.msra.mxu0 %v371
  %386 = vmatprep.subr.bf16.mxu0 0
  %387 = vmatpush1.bf16.msra.mxu0 %v372
  %388 = vmatprep.subr.bf16.mxu0 0
  %389 = vmatpush1.bf16.msra.mxu0 0
  %390 = vmatprep.subr.bf16.mxu0 0
  %391 = vmatpush1.bf16.msra.mxu0 0
  %392 = vmatprep.subr.bf16.mxu0 0
  %393 = vmatpush1.bf16.msra.mxu0 0
  %394 = vmatprep.subr.bf16.mxu0 0
  %395 = vmatpush1.bf16.msra.mxu0 0
  %396 = vmatprep.subr.bf16.mxu0 0
  %397 = vmatpush1.bf16.msra.mxu0 0
  %398 = vmatprep.subr.bf16.mxu0 0
  %399 = vmatpush1.bf16.msra.mxu0 0
  %400 = vmatprep.subr.bf16.mxu0 0
  %401 = vmatpush1.bf16.msra.mxu0 0
  %402 = vmatprep.subr.bf16.mxu0 0
  %403 = vmatpush1.bf16.msra.mxu0 0
  %404 = vmatprep.subr.bf16.mxu0 0
  %405 = vmatpush1.bf16.msra.mxu0 0
  %406 = vmatprep.subr.bf16.mxu0 0
  %407 = vmatpush1.bf16.msra.mxu0 0
  %408 = vmatprep.subr.bf16.mxu0 0
  %409 = vmatpush1.bf16.msra.mxu0 0
  %410 = vmatprep.subr.bf16.mxu0 0
  %411 = vmatpush1.bf16.msra.mxu0 0
  %412 = vmatprep.mubr.bf16.mxu0 0
  %413 = vmatmul.mubr.bf16.gmra.mrb[0].mxu0 %v378
  %v414 = vpop.f32.mrb[0].mxu0
  %v415 = vadd.f32 %v294, %v414
  %v416 = vpop.f32.mrb[0].mxu0
  %v417 = vpop.f32.mrb[0].mxu0
  %v418 = vadd.f32 %v294, %v417
  %v419 = vpop.f32.mrb[0].mxu0
  %420 = vdwg.mxu0
  %v423 = vcombine.high %v415, %v415
  %v425 = vunpack.c.l.s4 1983009808
  %v426 = vunpack.c.0.s8 %v425
  %v427 = vlaneseq
  %v428 = vshrl.u32 %v427, 7
  %v429 = vsub.s32 %v426, %v428
  %v430 = vrot.slane %v415, %v429
  %v432 = vunpack.c.l.s4 1983009808
  %v433 = vunpack.c.0.s8 %v432
  %v434 = vlaneseq
  %v435 = vshrl.u32 %v434, 7
  %v436 = vsub.s32 %v433, %v435
  %v437 = vrot.slane %v423, %v436
  %v438 = vcombine.high %v430, %v430
  %v439 = vcombine.high %v437, %v437
  %v440 = vcombine.high %v418, %v418
  %v442 = vunpack.c.l.s4 1983009808
  %v443 = vunpack.c.0.s8 %v442
  %v444 = vlaneseq
  %v445 = vshrl.u32 %v444, 7
  %v446 = vsub.s32 %v443, %v445
  %v447 = vrot.slane %v418, %v446
  %v449 = vunpack.c.l.s4 1983009808
  %v450 = vunpack.c.0.s8 %v449
  %v451 = vlaneseq
  %v452 = vshrl.u32 %v451, 7
  %v453 = vsub.s32 %v450, %v452
  %v454 = vrot.slane %v440, %v453
  %v455 = vcombine.high %v447, %v447
  %v456 = vcombine.high %v454, %v454
  %465 = vst [vmem:[#allocation3] sm:$0x3] %v430
  %466 = vst [vmem:[#allocation3 + $0x2] sm:$0x3] %v438
  %467 = vst [vmem:[#allocation3 + $0x4] sm:$0x3] %v437
  %468 = vst [vmem:[#allocation3 + $0x6] sm:$0x3] %v439
  %469 = vst [vmem:[#allocation3 + $0x8] sm:$0x3] %v447
  %470 = vst [vmem:[#allocation3 + $0xa] sm:$0x3] %v455
  %471 = vst [vmem:[#allocation3 + $0xc] sm:$0x3] %v454
  %472 = vst [vmem:[#allocation3 + $0xe] sm:$0x3] %v456
  %v473 = vld [vmem:[%s6] sm:$0xf]
  %v474 = vld [vmem:[%s6 + $0x4] sm:$0xf]
  %v475 = vld [vmem:[%s6 + $0x8] sm:$0xf]
  %v476 = vld [vmem:[%s6 + $0xc] sm:$0xf]
  %v477 = vld [vmem:[%s7] sm:$0xf]
  %v478 = vld [vmem:[%s7 + $0x4] sm:$0xf]
  %v479 = vld [vmem:[%s7 + $0x8] sm:$0xf]
  %v480 = vld [vmem:[%s7 + $0xc] sm:$0xf]
  %v481 = vld [vmem:[#allocation4] sm:$0x3]
  %v482 = vld [vmem:[#allocation5] sm:$0x3]
  %v483 = vld [vmem:[#allocation6] sm:$0x3]
  %v484 = vld [vmem:[#allocation7] sm:$0x3]
  %v485 = vld [vmem:[#allocation2] sm:$0x3]
  %v486 = vpack.c.bf16 %v481, %v481
  %v491 = vunpack.c.l.b16 %v473
  %v492 = vunpack.c.l.b16 %v474
  %v493 = vunpack.c.l.b16 %v475
  %v494 = vunpack.c.l.b16 %v476
  %v495 = vpack.c.b16 %v492, %v491
  %v496 = vpack.c.b16 %v494, %v493
  %vm499 = vcmask 261120
  %v501 = vsel %vm499, %v486, 0
  %503 = vmatprep.subr.bf16.mxu0 0
  %504 = vmatpush1.bf16.msra.mxu0 %v495
  %505 = vmatprep.subr.bf16.mxu0 0
  %506 = vmatpush1.bf16.msra.mxu0 %v496
  %507 = vmatprep.subr.bf16.mxu0 0
  %508 = vmatpush1.bf16.msra.mxu0 0
  %509 = vmatprep.subr.bf16.mxu0 0
  %510 = vmatpush1.bf16.msra.mxu0 0
  %511 = vmatprep.subr.bf16.mxu0 0
  %512 = vmatpush1.bf16.msra.mxu0 0
  %513 = vmatprep.subr.bf16.mxu0 0
  %514 = vmatpush1.bf16.msra.mxu0 0
  %515 = vmatprep.subr.bf16.mxu0 0
  %516 = vmatpush1.bf16.msra.mxu0 0
  %517 = vmatprep.subr.bf16.mxu0 0
  %518 = vmatpush1.bf16.msra.mxu0 0
  %519 = vmatprep.subr.bf16.mxu0 0
  %520 = vmatpush1.bf16.msra.mxu0 0
  %521 = vmatprep.subr.bf16.mxu0 0
  %522 = vmatpush1.bf16.msra.mxu0 0
  %523 = vmatprep.subr.bf16.mxu0 0
  %524 = vmatpush1.bf16.msra.mxu0 0
  %525 = vmatprep.subr.bf16.mxu0 0
  %526 = vmatpush1.bf16.msra.mxu0 0
  %527 = vmatprep.subr.bf16.mxu0 0
  %528 = vmatpush1.bf16.msra.mxu0 0
  %529 = vmatprep.subr.bf16.mxu0 0
  %530 = vmatpush1.bf16.msra.mxu0 0
  %531 = vmatprep.subr.bf16.mxu0 0
  %532 = vmatpush1.bf16.msra.mxu0 0
  %533 = vmatprep.subr.bf16.mxu0 0
  %534 = vmatpush1.bf16.msra.mxu0 0
  %535 = vmatprep.mubr.bf16.mxu0 0
  %536 = vmatmul.mubr.bf16.gmra.mrb[0].mxu0 %v501
  %v537 = vpop.f32.mrb[0].mxu0
  %v538 = vadd.f32 0.0, %v537
  %v539 = vpop.f32.mrb[0].mxu0
  %v540 = vpop.f32.mrb[0].mxu0
  %v541 = vpop.f32.mrb[0].mxu0
  %542 = vdwg.mxu0
  %v543 = vadd.f32 %v485, %v538
  %s544 = scalar_lea.vmem [#allocation3], 14
  %v545 = vld [vmem:[%s544] sm:$0x3]
  %v546 = vpack.c.bf16 %v483, %v483
  %v551 = vunpack.c.l.b16 %v477
  %v552 = vunpack.c.l.b16 %v478
  %v553 = vunpack.c.l.b16 %v479
  %v554 = vunpack.c.l.b16 %v480
  %v555 = vpack.c.b16 %v552, %v551
  %v556 = vpack.c.b16 %v554, %v553
  %v560 = vsel %vm499, %v546, 0
  %562 = vmatprep.subr.bf16.mxu0 0
  %563 = vmatpush1.bf16.msra.mxu0 %v555
  %564 = vmatprep.subr.bf16.mxu0 0
  %565 = vmatpush1.bf16.msra.mxu0 %v556
  %566 = vmatprep.subr.bf16.mxu0 0
  %567 = vmatpush1.bf16.msra.mxu0 0
  %568 = vmatprep.subr.bf16.mxu0 0
  %569 = vmatpush1.bf16.msra.mxu0 0
  %570 = vmatprep.subr.bf16.mxu0 0
  %571 = vmatpush1.bf16.msra.mxu0 0
  %572 = vmatprep.subr.bf16.mxu0 0
  %573 = vmatpush1.bf16.msra.mxu0 0
  %574 = vmatprep.subr.bf16.mxu0 0
  %575 = vmatpush1.bf16.msra.mxu0 0
  %576 = vmatprep.subr.bf16.mxu0 0
  %577 = vmatpush1.bf16.msra.mxu0 0
  %578 = vmatprep.subr.bf16.mxu0 0
  %579 = vmatpush1.bf16.msra.mxu0 0
  %580 = vmatprep.subr.bf16.mxu0 0
  %581 = vmatpush1.bf16.msra.mxu0 0
  %582 = vmatprep.subr.bf16.mxu0 0
  %583 = vmatpush1.bf16.msra.mxu0 0
  %584 = vmatprep.subr.bf16.mxu0 0
  %585 = vmatpush1.bf16.msra.mxu0 0
  %586 = vmatprep.subr.bf16.mxu0 0
  %587 = vmatpush1.bf16.msra.mxu0 0
  %588 = vmatprep.subr.bf16.mxu0 0
  %589 = vmatpush1.bf16.msra.mxu0 0
  %590 = vmatprep.subr.bf16.mxu0 0
  %591 = vmatpush1.bf16.msra.mxu0 0
  %592 = vmatprep.subr.bf16.mxu0 0
  %593 = vmatpush1.bf16.msra.mxu0 0
  %594 = vmatprep.mubr.bf16.mxu0 0
  %595 = vmatmul.mubr.bf16.gmra.mrb[0].mxu0 %v560
  %v596 = vpop.f32.mrb[0].mxu0
  %v597 = vadd.f32 0.0, %v596
  %v598 = vpop.f32.mrb[0].mxu0
  %v599 = vpop.f32.mrb[0].mxu0
  %v600 = vpop.f32.mrb[0].mxu0
  %601 = vdwg.mxu0
  %v602 = vadd.f32 %v545, %v597
  %v603 = vxor.u32 %v543, 2147483648
  %v604 = vmul.f32 %v603, 1.442695
  %v605 = vpow.pop %v604
  %v606 = vadd.f32 %v605, 1.0
  %v607 = vrcp.pop %v606
  %v608 = vmul.f32 1.0, %v607
  %v609 = vtanh.pop %v543
  %611 = vrot.lane.b32.xlu0 %v482, 32
  %v612 = vpop.permute.xlu0 %611
  %v614 = vmul.f32 %v608, %v612
  %616 = vrot.lane.b32.xlu0 %v609, 64
  %v617 = vpop.permute.xlu0 %616
  %v619 = vmul.f32 %v608, %v617
  %621 = vrot.lane.b32.xlu0 %v619, 32
  %v622 = vpop.permute.xlu0 %621
  %v624 = vadd.f32 %v614, %v622
  %v625 = vtanh.pop %v624
  %627 = vrot.lane.b32.xlu0 %v625, 64
  %v628 = vpop.permute.xlu0 %627
  %v630 = vmul.f32 %v608, %v628
  %v631 = vxor.u32 %v602, 2147483648
  %v632 = vmul.f32 %v631, 1.442695
  %v633 = vpow.pop %v632
  %v634 = vadd.f32 %v633, 1.0
  %v635 = vrcp.pop %v634
  %v636 = vmul.f32 1.0, %v635
  %v637 = vtanh.pop %v602
  %639 = vrot.lane.b32.xlu0 %v484, 32
  %v640 = vpop.permute.xlu0 %639
  %v642 = vmul.f32 %v636, %v640
  %644 = vrot.lane.b32.xlu0 %v637, 64
  %v645 = vpop.permute.xlu0 %644
  %v647 = vmul.f32 %v636, %v645
  %649 = vrot.lane.b32.xlu0 %v647, 32
  %v650 = vpop.permute.xlu0 %649
  %v652 = vadd.f32 %v642, %v650
  %v653 = vtanh.pop %v652
  %655 = vrot.lane.b32.xlu0 %v653, 64
  %v656 = vpop.permute.xlu0 %655
  %v658 = vmul.f32 %v636, %v656
  %v659 = vpack.c.bf16 %v630, %v630
  %v662 = vunpack.c.l.s4 1966171168
  %v663 = vunpack.c.0.s8 %v662
  %v664 = vlaneseq
  %v665 = vshrl.u32 %v664, 7
  %v666 = vsub.s32 %v663, %v665
  %v667 = vrot.slane %v659, %v666
  %v669 = vunpack.c.l.s4 1966171168
  %v670 = vunpack.c.0.s8 %v669
  %v671 = vlaneseq
  %v672 = vshrl.u32 %v671, 7
  %v673 = vsub.s32 %v670, %v672
  %v674 = vrot.slane %v667, %v673
  %675 = vrot.lane.b32.xlu0 %v674, 32
  %v676 = vpop.permute.xlu0 %675
  %vm678 = vcmask 253952
  %679 = vst.msk [vmem:[%s8] sm:$0x1] %vm678, %v676
  %v680 = vpack.c.bf16 %v658, %v658
  %v683 = vunpack.c.l.s4 1966171168
  %v684 = vunpack.c.0.s8 %v683
  %v685 = vlaneseq
  %v686 = vshrl.u32 %v685, 7
  %v687 = vsub.s32 %v684, %v686
  %v688 = vrot.slane %v680, %v687
  %v690 = vunpack.c.l.s4 1966171168
  %v691 = vunpack.c.0.s8 %v690
  %v692 = vlaneseq
  %v693 = vshrl.u32 %v692, 7
  %v694 = vsub.s32 %v691, %v693
  %v695 = vrot.slane %v688, %v694
  %696 = vrot.lane.b32.xlu0 %v695, 32
  %v697 = vpop.permute.xlu0 %696
  %s699 = scalar_lea.vmem %s59, 7
  %700 = vst.msk [vmem:[%s699] sm:$0x1] %vm678, %v697
  %s701 = scalar_lea.vmem [#allocation2], 2
  %v702 = vld [vmem:[%s701] sm:$0x3]
  %703 = vrot.lane.b32.xlu0 %v659, 32
  %v704 = vpop.permute.xlu0 %703
  %v706 = vsel %vm499, %v704, 0
  %708 = vmatprep.subr.bf16.mxu0 0
  %709 = vmatpush1.bf16.msra.mxu0 %v495
  %710 = vmatprep.subr.bf16.mxu0 0
  %711 = vmatpush1.bf16.msra.mxu0 %v496
  %712 = vmatprep.subr.bf16.mxu0 0
  %713 = vmatpush1.bf16.msra.mxu0 0
  %714 = vmatprep.subr.bf16.mxu0 0
  %715 = vmatpush1.bf16.msra.mxu0 0
  %716 = vmatprep.subr.bf16.mxu0 0
  %717 = vmatpush1.bf16.msra.mxu0 0
  %718 = vmatprep.subr.bf16.mxu0 0
  %719 = vmatpush1.bf16.msra.mxu0 0
  %720 = vmatprep.subr.bf16.mxu0 0
  %721 = vmatpush1.bf16.msra.mxu0 0
  %722 = vmatprep.subr.bf16.mxu0 0
  %723 = vmatpush1.bf16.msra.mxu0 0
  %724 = vmatprep.subr.bf16.mxu0 0
  %725 = vmatpush1.bf16.msra.mxu0 0
  %726 = vmatprep.subr.bf16.mxu0 0
  %727 = vmatpush1.bf16.msra.mxu0 0
  %728 = vmatprep.subr.bf16.mxu0 0
  %729 = vmatpush1.bf16.msra.mxu0 0
  %730 = vmatprep.subr.bf16.mxu0 0
  %731 = vmatpush1.bf16.msra.mxu0 0
  %732 = vmatprep.subr.bf16.mxu0 0
  %733 = vmatpush1.bf16.msra.mxu0 0
  %734 = vmatprep.subr.bf16.mxu0 0
  %735 = vmatpush1.bf16.msra.mxu0 0
  %736 = vmatprep.subr.bf16.mxu0 0
  %737 = vmatpush1.bf16.msra.mxu0 0
  %738 = vmatprep.subr.bf16.mxu0 0
  %739 = vmatpush1.bf16.msra.mxu0 0
  %740 = vmatprep.mubr.bf16.mxu0 0
  %741 = vmatmul.mubr.bf16.gmra.mrb[0].mxu0 %v706
  %v742 = vpop.f32.mrb[0].mxu0
  %v743 = vadd.f32 0.0, %v742
  %v744 = vpop.f32.mrb[0].mxu0
  %v745 = vpop.f32.mrb[0].mxu0
  %v746 = vpop.f32.mrb[0].mxu0
  %747 = vdwg.mxu0
  %v748 = vadd.f32 %v702, %v743
  %s749 = scalar_lea.vmem [#allocation3], 12
  %v750 = vld [vmem:[%s749] sm:$0x3]
  %751 = vrot.lane.b32.xlu0 %v680, 32
  %v752 = vpop.permute.xlu0 %751
  %v754 = vsel %vm499, %v752, 0
  %756 = vmatprep.subr.bf16.mxu0 0
  %757 = vmatpush1.bf16.msra.mxu0 %v555
  %758 = vmatprep.subr.bf16.mxu0 0
  %759 = vmatpush1.bf16.msra.mxu0 %v556
  %760 = vmatprep.subr.bf16.mxu0 0
  %761 = vmatpush1.bf16.msra.mxu0 0
  %762 = vmatprep.subr.bf16.mxu0 0
  %763 = vmatpush1.bf16.msra.mxu0 0
  %764 = vmatprep.subr.bf16.mxu0 0
  %765 = vmatpush1.bf16.msra.mxu0 0
  %766 = vmatprep.subr.bf16.mxu0 0
  %767 = vmatpush1.bf16.msra.mxu0 0
  %768 = vmatprep.subr.bf16.mxu0 0
  %769 = vmatpush1.bf16.msra.mxu0 0
  %770 = vmatprep.subr.bf16.mxu0 0
  %771 = vmatpush1.bf16.msra.mxu0 0
  %772 = vmatprep.subr.bf16.mxu0 0
  %773 = vmatpush1.bf16.msra.mxu0 0
  %774 = vmatprep.subr.bf16.mxu0 0
  %775 = vmatpush1.bf16.msra.mxu0 0
  %776 = vmatprep.subr.bf16.mxu0 0
  %777 = vmatpush1.bf16.msra.mxu0 0
  %778 = vmatprep.subr.bf16.mxu0 0
  %779 = vmatpush1.bf16.msra.mxu0 0
  %780 = vmatprep.subr.bf16.mxu0 0
  %781 = vmatpush1.bf16.msra.mxu0 0
  %782 = vmatprep.subr.bf16.mxu0 0
  %783 = vmatpush1.bf16.msra.mxu0 0
  %784 = vmatprep.subr.bf16.mxu0 0
  %785 = vmatpush1.bf16.msra.mxu0 0
  %786 = vmatprep.subr.bf16.mxu0 0
  %787 = vmatpush1.bf16.msra.mxu0 0
  %788 = vmatprep.mubr.bf16.mxu0 0
  %789 = vmatmul.mubr.bf16.gmra.mrb[0].mxu0 %v754
  %v790 = vpop.f32.mrb[0].mxu0
  %v791 = vadd.f32 0.0, %v790
  %v792 = vpop.f32.mrb[0].mxu0
  %v793 = vpop.f32.mrb[0].mxu0
  %v794 = vpop.f32.mrb[0].mxu0
  %795 = vdwg.mxu0
  %v796 = vadd.f32 %v750, %v791
  %v797 = vxor.u32 %v748, 2147483648
  %v798 = vmul.f32 %v797, 1.442695
  %v799 = vpow.pop %v798
  %v800 = vadd.f32 %v799, 1.0
  %v801 = vrcp.pop %v800
  %v802 = vmul.f32 1.0, %v801
  %v803 = vtanh.pop %v748
  %v804 = vmul.f32 %v802, %v624
  %806 = vrot.lane.b32.xlu0 %v803, 64
  %v807 = vpop.permute.xlu0 %806
  %v809 = vmul.f32 %v802, %v807
  %811 = vrot.lane.b32.xlu0 %v809, 32
  %v812 = vpop.permute.xlu0 %811
  %v814 = vadd.f32 %v804, %v812
  %v815 = vtanh.pop %v814
  %817 = vrot.lane.b32.xlu0 %v815, 64
  %v818 = vpop.permute.xlu0 %817
  %v820 = vmul.f32 %v802, %v818
  %v821 = vxor.u32 %v796, 2147483648
  %v822 = vmul.f32 %v821, 1.442695
  %v823 = vpow.pop %v822
  %v824 = vadd.f32 %v823, 1.0
  %v825 = vrcp.pop %v824
  %v826 = vmul.f32 1.0, %v825
  %v827 = vtanh.pop %v796
  %v828 = vmul.f32 %v826, %v652
  %830 = vrot.lane.b32.xlu0 %v827, 64
  %v831 = vpop.permute.xlu0 %830
  %v833 = vmul.f32 %v826, %v831
  %835 = vrot.lane.b32.xlu0 %v833, 32
  %v836 = vpop.permute.xlu0 %835
  %v838 = vadd.f32 %v828, %v836
  %v839 = vtanh.pop %v838
  %841 = vrot.lane.b32.xlu0 %v839, 64
  %v842 = vpop.permute.xlu0 %841
  %v844 = vmul.f32 %v826, %v842
  %v845 = vpack.c.bf16 %v820, %v820
  %v848 = vunpack.c.l.s4 1966171168
  %v849 = vunpack.c.0.s8 %v848
  %v850 = vlaneseq
  %v851 = vshrl.u32 %v850, 7
  %v852 = vsub.s32 %v849, %v851
  %v853 = vrot.slane %v845, %v852
  %v855 = vunpack.c.l.s4 1966171168
  %v856 = vunpack.c.0.s8 %v855
  %v857 = vlaneseq
  %v858 = vshrl.u32 %v857, 7
  %v859 = vsub.s32 %v856, %v858
  %v860 = vrot.slane %v853, %v859
  %861 = vrot.lane.b32.xlu0 %v860, 32
  %v862 = vpop.permute.xlu0 %861
  %s864 = scalar_lea.vmem %s8, 1
  %865 = vst.msk [vmem:[%s864] sm:$0x1] %vm678, %v862
  %v866 = vpack.c.bf16 %v844, %v844
  %v869 = vunpack.c.l.s4 1966171168
  %v870 = vunpack.c.0.s8 %v869
  %v871 = vlaneseq
  %v872 = vshrl.u32 %v871, 7
  %v873 = vsub.s32 %v870, %v872
  %v874 = vrot.slane %v866, %v873
  %v876 = vunpack.c.l.s4 1966171168
  %v877 = vunpack.c.0.s8 %v876
  %v878 = vlaneseq
  %v879 = vshrl.u32 %v878, 7
  %v880 = vsub.s32 %v877, %v879
  %v881 = vrot.slane %v874, %v880
  %882 = vrot.lane.b32.xlu0 %v881, 32
  %v883 = vpop.permute.xlu0 %882
  %s885 = scalar_lea.vmem %s59, 6
  %886 = vst.msk [vmem:[%s885] sm:$0x1] %vm678, %v883
  %s887 = scalar_lea.vmem [#allocation2], 4
  %v888 = vld [vmem:[%s887] sm:$0x3]
  %889 = vrot.lane.b32.xlu0 %v845, 32
  %v890 = vpop.permute.xlu0 %889
  %v892 = vsel %vm499, %v890, 0
  %894 = vmatprep.subr.bf16.mxu0 0
  %895 = vmatpush1.bf16.msra.mxu0 %v495
  %896 = vmatprep.subr.bf16.mxu0 0
  %897 = vmatpush1.bf16.msra.mxu0 %v496
  %898 = vmatprep.subr.bf16.mxu0 0
  %899 = vmatpush1.bf16.msra.mxu0 0
  %900 = vmatprep.subr.bf16.mxu0 0
  %901 = vmatpush1.bf16.msra.mxu0 0
  %902 = vmatprep.subr.bf16.mxu0 0
  %903 = vmatpush1.bf16.msra.mxu0 0
  %904 = vmatprep.subr.bf16.mxu0 0
  %905 = vmatpush1.bf16.msra.mxu0 0
  %906 = vmatprep.subr.bf16.mxu0 0
  %907 = vmatpush1.bf16.msra.mxu0 0
  %908 = vmatprep.subr.bf16.mxu0 0
  %909 = vmatpush1.bf16.msra.mxu0 0
  %910 = vmatprep.subr.bf16.mxu0 0
  %911 = vmatpush1.bf16.msra.mxu0 0
  %912 = vmatprep.subr.bf16.mxu0 0
  %913 = vmatpush1.bf16.msra.mxu0 0
  %914 = vmatprep.subr.bf16.mxu0 0
  %915 = vmatpush1.bf16.msra.mxu0 0
  %916 = vmatprep.subr.bf16.mxu0 0
  %917 = vmatpush1.bf16.msra.mxu0 0
  %918 = vmatprep.subr.bf16.mxu0 0
  %919 = vmatpush1.bf16.msra.mxu0 0
  %920 = vmatprep.subr.bf16.mxu0 0
  %921 = vmatpush1.bf16.msra.mxu0 0
  %922 = vmatprep.subr.bf16.mxu0 0
  %923 = vmatpush1.bf16.msra.mxu0 0
  %924 = vmatprep.subr.bf16.mxu0 0
  %925 = vmatpush1.bf16.msra.mxu0 0
  %926 = vmatprep.mubr.bf16.mxu0 0
  %927 = vmatmul.mubr.bf16.gmra.mrb[0].mxu0 %v892
  %v928 = vpop.f32.mrb[0].mxu0
  %v929 = vadd.f32 0.0, %v928
  %v930 = vpop.f32.mrb[0].mxu0
  %v931 = vpop.f32.mrb[0].mxu0
  %v932 = vpop.f32.mrb[0].mxu0
  %933 = vdwg.mxu0
  %v934 = vadd.f32 %v888, %v929
  %s935 = scalar_lea.vmem [#allocation3], 10
  %v936 = vld [vmem:[%s935] sm:$0x3]
  %937 = vrot.lane.b32.xlu0 %v866, 32
  %v938 = vpop.permute.xlu0 %937
  %v940 = vsel %vm499, %v938, 0
  %942 = vmatprep.subr.bf16.mxu0 0
  %943 = vmatpush1.bf16.msra.mxu0 %v555
  %944 = vmatprep.subr.bf16.mxu0 0
  %945 = vmatpush1.bf16.msra.mxu0 %v556
  %946 = vmatprep.subr.bf16.mxu0 0
  %947 = vmatpush1.bf16.msra.mxu0 0
  %948 = vmatprep.subr.bf16.mxu0 0
  %949 = vmatpush1.bf16.msra.mxu0 0
  %950 = vmatprep.subr.bf16.mxu0 0
  %951 = vmatpush1.bf16.msra.mxu0 0
  %952 = vmatprep.subr.bf16.mxu0 0
  %953 = vmatpush1.bf16.msra.mxu0 0
  %954 = vmatprep.subr.bf16.mxu0 0
  %955 = vmatpush1.bf16.msra.mxu0 0
  %956 = vmatprep.subr.bf16.mxu0 0
  %957 = vmatpush1.bf16.msra.mxu0 0
  %958 = vmatprep.subr.bf16.mxu0 0
  %959 = vmatpush1.bf16.msra.mxu0 0
  %960 = vmatprep.subr.bf16.mxu0 0
  %961 = vmatpush1.bf16.msra.mxu0 0
  %962 = vmatprep.subr.bf16.mxu0 0
  %963 = vmatpush1.bf16.msra.mxu0 0
  %964 = vmatprep.subr.bf16.mxu0 0
  %965 = vmatpush1.bf16.msra.mxu0 0
  %966 = vmatprep.subr.bf16.mxu0 0
  %967 = vmatpush1.bf16.msra.mxu0 0
  %968 = vmatprep.subr.bf16.mxu0 0
  %969 = vmatpush1.bf16.msra.mxu0 0
  %970 = vmatprep.subr.bf16.mxu0 0
  %971 = vmatpush1.bf16.msra.mxu0 0
  %972 = vmatprep.subr.bf16.mxu0 0
  %973 = vmatpush1.bf16.msra.mxu0 0
  %974 = vmatprep.mubr.bf16.mxu0 0
  %975 = vmatmul.mubr.bf16.gmra.mrb[0].mxu0 %v940
  %v976 = vpop.f32.mrb[0].mxu0
  %v977 = vadd.f32 0.0, %v976
  %v978 = vpop.f32.mrb[0].mxu0
  %v979 = vpop.f32.mrb[0].mxu0
  %v980 = vpop.f32.mrb[0].mxu0
  %981 = vdwg.mxu0
  %v982 = vadd.f32 %v936, %v977
  %v983 = vxor.u32 %v934, 2147483648
  %v984 = vmul.f32 %v983, 1.442695
  %v985 = vpow.pop %v984
  %v986 = vadd.f32 %v985, 1.0
  %v987 = vrcp.pop %v986
  %v988 = vmul.f32 1.0, %v987
  %v989 = vtanh.pop %v934
  %v990 = vmul.f32 %v988, %v814
  %992 = vrot.lane.b32.xlu0 %v989, 64
  %v993 = vpop.permute.xlu0 %992
  %v995 = vmul.f32 %v988, %v993
  %997 = vrot.lane.b32.xlu0 %v995, 32
  %v998 = vpop.permute.xlu0 %997
  %v1000 = vadd.f32 %v990, %v998
  %v1001 = vtanh.pop %v1000
  %1003 = vrot.lane.b32.xlu0 %v1001, 64
  %v1004 = vpop.permute.xlu0 %1003
  %v1006 = vmul.f32 %v988, %v1004
  %v1007 = vxor.u32 %v982, 2147483648
  %v1008 = vmul.f32 %v1007, 1.442695
  %v1009 = vpow.pop %v1008
  %v1010 = vadd.f32 %v1009, 1.0
  %v1011 = vrcp.pop %v1010
  %v1012 = vmul.f32 1.0, %v1011
  %v1013 = vtanh.pop %v982
  %v1014 = vmul.f32 %v1012, %v838
  %1016 = vrot.lane.b32.xlu0 %v1013, 64
  %v1017 = vpop.permute.xlu0 %1016
  %v1019 = vmul.f32 %v1012, %v1017
  %1021 = vrot.lane.b32.xlu0 %v1019, 32
  %v1022 = vpop.permute.xlu0 %1021
  %v1024 = vadd.f32 %v1014, %v1022
  %v1025 = vtanh.pop %v1024
  %1027 = vrot.lane.b32.xlu0 %v1025, 64
  %v1028 = vpop.permute.xlu0 %1027
  %v1030 = vmul.f32 %v1012, %v1028
  %v1031 = vpack.c.bf16 %v1006, %v1006
  %v1034 = vunpack.c.l.s4 1966171168
  %v1035 = vunpack.c.0.s8 %v1034
  %v1036 = vlaneseq
  %v1037 = vshrl.u32 %v1036, 7
  %v1038 = vsub.s32 %v1035, %v1037
  %v1039 = vrot.slane %v1031, %v1038
  %v1041 = vunpack.c.l.s4 1966171168
  %v1042 = vunpack.c.0.s8 %v1041
  %v1043 = vlaneseq
  %v1044 = vshrl.u32 %v1043, 7
  %v1045 = vsub.s32 %v1042, %v1044
  %v1046 = vrot.slane %v1039, %v1045
  %1047 = vrot.lane.b32.xlu0 %v1046, 32
  %v1048 = vpop.permute.xlu0 %1047
  %s1050 = scalar_lea.vmem %s8, 2
  %1051 = vst.msk [vmem:[%s1050] sm:$0x1] %vm678, %v1048
  %v1052 = vpack.c.bf16 %v1030, %v1030
  %v1055 = vunpack.c.l.s4 1966171168
  %v1056 = vunpack.c.0.s8 %v1055
  %v1057 = vlaneseq
  %v1058 = vshrl.u32 %v1057, 7
  %v1059 = vsub.s32 %v1056, %v1058
  %v1060 = vrot.slane %v1052, %v1059
  %v1062 = vunpack.c.l.s4 1966171168
  %v1063 = vunpack.c.0.s8 %v1062
  %v1064 = vlaneseq
  %v1065 = vshrl.u32 %v1064, 7
  %v1066 = vsub.s32 %v1063, %v1065
  %v1067 = vrot.slane %v1060, %v1066
  %1068 = vrot.lane.b32.xlu0 %v1067, 32
  %v1069 = vpop.permute.xlu0 %1068
  %s1071 = scalar_lea.vmem %s59, 5
  %1072 = vst.msk [vmem:[%s1071] sm:$0x1] %vm678, %v1069
  %s1073 = scalar_lea.vmem [#allocation2], 6
  %v1074 = vld [vmem:[%s1073] sm:$0x3]
  %1075 = vrot.lane.b32.xlu0 %v1031, 32
  %v1076 = vpop.permute.xlu0 %1075
  %v1078 = vsel %vm499, %v1076, 0
  %1080 = vmatprep.subr.bf16.mxu0 0
  %1081 = vmatpush1.bf16.msra.mxu0 %v495
  %1082 = vmatprep.subr.bf16.mxu0 0
  %1083 = vmatpush1.bf16.msra.mxu0 %v496
  %1084 = vmatprep.subr.bf16.mxu0 0
  %1085 = vmatpush1.bf16.msra.mxu0 0
  %1086 = vmatprep.subr.bf16.mxu0 0
  %1087 = vmatpush1.bf16.msra.mxu0 0
  %1088 = vmatprep.subr.bf16.mxu0 0
  %1089 = vmatpush1.bf16.msra.mxu0 0
  %1090 = vmatprep.subr.bf16.mxu0 0
  %1091 = vmatpush1.bf16.msra.mxu0 0
  %1092 = vmatprep.subr.bf16.mxu0 0
  %1093 = vmatpush1.bf16.msra.mxu0 0
  %1094 = vmatprep.subr.bf16.mxu0 0
  %1095 = vmatpush1.bf16.msra.mxu0 0
  %1096 = vmatprep.subr.bf16.mxu0 0
  %1097 = vmatpush1.bf16.msra.mxu0 0
  %1098 = vmatprep.subr.bf16.mxu0 0
  %1099 = vmatpush1.bf16.msra.mxu0 0
  %1100 = vmatprep.subr.bf16.mxu0 0
  %1101 = vmatpush1.bf16.msra.mxu0 0
  %1102 = vmatprep.subr.bf16.mxu0 0
  %1103 = vmatpush1.bf16.msra.mxu0 0
  %1104 = vmatprep.subr.bf16.mxu0 0
  %1105 = vmatpush1.bf16.msra.mxu0 0
  %1106 = vmatprep.subr.bf16.mxu0 0
  %1107 = vmatpush1.bf16.msra.mxu0 0
  %1108 = vmatprep.subr.bf16.mxu0 0
  %1109 = vmatpush1.bf16.msra.mxu0 0
  %1110 = vmatprep.subr.bf16.mxu0 0
  %1111 = vmatpush1.bf16.msra.mxu0 0
  %1112 = vmatprep.mubr.bf16.mxu0 0
  %1113 = vmatmul.mubr.bf16.gmra.mrb[0].mxu0 %v1078
  %v1114 = vpop.f32.mrb[0].mxu0
  %v1115 = vadd.f32 0.0, %v1114
  %v1116 = vpop.f32.mrb[0].mxu0
  %v1117 = vpop.f32.mrb[0].mxu0
  %v1118 = vpop.f32.mrb[0].mxu0
  %1119 = vdwg.mxu0
  %v1120 = vadd.f32 %v1074, %v1115
  %s1121 = scalar_lea.vmem [#allocation3], 8
  %v1122 = vld [vmem:[%s1121] sm:$0x3]
  %1123 = vrot.lane.b32.xlu0 %v1052, 32
  %v1124 = vpop.permute.xlu0 %1123
  %v1126 = vsel %vm499, %v1124, 0
  %1128 = vmatprep.subr.bf16.mxu0 0
  %1129 = vmatpush1.bf16.msra.mxu0 %v555
  %1130 = vmatprep.subr.bf16.mxu0 0
  %1131 = vmatpush1.bf16.msra.mxu0 %v556
  %1132 = vmatprep.subr.bf16.mxu0 0
  %1133 = vmatpush1.bf16.msra.mxu0 0
  %1134 = vmatprep.subr.bf16.mxu0 0
  %1135 = vmatpush1.bf16.msra.mxu0 0
  %1136 = vmatprep.subr.bf16.mxu0 0
  %1137 = vmatpush1.bf16.msra.mxu0 0
  %1138 = vmatprep.subr.bf16.mxu0 0
  %1139 = vmatpush1.bf16.msra.mxu0 0
  %1140 = vmatprep.subr.bf16.mxu0 0
  %1141 = vmatpush1.bf16.msra.mxu0 0
  %1142 = vmatprep.subr.bf16.mxu0 0
  %1143 = vmatpush1.bf16.msra.mxu0 0
  %1144 = vmatprep.subr.bf16.mxu0 0
  %1145 = vmatpush1.bf16.msra.mxu0 0
  %1146 = vmatprep.subr.bf16.mxu0 0
  %1147 = vmatpush1.bf16.msra.mxu0 0
  %1148 = vmatprep.subr.bf16.mxu0 0
  %1149 = vmatpush1.bf16.msra.mxu0 0
  %1150 = vmatprep.subr.bf16.mxu0 0
  %1151 = vmatpush1.bf16.msra.mxu0 0
  %1152 = vmatprep.subr.bf16.mxu0 0
  %1153 = vmatpush1.bf16.msra.mxu0 0
  %1154 = vmatprep.subr.bf16.mxu0 0
  %1155 = vmatpush1.bf16.msra.mxu0 0
  %1156 = vmatprep.subr.bf16.mxu0 0
  %1157 = vmatpush1.bf16.msra.mxu0 0
  %1158 = vmatprep.subr.bf16.mxu0 0
  %1159 = vmatpush1.bf16.msra.mxu0 0
  %1160 = vmatprep.mubr.bf16.mxu0 0
  %1161 = vmatmul.mubr.bf16.gmra.mrb[0].mxu0 %v1126
  %v1162 = vpop.f32.mrb[0].mxu0
  %v1163 = vadd.f32 0.0, %v1162
  %v1164 = vpop.f32.mrb[0].mxu0
  %v1165 = vpop.f32.mrb[0].mxu0
  %v1166 = vpop.f32.mrb[0].mxu0
  %1167 = vdwg.mxu0
  %v1168 = vadd.f32 %v1122, %v1163
  %v1169 = vxor.u32 %v1120, 2147483648
  %v1170 = vmul.f32 %v1169, 1.442695
  %v1171 = vpow.pop %v1170
  %v1172 = vadd.f32 %v1171, 1.0
  %v1173 = vrcp.pop %v1172
  %v1174 = vmul.f32 1.0, %v1173
  %v1175 = vtanh.pop %v1120
  %v1176 = vmul.f32 %v1174, %v1000
  %1178 = vrot.lane.b32.xlu0 %v1175, 64
  %v1179 = vpop.permute.xlu0 %1178
  %v1181 = vmul.f32 %v1174, %v1179
  %1183 = vrot.lane.b32.xlu0 %v1181, 32
  %v1184 = vpop.permute.xlu0 %1183
  %v1186 = vadd.f32 %v1176, %v1184
  %v1187 = vtanh.pop %v1186
  %1189 = vrot.lane.b32.xlu0 %v1187, 64
  %v1190 = vpop.permute.xlu0 %1189
  %v1192 = vmul.f32 %v1174, %v1190
  %v1193 = vxor.u32 %v1168, 2147483648
  %v1194 = vmul.f32 %v1193, 1.442695
  %v1195 = vpow.pop %v1194
  %v1196 = vadd.f32 %v1195, 1.0
  %v1197 = vrcp.pop %v1196
  %v1198 = vmul.f32 1.0, %v1197
  %v1199 = vtanh.pop %v1168
  %v1200 = vmul.f32 %v1198, %v1024
  %1202 = vrot.lane.b32.xlu0 %v1199, 64
  %v1203 = vpop.permute.xlu0 %1202
  %v1205 = vmul.f32 %v1198, %v1203
  %1207 = vrot.lane.b32.xlu0 %v1205, 32
  %v1208 = vpop.permute.xlu0 %1207
  %v1210 = vadd.f32 %v1200, %v1208
  %v1211 = vtanh.pop %v1210
  %1213 = vrot.lane.b32.xlu0 %v1211, 64
  %v1214 = vpop.permute.xlu0 %1213
  %v1216 = vmul.f32 %v1198, %v1214
  %v1217 = vpack.c.bf16 %v1192, %v1192
  %v1220 = vunpack.c.l.s4 1966171168
  %v1221 = vunpack.c.0.s8 %v1220
  %v1222 = vlaneseq
  %v1223 = vshrl.u32 %v1222, 7
  %v1224 = vsub.s32 %v1221, %v1223
  %v1225 = vrot.slane %v1217, %v1224
  %v1227 = vunpack.c.l.s4 1966171168
  %v1228 = vunpack.c.0.s8 %v1227
  %v1229 = vlaneseq
  %v1230 = vshrl.u32 %v1229, 7
  %v1231 = vsub.s32 %v1228, %v1230
  %v1232 = vrot.slane %v1225, %v1231
  %1233 = vrot.lane.b32.xlu0 %v1232, 32
  %v1234 = vpop.permute.xlu0 %1233
  %s1236 = scalar_lea.vmem %s8, 3
  %1237 = vst.msk [vmem:[%s1236] sm:$0x1] %vm678, %v1234
  %v1238 = vpack.c.bf16 %v1216, %v1216
  %v1241 = vunpack.c.l.s4 1966171168
  %v1242 = vunpack.c.0.s8 %v1241
  %v1243 = vlaneseq
  %v1244 = vshrl.u32 %v1243, 7
  %v1245 = vsub.s32 %v1242, %v1244
  %v1246 = vrot.slane %v1238, %v1245
  %v1248 = vunpack.c.l.s4 1966171168
  %v1249 = vunpack.c.0.s8 %v1248
  %v1250 = vlaneseq
  %v1251 = vshrl.u32 %v1250, 7
  %v1252 = vsub.s32 %v1249, %v1251
  %v1253 = vrot.slane %v1246, %v1252
  %1254 = vrot.lane.b32.xlu0 %v1253, 32
  %v1255 = vpop.permute.xlu0 %1254
  %s1257 = scalar_lea.vmem %s59, 4
  %1258 = vst.msk [vmem:[%s1257] sm:$0x1] %vm678, %v1255
  %s1259 = scalar_lea.vmem [#allocation2], 8
  %v1260 = vld [vmem:[%s1259] sm:$0x3]
  %1261 = vrot.lane.b32.xlu0 %v1217, 32
  %v1262 = vpop.permute.xlu0 %1261
  %v1264 = vsel %vm499, %v1262, 0
  %1266 = vmatprep.subr.bf16.mxu0 0
  %1267 = vmatpush1.bf16.msra.mxu0 %v495
  %1268 = vmatprep.subr.bf16.mxu0 0
  %1269 = vmatpush1.bf16.msra.mxu0 %v496
  %1270 = vmatprep.subr.bf16.mxu0 0
  %1271 = vmatpush1.bf16.msra.mxu0 0
  %1272 = vmatprep.subr.bf16.mxu0 0
  %1273 = vmatpush1.bf16.msra.mxu0 0
  %1274 = vmatprep.subr.bf16.mxu0 0
  %1275 = vmatpush1.bf16.msra.mxu0 0
  %1276 = vmatprep.subr.bf16.mxu0 0
  %1277 = vmatpush1.bf16.msra.mxu0 0
  %1278 = vmatprep.subr.bf16.mxu0 0
  %1279 = vmatpush1.bf16.msra.mxu0 0
  %1280 = vmatprep.subr.bf16.mxu0 0
  %1281 = vmatpush1.bf16.msra.mxu0 0
  %1282 = vmatprep.subr.bf16.mxu0 0
  %1283 = vmatpush1.bf16.msra.mxu0 0
  %1284 = vmatprep.subr.bf16.mxu0 0
  %1285 = vmatpush1.bf16.msra.mxu0 0
  %1286 = vmatprep.subr.bf16.mxu0 0
  %1287 = vmatpush1.bf16.msra.mxu0 0
  %1288 = vmatprep.subr.bf16.mxu0 0
  %1289 = vmatpush1.bf16.msra.mxu0 0
  %1290 = vmatprep.subr.bf16.mxu0 0
  %1291 = vmatpush1.bf16.msra.mxu0 0
  %1292 = vmatprep.subr.bf16.mxu0 0
  %1293 = vmatpush1.bf16.msra.mxu0 0
  %1294 = vmatprep.subr.bf16.mxu0 0
  %1295 = vmatpush1.bf16.msra.mxu0 0
  %1296 = vmatprep.subr.bf16.mxu0 0
  %1297 = vmatpush1.bf16.msra.mxu0 0
  %1298 = vmatprep.mubr.bf16.mxu0 0
  %1299 = vmatmul.mubr.bf16.gmra.mrb[0].mxu0 %v1264
  %v1300 = vpop.f32.mrb[0].mxu0
  %v1301 = vadd.f32 0.0, %v1300
  %v1302 = vpop.f32.mrb[0].mxu0
  %v1303 = vpop.f32.mrb[0].mxu0
  %v1304 = vpop.f32.mrb[0].mxu0
  %1305 = vdwg.mxu0
  %v1306 = vadd.f32 %v1260, %v1301
  %s1307 = scalar_lea.vmem [#allocation3], 6
  %v1308 = vld [vmem:[%s1307] sm:$0x3]
  %1309 = vrot.lane.b32.xlu0 %v1238, 32
  %v1310 = vpop.permute.xlu0 %1309
  %v1312 = vsel %vm499, %v1310, 0
  %1314 = vmatprep.subr.bf16.mxu0 0
  %1315 = vmatpush1.bf16.msra.mxu0 %v555
  %1316 = vmatprep.subr.bf16.mxu0 0
  %1317 = vmatpush1.bf16.msra.mxu0 %v556
  %1318 = vmatprep.subr.bf16.mxu0 0
  %1319 = vmatpush1.bf16.msra.mxu0 0
  %1320 = vmatprep.subr.bf16.mxu0 0
  %1321 = vmatpush1.bf16.msra.mxu0 0
  %1322 = vmatprep.subr.bf16.mxu0 0
  %1323 = vmatpush1.bf16.msra.mxu0 0
  %1324 = vmatprep.subr.bf16.mxu0 0
  %1325 = vmatpush1.bf16.msra.mxu0 0
  %1326 = vmatprep.subr.bf16.mxu0 0
  %1327 = vmatpush1.bf16.msra.mxu0 0
  %1328 = vmatprep.subr.bf16.mxu0 0
  %1329 = vmatpush1.bf16.msra.mxu0 0
  %1330 = vmatprep.subr.bf16.mxu0 0
  %1331 = vmatpush1.bf16.msra.mxu0 0
  %1332 = vmatprep.subr.bf16.mxu0 0
  %1333 = vmatpush1.bf16.msra.mxu0 0
  %1334 = vmatprep.subr.bf16.mxu0 0
  %1335 = vmatpush1.bf16.msra.mxu0 0
  %1336 = vmatprep.subr.bf16.mxu0 0
  %1337 = vmatpush1.bf16.msra.mxu0 0
  %1338 = vmatprep.subr.bf16.mxu0 0
  %1339 = vmatpush1.bf16.msra.mxu0 0
  %1340 = vmatprep.subr.bf16.mxu0 0
  %1341 = vmatpush1.bf16.msra.mxu0 0
  %1342 = vmatprep.subr.bf16.mxu0 0
  %1343 = vmatpush1.bf16.msra.mxu0 0
  %1344 = vmatprep.subr.bf16.mxu0 0
  %1345 = vmatpush1.bf16.msra.mxu0 0
  %1346 = vmatprep.mubr.bf16.mxu0 0
  %1347 = vmatmul.mubr.bf16.gmra.mrb[0].mxu0 %v1312
  %v1348 = vpop.f32.mrb[0].mxu0
  %v1349 = vadd.f32 0.0, %v1348
  %v1350 = vpop.f32.mrb[0].mxu0
  %v1351 = vpop.f32.mrb[0].mxu0
  %v1352 = vpop.f32.mrb[0].mxu0
  %1353 = vdwg.mxu0
  %v1354 = vadd.f32 %v1308, %v1349
  %v1355 = vxor.u32 %v1306, 2147483648
  %v1356 = vmul.f32 %v1355, 1.442695
  %v1357 = vpow.pop %v1356
  %v1358 = vadd.f32 %v1357, 1.0
  %v1359 = vrcp.pop %v1358
  %v1360 = vmul.f32 1.0, %v1359
  %v1361 = vtanh.pop %v1306
  %v1362 = vmul.f32 %v1360, %v1186
  %1364 = vrot.lane.b32.xlu0 %v1361, 64
  %v1365 = vpop.permute.xlu0 %1364
  %v1367 = vmul.f32 %v1360, %v1365
  %1369 = vrot.lane.b32.xlu0 %v1367, 32
  %v1370 = vpop.permute.xlu0 %1369
  %v1372 = vadd.f32 %v1362, %v1370
  %v1373 = vtanh.pop %v1372
  %1375 = vrot.lane.b32.xlu0 %v1373, 64
  %v1376 = vpop.permute.xlu0 %1375
  %v1378 = vmul.f32 %v1360, %v1376
  %v1379 = vxor.u32 %v1354, 2147483648
  %v1380 = vmul.f32 %v1379, 1.442695
  %v1381 = vpow.pop %v1380
  %v1382 = vadd.f32 %v1381, 1.0
  %v1383 = vrcp.pop %v1382
  %v1384 = vmul.f32 1.0, %v1383
  %v1385 = vtanh.pop %v1354
  %v1386 = vmul.f32 %v1384, %v1210
  %1388 = vrot.lane.b32.xlu0 %v1385, 64
  %v1389 = vpop.permute.xlu0 %1388
  %v1391 = vmul.f32 %v1384, %v1389
  %1393 = vrot.lane.b32.xlu0 %v1391, 32
  %v1394 = vpop.permute.xlu0 %1393
  %v1396 = vadd.f32 %v1386, %v1394
  %v1397 = vtanh.pop %v1396
  %1399 = vrot.lane.b32.xlu0 %v1397, 64
  %v1400 = vpop.permute.xlu0 %1399
  %v1402 = vmul.f32 %v1384, %v1400
  %v1403 = vpack.c.bf16 %v1378, %v1378
  %v1406 = vunpack.c.l.s4 1966171168
  %v1407 = vunpack.c.0.s8 %v1406
  %v1408 = vlaneseq
  %v1409 = vshrl.u32 %v1408, 7
  %v1410 = vsub.s32 %v1407, %v1409
  %v1411 = vrot.slane %v1403, %v1410
  %v1413 = vunpack.c.l.s4 1966171168
  %v1414 = vunpack.c.0.s8 %v1413
  %v1415 = vlaneseq
  %v1416 = vshrl.u32 %v1415, 7
  %v1417 = vsub.s32 %v1414, %v1416
  %v1418 = vrot.slane %v1411, %v1417
  %1419 = vrot.lane.b32.xlu0 %v1418, 32
  %v1420 = vpop.permute.xlu0 %1419
  %s1422 = scalar_lea.vmem %s8, 4
  %1423 = vst.msk [vmem:[%s1422] sm:$0x1] %vm678, %v1420
  %v1424 = vpack.c.bf16 %v1402, %v1402
  %v1427 = vunpack.c.l.s4 1966171168
  %v1428 = vunpack.c.0.s8 %v1427
  %v1429 = vlaneseq
  %v1430 = vshrl.u32 %v1429, 7
  %v1431 = vsub.s32 %v1428, %v1430
  %v1432 = vrot.slane %v1424, %v1431
  %v1434 = vunpack.c.l.s4 1966171168
  %v1435 = vunpack.c.0.s8 %v1434
  %v1436 = vlaneseq
  %v1437 = vshrl.u32 %v1436, 7
  %v1438 = vsub.s32 %v1435, %v1437
  %v1439 = vrot.slane %v1432, %v1438
  %1440 = vrot.lane.b32.xlu0 %v1439, 32
  %v1441 = vpop.permute.xlu0 %1440
  %s1443 = scalar_lea.vmem %s59, 3
  %1444 = vst.msk [vmem:[%s1443] sm:$0x1] %vm678, %v1441
  %s1445 = scalar_lea.vmem [#allocation2], 10
  %v1446 = vld [vmem:[%s1445] sm:$0x3]
  %1447 = vrot.lane.b32.xlu0 %v1403, 32
  %v1448 = vpop.permute.xlu0 %1447
  %v1450 = vsel %vm499, %v1448, 0
  %1452 = vmatprep.subr.bf16.mxu0 0
  %1453 = vmatpush1.bf16.msra.mxu0 %v495
  %1454 = vmatprep.subr.bf16.mxu0 0
  %1455 = vmatpush1.bf16.msra.mxu0 %v496
  %1456 = vmatprep.subr.bf16.mxu0 0
  %1457 = vmatpush1.bf16.msra.mxu0 0
  %1458 = vmatprep.subr.bf16.mxu0 0
  %1459 = vmatpush1.bf16.msra.mxu0 0
  %1460 = vmatprep.subr.bf16.mxu0 0
  %1461 = vmatpush1.bf16.msra.mxu0 0
  %1462 = vmatprep.subr.bf16.mxu0 0
  %1463 = vmatpush1.bf16.msra.mxu0 0
  %1464 = vmatprep.subr.bf16.mxu0 0
  %1465 = vmatpush1.bf16.msra.mxu0 0
  %1466 = vmatprep.subr.bf16.mxu0 0
  %1467 = vmatpush1.bf16.msra.mxu0 0
  %1468 = vmatprep.subr.bf16.mxu0 0
  %1469 = vmatpush1.bf16.msra.mxu0 0
  %1470 = vmatprep.subr.bf16.mxu0 0
  %1471 = vmatpush1.bf16.msra.mxu0 0
  %1472 = vmatprep.subr.bf16.mxu0 0
  %1473 = vmatpush1.bf16.msra.mxu0 0
  %1474 = vmatprep.subr.bf16.mxu0 0
  %1475 = vmatpush1.bf16.msra.mxu0 0
  %1476 = vmatprep.subr.bf16.mxu0 0
  %1477 = vmatpush1.bf16.msra.mxu0 0
  %1478 = vmatprep.subr.bf16.mxu0 0
  %1479 = vmatpush1.bf16.msra.mxu0 0
  %1480 = vmatprep.subr.bf16.mxu0 0
  %1481 = vmatpush1.bf16.msra.mxu0 0
  %1482 = vmatprep.subr.bf16.mxu0 0
  %1483 = vmatpush1.bf16.msra.mxu0 0
  %1484 = vmatprep.mubr.bf16.mxu0 0
  %1485 = vmatmul.mubr.bf16.gmra.mrb[0].mxu0 %v1450
  %v1486 = vpop.f32.mrb[0].mxu0
  %v1487 = vadd.f32 0.0, %v1486
  %v1488 = vpop.f32.mrb[0].mxu0
  %v1489 = vpop.f32.mrb[0].mxu0
  %v1490 = vpop.f32.mrb[0].mxu0
  %1491 = vdwg.mxu0
  %v1492 = vadd.f32 %v1446, %v1487
  %s1493 = scalar_lea.vmem [#allocation3], 4
  %v1494 = vld [vmem:[%s1493] sm:$0x3]
  %1495 = vrot.lane.b32.xlu0 %v1424, 32
  %v1496 = vpop.permute.xlu0 %1495
  %v1498 = vsel %vm499, %v1496, 0
  %1500 = vmatprep.subr.bf16.mxu0 0
  %1501 = vmatpush1.bf16.msra.mxu0 %v555
  %1502 = vmatprep.subr.bf16.mxu0 0
  %1503 = vmatpush1.bf16.msra.mxu0 %v556
  %1504 = vmatprep.subr.bf16.mxu0 0
  %1505 = vmatpush1.bf16.msra.mxu0 0
  %1506 = vmatprep.subr.bf16.mxu0 0
  %1507 = vmatpush1.bf16.msra.mxu0 0
  %1508 = vmatprep.subr.bf16.mxu0 0
  %1509 = vmatpush1.bf16.msra.mxu0 0
  %1510 = vmatprep.subr.bf16.mxu0 0
  %1511 = vmatpush1.bf16.msra.mxu0 0
  %1512 = vmatprep.subr.bf16.mxu0 0
  %1513 = vmatpush1.bf16.msra.mxu0 0
  %1514 = vmatprep.subr.bf16.mxu0 0
  %1515 = vmatpush1.bf16.msra.mxu0 0
  %1516 = vmatprep.subr.bf16.mxu0 0
  %1517 = vmatpush1.bf16.msra.mxu0 0
  %1518 = vmatprep.subr.bf16.mxu0 0
  %1519 = vmatpush1.bf16.msra.mxu0 0
  %1520 = vmatprep.subr.bf16.mxu0 0
  %1521 = vmatpush1.bf16.msra.mxu0 0
  %1522 = vmatprep.subr.bf16.mxu0 0
  %1523 = vmatpush1.bf16.msra.mxu0 0
  %1524 = vmatprep.subr.bf16.mxu0 0
  %1525 = vmatpush1.bf16.msra.mxu0 0
  %1526 = vmatprep.subr.bf16.mxu0 0
  %1527 = vmatpush1.bf16.msra.mxu0 0
  %1528 = vmatprep.subr.bf16.mxu0 0
  %1529 = vmatpush1.bf16.msra.mxu0 0
  %1530 = vmatprep.subr.bf16.mxu0 0
  %1531 = vmatpush1.bf16.msra.mxu0 0
  %1532 = vmatprep.mubr.bf16.mxu0 0
  %1533 = vmatmul.mubr.bf16.gmra.mrb[0].mxu0 %v1498
  %v1534 = vpop.f32.mrb[0].mxu0
  %v1535 = vadd.f32 0.0, %v1534
  %v1536 = vpop.f32.mrb[0].mxu0
  %v1537 = vpop.f32.mrb[0].mxu0
  %v1538 = vpop.f32.mrb[0].mxu0
  %1539 = vdwg.mxu0
  %v1540 = vadd.f32 %v1494, %v1535
  %v1541 = vxor.u32 %v1492, 2147483648
  %v1542 = vmul.f32 %v1541, 1.442695
  %v1543 = vpow.pop %v1542
  %v1544 = vadd.f32 %v1543, 1.0
  %v1545 = vrcp.pop %v1544
  %v1546 = vmul.f32 1.0, %v1545
  %v1547 = vtanh.pop %v1492
  %v1548 = vmul.f32 %v1546, %v1372
  %1550 = vrot.lane.b32.xlu0 %v1547, 64
  %v1551 = vpop.permute.xlu0 %1550
  %v1553 = vmul.f32 %v1546, %v1551
  %1555 = vrot.lane.b32.xlu0 %v1553, 32
  %v1556 = vpop.permute.xlu0 %1555
  %v1558 = vadd.f32 %v1548, %v1556
  %v1559 = vtanh.pop %v1558
  %1561 = vrot.lane.b32.xlu0 %v1559, 64
  %v1562 = vpop.permute.xlu0 %1561
  %v1564 = vmul.f32 %v1546, %v1562
  %v1565 = vxor.u32 %v1540, 2147483648
  %v1566 = vmul.f32 %v1565, 1.442695
  %v1567 = vpow.pop %v1566
  %v1568 = vadd.f32 %v1567, 1.0
  %v1569 = vrcp.pop %v1568
  %v1570 = vmul.f32 1.0, %v1569
  %v1571 = vtanh.pop %v1540
  %v1572 = vmul.f32 %v1570, %v1396
  %1574 = vrot.lane.b32.xlu0 %v1571, 64
  %v1575 = vpop.permute.xlu0 %1574
  %v1577 = vmul.f32 %v1570, %v1575
  %1579 = vrot.lane.b32.xlu0 %v1577, 32
  %v1580 = vpop.permute.xlu0 %1579
  %v1582 = vadd.f32 %v1572, %v1580
  %v1583 = vtanh.pop %v1582
  %1585 = vrot.lane.b32.xlu0 %v1583, 64
  %v1586 = vpop.permute.xlu0 %1585
  %v1588 = vmul.f32 %v1570, %v1586
  %v1589 = vpack.c.bf16 %v1564, %v1564
  %v1592 = vunpack.c.l.s4 1966171168
  %v1593 = vunpack.c.0.s8 %v1592
  %v1594 = vlaneseq
  %v1595 = vshrl.u32 %v1594, 7
  %v1596 = vsub.s32 %v1593, %v1595
  %v1597 = vrot.slane %v1589, %v1596
  %v1599 = vunpack.c.l.s4 1966171168
  %v1600 = vunpack.c.0.s8 %v1599
  %v1601 = vlaneseq
  %v1602 = vshrl.u32 %v1601, 7
  %v1603 = vsub.s32 %v1600, %v1602
  %v1604 = vrot.slane %v1597, %v1603
  %1605 = vrot.lane.b32.xlu0 %v1604, 32
  %v1606 = vpop.permute.xlu0 %1605
  %s1608 = scalar_lea.vmem %s8, 5
  %1609 = vst.msk [vmem:[%s1608] sm:$0x1] %vm678, %v1606
  %v1610 = vpack.c.bf16 %v1588, %v1588
  %v1613 = vunpack.c.l.s4 1966171168
  %v1614 = vunpack.c.0.s8 %v1613
  %v1615 = vlaneseq
  %v1616 = vshrl.u32 %v1615, 7
  %v1617 = vsub.s32 %v1614, %v1616
  %v1618 = vrot.slane %v1610, %v1617
  %v1620 = vunpack.c.l.s4 1966171168
  %v1621 = vunpack.c.0.s8 %v1620
  %v1622 = vlaneseq
  %v1623 = vshrl.u32 %v1622, 7
  %v1624 = vsub.s32 %v1621, %v1623
  %v1625 = vrot.slane %v1618, %v1624
  %1626 = vrot.lane.b32.xlu0 %v1625, 32
  %v1627 = vpop.permute.xlu0 %1626
  %s1629 = scalar_lea.vmem %s59, 2
  %1630 = vst.msk [vmem:[%s1629] sm:$0x1] %vm678, %v1627
  %s1631 = scalar_lea.vmem [#allocation2], 12
  %v1632 = vld [vmem:[%s1631] sm:$0x3]
  %1633 = vrot.lane.b32.xlu0 %v1589, 32
  %v1634 = vpop.permute.xlu0 %1633
  %v1636 = vsel %vm499, %v1634, 0
  %1638 = vmatprep.subr.bf16.mxu0 0
  %1639 = vmatpush1.bf16.msra.mxu0 %v495
  %1640 = vmatprep.subr.bf16.mxu0 0
  %1641 = vmatpush1.bf16.msra.mxu0 %v496
  %1642 = vmatprep.subr.bf16.mxu0 0
  %1643 = vmatpush1.bf16.msra.mxu0 0
  %1644 = vmatprep.subr.bf16.mxu0 0
  %1645 = vmatpush1.bf16.msra.mxu0 0
  %1646 = vmatprep.subr.bf16.mxu0 0
  %1647 = vmatpush1.bf16.msra.mxu0 0
  %1648 = vmatprep.subr.bf16.mxu0 0
  %1649 = vmatpush1.bf16.msra.mxu0 0
  %1650 = vmatprep.subr.bf16.mxu0 0
  %1651 = vmatpush1.bf16.msra.mxu0 0
  %1652 = vmatprep.subr.bf16.mxu0 0
  %1653 = vmatpush1.bf16.msra.mxu0 0
  %1654 = vmatprep.subr.bf16.mxu0 0
  %1655 = vmatpush1.bf16.msra.mxu0 0
  %1656 = vmatprep.subr.bf16.mxu0 0
  %1657 = vmatpush1.bf16.msra.mxu0 0
  %1658 = vmatprep.subr.bf16.mxu0 0
  %1659 = vmatpush1.bf16.msra.mxu0 0
  %1660 = vmatprep.subr.bf16.mxu0 0
  %1661 = vmatpush1.bf16.msra.mxu0 0
  %1662 = vmatprep.subr.bf16.mxu0 0
  %1663 = vmatpush1.bf16.msra.mxu0 0
  %1664 = vmatprep.subr.bf16.mxu0 0
  %1665 = vmatpush1.bf16.msra.mxu0 0
  %1666 = vmatprep.subr.bf16.mxu0 0
  %1667 = vmatpush1.bf16.msra.mxu0 0
  %1668 = vmatprep.subr.bf16.mxu0 0
  %1669 = vmatpush1.bf16.msra.mxu0 0
  %1670 = vmatprep.mubr.bf16.mxu0 0
  %1671 = vmatmul.mubr.bf16.gmra.mrb[0].mxu0 %v1636
  %v1672 = vpop.f32.mrb[0].mxu0
  %v1673 = vadd.f32 0.0, %v1672
  %v1674 = vpop.f32.mrb[0].mxu0
  %v1675 = vpop.f32.mrb[0].mxu0
  %v1676 = vpop.f32.mrb[0].mxu0
  %1677 = vdwg.mxu0
  %v1678 = vadd.f32 %v1632, %v1673
  %s1679 = scalar_lea.vmem [#allocation3], 2
  %v1680 = vld [vmem:[%s1679] sm:$0x3]
  %1681 = vrot.lane.b32.xlu0 %v1610, 32
  %v1682 = vpop.permute.xlu0 %1681
  %v1684 = vsel %vm499, %v1682, 0
  %1686 = vmatprep.subr.bf16.mxu0 0
  %1687 = vmatpush1.bf16.msra.mxu0 %v555
  %1688 = vmatprep.subr.bf16.mxu0 0
  %1689 = vmatpush1.bf16.msra.mxu0 %v556
  %1690 = vmatprep.subr.bf16.mxu0 0
  %1691 = vmatpush1.bf16.msra.mxu0 0
  %1692 = vmatprep.subr.bf16.mxu0 0
  %1693 = vmatpush1.bf16.msra.mxu0 0
  %1694 = vmatprep.subr.bf16.mxu0 0
  %1695 = vmatpush1.bf16.msra.mxu0 0
  %1696 = vmatprep.subr.bf16.mxu0 0
  %1697 = vmatpush1.bf16.msra.mxu0 0
  %1698 = vmatprep.subr.bf16.mxu0 0
  %1699 = vmatpush1.bf16.msra.mxu0 0
  %1700 = vmatprep.subr.bf16.mxu0 0
  %1701 = vmatpush1.bf16.msra.mxu0 0
  %1702 = vmatprep.subr.bf16.mxu0 0
  %1703 = vmatpush1.bf16.msra.mxu0 0
  %1704 = vmatprep.subr.bf16.mxu0 0
  %1705 = vmatpush1.bf16.msra.mxu0 0
  %1706 = vmatprep.subr.bf16.mxu0 0
  %1707 = vmatpush1.bf16.msra.mxu0 0
  %1708 = vmatprep.subr.bf16.mxu0 0
  %1709 = vmatpush1.bf16.msra.mxu0 0
  %1710 = vmatprep.subr.bf16.mxu0 0
  %1711 = vmatpush1.bf16.msra.mxu0 0
  %1712 = vmatprep.subr.bf16.mxu0 0
  %1713 = vmatpush1.bf16.msra.mxu0 0
  %1714 = vmatprep.subr.bf16.mxu0 0
  %1715 = vmatpush1.bf16.msra.mxu0 0
  %1716 = vmatprep.subr.bf16.mxu0 0
  %1717 = vmatpush1.bf16.msra.mxu0 0
  %1718 = vmatprep.mubr.bf16.mxu0 0
  %1719 = vmatmul.mubr.bf16.gmra.mrb[0].mxu0 %v1684
  %v1720 = vpop.f32.mrb[0].mxu0
  %v1721 = vadd.f32 0.0, %v1720
  %v1722 = vpop.f32.mrb[0].mxu0
  %v1723 = vpop.f32.mrb[0].mxu0
  %v1724 = vpop.f32.mrb[0].mxu0
  %1725 = vdwg.mxu0
  %v1726 = vadd.f32 %v1680, %v1721
  %v1727 = vxor.u32 %v1678, 2147483648
  %v1728 = vmul.f32 %v1727, 1.442695
  %v1729 = vpow.pop %v1728
  %v1730 = vadd.f32 %v1729, 1.0
  %v1731 = vrcp.pop %v1730
  %v1732 = vmul.f32 1.0, %v1731
  %v1733 = vtanh.pop %v1678
  %v1734 = vmul.f32 %v1732, %v1558
  %1736 = vrot.lane.b32.xlu0 %v1733, 64
  %v1737 = vpop.permute.xlu0 %1736
  %v1739 = vmul.f32 %v1732, %v1737
  %1741 = vrot.lane.b32.xlu0 %v1739, 32
  %v1742 = vpop.permute.xlu0 %1741
  %v1744 = vadd.f32 %v1734, %v1742
  %v1745 = vtanh.pop %v1744
  %1747 = vrot.lane.b32.xlu0 %v1745, 64
  %v1748 = vpop.permute.xlu0 %1747
  %v1750 = vmul.f32 %v1732, %v1748
  %v1751 = vxor.u32 %v1726, 2147483648
  %v1752 = vmul.f32 %v1751, 1.442695
  %v1753 = vpow.pop %v1752
  %v1754 = vadd.f32 %v1753, 1.0
  %v1755 = vrcp.pop %v1754
  %v1756 = vmul.f32 1.0, %v1755
  %v1757 = vtanh.pop %v1726
  %v1758 = vmul.f32 %v1756, %v1582
  %1760 = vrot.lane.b32.xlu0 %v1757, 64
  %v1761 = vpop.permute.xlu0 %1760
  %v1763 = vmul.f32 %v1756, %v1761
  %1765 = vrot.lane.b32.xlu0 %v1763, 32
  %v1766 = vpop.permute.xlu0 %1765
  %v1768 = vadd.f32 %v1758, %v1766
  %v1769 = vtanh.pop %v1768
  %1771 = vrot.lane.b32.xlu0 %v1769, 64
  %v1772 = vpop.permute.xlu0 %1771
  %v1774 = vmul.f32 %v1756, %v1772
  %v1775 = vpack.c.bf16 %v1750, %v1750
  %v1778 = vunpack.c.l.s4 1966171168
  %v1779 = vunpack.c.0.s8 %v1778
  %v1780 = vlaneseq
  %v1781 = vshrl.u32 %v1780, 7
  %v1782 = vsub.s32 %v1779, %v1781
  %v1783 = vrot.slane %v1775, %v1782
  %v1785 = vunpack.c.l.s4 1966171168
  %v1786 = vunpack.c.0.s8 %v1785
  %v1787 = vlaneseq
  %v1788 = vshrl.u32 %v1787, 7
  %v1789 = vsub.s32 %v1786, %v1788
  %v1790 = vrot.slane %v1783, %v1789
  %1791 = vrot.lane.b32.xlu0 %v1790, 32
  %v1792 = vpop.permute.xlu0 %1791
  %s1794 = scalar_lea.vmem %s8, 6
  %1795 = vst.msk [vmem:[%s1794] sm:$0x1] %vm678, %v1792
  %v1796 = vpack.c.bf16 %v1774, %v1774
  %v1799 = vunpack.c.l.s4 1966171168
  %v1800 = vunpack.c.0.s8 %v1799
  %v1801 = vlaneseq
  %v1802 = vshrl.u32 %v1801, 7
  %v1803 = vsub.s32 %v1800, %v1802
  %v1804 = vrot.slane %v1796, %v1803
  %v1806 = vunpack.c.l.s4 1966171168
  %v1807 = vunpack.c.0.s8 %v1806
  %v1808 = vlaneseq
  %v1809 = vshrl.u32 %v1808, 7
  %v1810 = vsub.s32 %v1807, %v1809
  %v1811 = vrot.slane %v1804, %v1810
  %1812 = vrot.lane.b32.xlu0 %v1811, 32
  %v1813 = vpop.permute.xlu0 %1812
  %s1815 = scalar_lea.vmem %s59, 1
  %1816 = vst.msk [vmem:[%s1815] sm:$0x1] %vm678, %v1813
  %s1817 = scalar_lea.vmem [#allocation2], 14
  %v1818 = vld [vmem:[%s1817] sm:$0x3]
  %1819 = vrot.lane.b32.xlu0 %v1775, 32
  %v1820 = vpop.permute.xlu0 %1819
  %v1822 = vsel %vm499, %v1820, 0
  %1824 = vmatprep.subr.bf16.mxu0 0
  %1825 = vmatpush1.bf16.msra.mxu0 %v495
  %1826 = vmatprep.subr.bf16.mxu0 0
  %1827 = vmatpush1.bf16.msra.mxu0 %v496
  %1828 = vmatprep.subr.bf16.mxu0 0
  %1829 = vmatpush1.bf16.msra.mxu0 0
  %1830 = vmatprep.subr.bf16.mxu0 0
  %1831 = vmatpush1.bf16.msra.mxu0 0
  %1832 = vmatprep.subr.bf16.mxu0 0
  %1833 = vmatpush1.bf16.msra.mxu0 0
  %1834 = vmatprep.subr.bf16.mxu0 0
  %1835 = vmatpush1.bf16.msra.mxu0 0
  %1836 = vmatprep.subr.bf16.mxu0 0
  %1837 = vmatpush1.bf16.msra.mxu0 0
  %1838 = vmatprep.subr.bf16.mxu0 0
  %1839 = vmatpush1.bf16.msra.mxu0 0
  %1840 = vmatprep.subr.bf16.mxu0 0
  %1841 = vmatpush1.bf16.msra.mxu0 0
  %1842 = vmatprep.subr.bf16.mxu0 0
  %1843 = vmatpush1.bf16.msra.mxu0 0
  %1844 = vmatprep.subr.bf16.mxu0 0
  %1845 = vmatpush1.bf16.msra.mxu0 0
  %1846 = vmatprep.subr.bf16.mxu0 0
  %1847 = vmatpush1.bf16.msra.mxu0 0
  %1848 = vmatprep.subr.bf16.mxu0 0
  %1849 = vmatpush1.bf16.msra.mxu0 0
  %1850 = vmatprep.subr.bf16.mxu0 0
  %1851 = vmatpush1.bf16.msra.mxu0 0
  %1852 = vmatprep.subr.bf16.mxu0 0
  %1853 = vmatpush1.bf16.msra.mxu0 0
  %1854 = vmatprep.subr.bf16.mxu0 0
  %1855 = vmatpush1.bf16.msra.mxu0 0
  %1856 = vmatprep.mubr.bf16.mxu0 0
  %1857 = vmatmul.mubr.bf16.gmra.mrb[0].mxu0 %v1822
  %v1858 = vpop.f32.mrb[0].mxu0
  %v1859 = vadd.f32 0.0, %v1858
  %v1860 = vpop.f32.mrb[0].mxu0
  %v1861 = vpop.f32.mrb[0].mxu0
  %v1862 = vpop.f32.mrb[0].mxu0
  %1863 = vdwg.mxu0
  %v1864 = vadd.f32 %v1818, %v1859
  %v1865 = vld [vmem:[#allocation3] sm:$0x3]
  %1866 = vrot.lane.b32.xlu0 %v1796, 32
  %v1867 = vpop.permute.xlu0 %1866
  %v1869 = vsel %vm499, %v1867, 0
  %1871 = vmatprep.subr.bf16.mxu0 0
  %1872 = vmatpush1.bf16.msra.mxu0 %v555
  %1873 = vmatprep.subr.bf16.mxu0 0
  %1874 = vmatpush1.bf16.msra.mxu0 %v556
  %1875 = vmatprep.subr.bf16.mxu0 0
  %1876 = vmatpush1.bf16.msra.mxu0 0
  %1877 = vmatprep.subr.bf16.mxu0 0
  %1878 = vmatpush1.bf16.msra.mxu0 0
  %1879 = vmatprep.subr.bf16.mxu0 0
  %1880 = vmatpush1.bf16.msra.mxu0 0
  %1881 = vmatprep.subr.bf16.mxu0 0
  %1882 = vmatpush1.bf16.msra.mxu0 0
  %1883 = vmatprep.subr.bf16.mxu0 0
  %1884 = vmatpush1.bf16.msra.mxu0 0
  %1885 = vmatprep.subr.bf16.mxu0 0
  %1886 = vmatpush1.bf16.msra.mxu0 0
  %1887 = vmatprep.subr.bf16.mxu0 0
  %1888 = vmatpush1.bf16.msra.mxu0 0
  %1889 = vmatprep.subr.bf16.mxu0 0
  %1890 = vmatpush1.bf16.msra.mxu0 0
  %1891 = vmatprep.subr.bf16.mxu0 0
  %1892 = vmatpush1.bf16.msra.mxu0 0
  %1893 = vmatprep.subr.bf16.mxu0 0
  %1894 = vmatpush1.bf16.msra.mxu0 0
  %1895 = vmatprep.subr.bf16.mxu0 0
  %1896 = vmatpush1.bf16.msra.mxu0 0
  %1897 = vmatprep.subr.bf16.mxu0 0
  %1898 = vmatpush1.bf16.msra.mxu0 0
  %1899 = vmatprep.subr.bf16.mxu0 0
  %1900 = vmatpush1.bf16.msra.mxu0 0
  %1901 = vmatprep.subr.bf16.mxu0 0
  %1902 = vmatpush1.bf16.msra.mxu0 0
  %1903 = vmatprep.mubr.bf16.mxu0 0
  %1904 = vmatmul.mubr.bf16.gmra.mrb[0].mxu0 %v1869
  %v1905 = vpop.f32.mrb[0].mxu0
  %v1906 = vadd.f32 0.0, %v1905
  %v1907 = vpop.f32.mrb[0].mxu0
  %v1908 = vpop.f32.mrb[0].mxu0
  %v1909 = vpop.f32.mrb[0].mxu0
  %1910 = vdwg.mxu0
  %v1911 = vadd.f32 %v1865, %v1906
  %v1912 = vxor.u32 %v1864, 2147483648
  %v1913 = vmul.f32 %v1912, 1.442695
  %v1914 = vpow.pop %v1913
  %v1915 = vadd.f32 %v1914, 1.0
  %v1916 = vrcp.pop %v1915
  %v1917 = vmul.f32 1.0, %v1916
  %v1918 = vtanh.pop %v1864
  %v1919 = vmul.f32 %v1917, %v1744
  %1921 = vrot.lane.b32.xlu0 %v1918, 64
  %v1922 = vpop.permute.xlu0 %1921
  %v1924 = vmul.f32 %v1917, %v1922
  %1926 = vrot.lane.b32.xlu0 %v1924, 32
  %v1927 = vpop.permute.xlu0 %1926
  %v1929 = vadd.f32 %v1919, %v1927
  %v1930 = vtanh.pop %v1929
  %1932 = vrot.lane.b32.xlu0 %v1930, 64
  %v1933 = vpop.permute.xlu0 %1932
  %v1935 = vmul.f32 %v1917, %v1933
  %v1936 = vxor.u32 %v1911, 2147483648
  %v1937 = vmul.f32 %v1936, 1.442695
  %v1938 = vpow.pop %v1937
  %v1939 = vadd.f32 %v1938, 1.0
  %v1940 = vrcp.pop %v1939
  %v1941 = vmul.f32 1.0, %v1940
  %v1942 = vtanh.pop %v1911
  %v1943 = vmul.f32 %v1941, %v1768
  %1945 = vrot.lane.b32.xlu0 %v1942, 64
  %v1946 = vpop.permute.xlu0 %1945
  %v1948 = vmul.f32 %v1941, %v1946
  %1950 = vrot.lane.b32.xlu0 %v1948, 32
  %v1951 = vpop.permute.xlu0 %1950
  %v1953 = vadd.f32 %v1943, %v1951
  %v1954 = vtanh.pop %v1953
  %1956 = vrot.lane.b32.xlu0 %v1954, 64
  %v1957 = vpop.permute.xlu0 %1956
  %v1959 = vmul.f32 %v1941, %v1957
  %v1960 = vpack.c.bf16 %v1935, %v1935
  %v1963 = vunpack.c.l.s4 1966171168
  %v1964 = vunpack.c.0.s8 %v1963
  %v1965 = vlaneseq
  %v1966 = vshrl.u32 %v1965, 7
  %v1967 = vsub.s32 %v1964, %v1966
  %v1968 = vrot.slane %v1960, %v1967
  %v1970 = vunpack.c.l.s4 1966171168
  %v1971 = vunpack.c.0.s8 %v1970
  %v1972 = vlaneseq
  %v1973 = vshrl.u32 %v1972, 7
  %v1974 = vsub.s32 %v1971, %v1973
  %v1975 = vrot.slane %v1968, %v1974
  %1976 = vrot.lane.b32.xlu0 %v1975, 32
  %v1977 = vpop.permute.xlu0 %1976
  %s1979 = scalar_lea.vmem %s8, 7
  %1980 = vst.msk [vmem:[%s1979] sm:$0x1] %vm678, %v1977
  %v1981 = vpack.c.bf16 %v1959, %v1959
  %v1984 = vunpack.c.l.s4 1966171168
  %v1985 = vunpack.c.0.s8 %v1984
  %v1986 = vlaneseq
  %v1987 = vshrl.u32 %v1986, 7
  %v1988 = vsub.s32 %v1985, %v1987
  %v1989 = vrot.slane %v1981, %v1988
  %v1991 = vunpack.c.l.s4 1966171168
  %v1992 = vunpack.c.0.s8 %v1991
  %v1993 = vlaneseq
  %v1994 = vshrl.u32 %v1993, 7
  %v1995 = vsub.s32 %v1992, %v1994
  %v1996 = vrot.slane %v1989, %v1995
  %1997 = vrot.lane.b32.xlu0 %v1996, 32
  %v1998 = vpop.permute.xlu0 %1997
  %2000 = vst.msk [vmem:[%s59] sm:$0x1] %vm678, %v1998
  %2002 = vrot.lane.b32.xlu0 %v1935, 32
  %v2003 = vpop.permute.xlu0 %2002
  %vm2005 = vcmask 254976
  %2006 = vst.msk [vmem:[#allocation4] sm:$0x3] %vm2005, %v2003
  %2008 = vrot.lane.b32.xlu0 %v1929, 96
  %v2009 = vpop.permute.xlu0 %2008
  %2011 = vst.msk [vmem:[#allocation5] sm:$0x3] %vm2005, %v2009
  %2013 = vrot.lane.b32.xlu0 %v1959, 32
  %v2014 = vpop.permute.xlu0 %2013
  %2016 = vst.msk [vmem:[#allocation6] sm:$0x3] %vm2005, %v2014
  %2018 = vrot.lane.b32.xlu0 %v1953, 96
  %v2019 = vpop.permute.xlu0 %2018
  %2021 = vst.msk [vmem:[#allocation7] sm:$0x3] %vm2005, %v2019
  %s2022 = ssub.s32 0, 0
  %s2023 = smul.u32 8, %s2022
  %p2024 = scmp.lt.s32.totalorder %s2023, 7
  %s2025 = scalar_select %p2024, %s2023, 7
  %s2026 = scalar_lea.vmem %s9, %s2025
  // Predicated region
  $region38: #{lstm_encoder_forward.3} parent=0 // pred_check
    _
  $region39: #{lstm_encoder_forward.3} parent=0 // pred_check_branch
    %2028 = sbr.rel (0) target = $region41
  $region40: #{lstm_encoder_forward.3} parent=0 // pred_region
    _
  $region41: #{lstm_encoder_forward.3} parent=0 // pred_fallthru
    _
  // Predicated region
  $region42: #{lstm_encoder_forward.3} parent=0 // pred_check
    _
  $region43: #{lstm_encoder_forward.3} parent=0 // pred_check_branch
    %2030 = sbr.rel (0) target = $region45
  $region44: #{lstm_encoder_forward.3} parent=0 // pred_region
    %s2031 = ssub.s32 0, 0
    %s2032 = smul.u32 8, %s2031
  $region45: #{lstm_encoder_forward.3} parent=0 // pred_fallthru
    _
  // Predicated region
  $region46: #{lstm_encoder_forward.3} parent=0 // pred_check
    _
  $region47: #{lstm_encoder_forward.3} parent=0 // pred_check_branch
    %2034 = sbr.rel (0) target = $region49
  $region48: #{lstm_encoder_forward.3} parent=0 // pred_region
    _
  $region49: #{lstm_encoder_forward.3} parent=0 // pred_fallthru
    _
  // Predicated region
  $region50: #{lstm_encoder_forward.3} parent=0 // pred_check
    _
  $region51: #{lstm_encoder_forward.3} parent=0 // pred_check_branch
    %2036 = sbr.rel (0) target = $region53
  $region52: #{lstm_encoder_forward.3} parent=0 // pred_region
    %s2037 = ssub.s32 0, 0
    %s2038 = smul.u32 8, %s2037
    %p2039 = scmp.lt.s32.totalorder %s2038, 7
    %s2040 = scalar_select %p2039, %s2038, 7
    %s2041 = scalar_lea.vmem %s9, %s2040
  $region53: #{lstm_encoder_forward.3} parent=0 // pred_fallthru
    _

</llo_original>
